<compile_context>
chip_gen: v7x
topology: tpu7x:2x2x1
jax: 0.10.0
libtpu: 0.0.40
codegen_flags: <defaults>
</compile_context>

<pallas_src>
import jax
import jax.numpy as jnp
from jax.experimental import pallas as pl
from jax.experimental.pallas import tpu as pltpu

LANE = 128          # lane-dense width for the two softmax heads
NEG = -1e30         # "minus infinity" for padded logits (finite -> no inf/nan)


# ----------------------------------------------------------------------------
# Pallas kernel: Btile images per grid step; entire NREModel forward fused.
# ----------------------------------------------------------------------------
def nre_kernel(x_ref,                         # [Btile, HW, 9C]   bf16 (im2col slab)
               conv_w_ref, conv_b_ref,        # [9C, Cout] bf16, [1, Cout] f32
               fc_wt_ref, fc_b_ref,           # [Cout, F] f32 (1/HW folded), [1, F] f32
               dom_w_ref, dom_b_ref,          # [F, 128] f32 zero-pad, [1, 128] f32 (-1e30 pad)
               anchors_ref,                   # [128, F] f32 (zero-padded rows)
               proj_w_ref, proj_b_ref,        # [F, 128] f32 zero-pad, [1, 128] f32 (-1e30 pad)
               p_ref, dom_ref):               # [Btile, 128] f32 each (lane-dense outputs)
    Bt, HW, KC = x_ref.shape
    Cout = conv_w_ref.shape[-1]

    # ---- backbone stand-in: 3x3 conv as ONE im2col MXU matmul (bf16 in, f32
    #      acc), bias + ReLU, global-avg-pool (1/HW pre-folded), FC ----------
    x2d = x_ref[...].reshape(Bt * HW, KC)                          # bf16 [Bt*HW, 9C]
    conv = jnp.dot(x2d, conv_w_ref[...],
                   preferred_element_type=jnp.float32)             # f32 [Bt*HW, Cout]
    relu = jnp.maximum(conv + conv_b_ref[...], 0.0)
    pooled = jnp.sum(relu.reshape(Bt, HW, Cout), axis=1)           # f32 [Bt, Cout]
    features = jnp.dot(pooled, fc_wt_ref[...],
                       preferred_element_type=jnp.float32) + fc_b_ref[...]   # [Bt, F]

    # ---- DomainHead: batched linear into lane-padded logits + softmax ------
    dlog = jnp.dot(features, dom_w_ref[...],
                   preferred_element_type=jnp.float32) + dom_b_ref[...]      # [Bt, 128]
    dlog = dlog - jnp.max(dlog, axis=-1, keepdims=True)
    de = jnp.exp(dlog)                                             # padded lanes -> 0
    domain_prob = de / jnp.sum(de, axis=-1, keepdims=True)         # exact softmax
    dom_ref[...] = domain_prob

    # ---- RelativeEncoding: v = features - domain_prob @ neutral_anchors ----
    # (padded lanes of domain_prob are exactly 0; padded anchor rows are 0)
    neutral = jnp.dot(domain_prob, anchors_ref[...],
                      preferred_element_type=jnp.float32)          # [Bt, F]
    v = features - neutral

    # ---- NREProjection (class prototypes) + NREClassifier (softmax) --------
    alog = jnp.dot(v, proj_w_ref[...],
                   preferred_element_type=jnp.float32) + proj_b_ref[...]     # [Bt, 128]
    alog = alog - jnp.max(alog, axis=-1, keepdims=True)
    ae = jnp.exp(alog)                                             # padded lanes -> 0
    p_ref[...] = ae / jnp.sum(ae, axis=-1, keepdims=True)


# ----------------------------------------------------------------------------
# Parameter prep: kernel-ready layouts (im2col conv weight, 1/HW folded into
# FC, lane-padded heads) built once at init; raw params kept for the reference.
# ----------------------------------------------------------------------------
def init_params(key, C, Cout, F, D, K, H, W):
    ks = jax.random.split(key, 9)
    s = 0.1
    conv_w = jax.random.normal(ks[0], (Cout, C, 3, 3), jnp.float32) * s   # torch layout
    conv_b = jax.random.normal(ks[1], (Cout,), jnp.float32) * s
    fc_w   = jax.random.normal(ks[2], (F, Cout), jnp.float32) * s         # torch [out,in]
    fc_b   = jax.random.normal(ks[3], (F,), jnp.float32) * s
    dom_w  = jax.random.normal(ks[4], (D, F), jnp.float32) * s
    dom_b  = jax.random.normal(ks[5], (D,), jnp.float32) * s
    anchors = jax.random.normal(ks[6], (D, F), jnp.float32) * s
    proj_w = jax.random.normal(ks[7], (K, F), jnp.float32) * s
    proj_b = jax.random.normal(ks[8], (K,), jnp.float32) * s

    # conv weight in im2col order [ (kh*3+kw)*C + cin , Cout ]
    conv_w_flat = jnp.transpose(conv_w, (2, 3, 1, 0)).reshape(9 * C, Cout)

    params = {
        # kernel-ready
        "conv_w": conv_w_flat.astype(jnp.bfloat16),                        # [9C, Cout]
        "conv_b": conv_b.reshape(1, Cout),                                 # [1, Cout]
        "fc_wt":  (fc_w.T / float(H * W)),                                 # [Cout, F] (GAP folded)
        "fc_b":   fc_b.reshape(1, F),                                      # [1, F]
        "dom_w":  jnp.zeros((F, LANE), jnp.float32).at[:, :D].set(dom_w.T),
        "dom_b":  jnp.full((1, LANE), NEG, jnp.float32).at[0, :D].set(dom_b),
        "anchors": jnp.zeros((LANE, F), jnp.float32).at[:D, :].set(anchors),
        "proj_w": jnp.zeros((F, LANE), jnp.float32).at[:, :K].set(proj_w.T),
        "proj_b": jnp.full((1, LANE), NEG, jnp.float32).at[0, :K].set(proj_b),
        "n_classes": K,
        "n_domains": D,
        # raw (f32 reference)
        "raw": {"conv_w_flat": conv_w_flat, "conv_b": conv_b, "fc_w": fc_w,
                "fc_b": fc_b, "dom_w": dom_w, "dom_b": dom_b,
                "anchors": anchors, "proj_w": proj_w, "proj_b": proj_b},
    }
    return params


def _const_spec(arr):
    zeros = (0,) * arr.ndim
    return pl.BlockSpec(arr.shape, lambda b, _z=zeros: _z)


def _im2col(x):
    """x: [B, C, H, W] (NCHW) -> [B, H*W, 9*C] bf16 im2col slab (3x3, pad=1, stride=1)."""
    B, C, H, W = x.shape
    xh = jnp.transpose(x, (0, 2, 3, 1))                            # NHWC
    xpad = jnp.pad(xh, ((0, 0), (1, 1), (1, 1), (0, 0)))           # [B, H+2, W+2, C]
    taps = [xpad[:, kh:kh + H, kw:kw + W, :]
            for kh in range(3) for kw in range(3)]
    col = jnp.concatenate(taps, axis=-1)                           # [B, H, W, 9C]
    return col.reshape(B, H * W, 9 * C).astype(jnp.bfloat16)


def _choose_btile(B, cap=64):
    # cap keeps the per-step live set well under v5e's 16 MiB scoped VMEM;
    # raise cap (and set vmem_limit_bytes) on v6e/v7x for very large batches.
    bt = min(cap, B)
    if B >= 2:
        bt = min(bt, -(-B // 2))   # keep >= 2 grid steps so both v7x TCs get work
    return max(bt, 1)


# ----------------------------------------------------------------------------
# Wrapper: im2col slab, batch-tiled pallas_call, slice lane-padded outputs.
# ----------------------------------------------------------------------------
def nre_forward(x, params, btile=None):
    """NREModel.forward: x [B, C, H, W] -> (p [B, n_classes], domain_prob [B, n_domains])."""
    # (the PyTorch forward's `print(x.shape)` debug line is intentionally omitted)
    B, C, H, W = x.shape
    K = params["n_classes"]
    D = params["n_domains"]
    HW = H * W
    KC = 9 * C

    col = _im2col(x)                                               # [B, HW, 9C] bf16

    Btile = _choose_btile(B) if btile is None else btile
    n_steps = pl.cdiv(B, Btile)
    Bp = n_steps * Btile
    if Bp != B:
        col = jnp.pad(col, ((0, Bp - B), (0, 0), (0, 0)))

    args = (col, params["conv_w"], params["conv_b"],
            params["fc_wt"], params["fc_b"],
            params["dom_w"], params["dom_b"],
            params["anchors"],
            params["proj_w"], params["proj_b"])

    in_specs = [pl.BlockSpec((Btile, HW, KC), lambda b: (b, 0, 0))] + \
               [_const_spec(a) for a in args[1:]]

    out_shape = (jax.ShapeDtypeStruct((Bp, LANE), jnp.float32),
                 jax.ShapeDtypeStruct((Bp, LANE), jnp.float32))
    out_specs = (pl.BlockSpec((Btile, LANE), lambda b: (b, 0)),
                 pl.BlockSpec((Btile, LANE), lambda b: (b, 0)))

    p_pad, dom_pad = pl.pallas_call(
        nre_kernel,
        out_shape=out_shape,
        grid=(n_steps,),
        in_specs=in_specs,
        out_specs=out_specs,
        compiler_params=pltpu.CompilerParams(
            dimension_semantics=("parallel",)),
    )(*args)

    # lane-dense [Bp, 128] kernel outputs; slice back to the module's shapes.
    return p_pad[:B, :K], dom_pad[:B, :D]


# ----------------------------------------------------------------------------
# Pure-JAX f32 reference (same stand-in backbone) for a correctness check.
# ----------------------------------------------------------------------------
def nre_reference(x, params):
    raw = params["raw"]
    B, C, H, W = x.shape
    xh = jnp.transpose(x, (0, 2, 3, 1))
    xpad = jnp.pad(xh, ((0, 0), (1, 1), (1, 1), (0, 0)))
    taps = [xpad[:, kh:kh + H, kw:kw + W, :] for kh in range(3) for kw in range(3)]
    col = jnp.concatenate(taps, axis=-1).reshape(B, H * W, 9 * C)
    conv = col @ raw["conv_w_flat"] + raw["conv_b"]
    relu = jnp.maximum(conv, 0.0)
    pooled = jnp.mean(relu, axis=1)                                # global avg pool
    features = pooled @ raw["fc_w"].T + raw["fc_b"]
    domain_prob = jax.nn.softmax(features @ raw["dom_w"].T + raw["dom_b"], axis=-1)
    v = features - domain_prob @ raw["anchors"]
    p = jax.nn.softmax(v @ raw["proj_w"].T + raw["proj_b"], axis=-1)
    return p, domain_prob


if __name__ == "__main__":
    # Small shapes consistent with the module: NCHW RGB image input,
    # n_classes=7, n_domains=1, in_features=15.  B=16 exercises batch tiling
    # (Btile=8 -> 2 parallel grid steps).
    B, C, H, W = 16, 3, 16, 16
    n_classes, n_domains, in_features = 7, 1, 15
    Cout = 32  # backbone stand-in conv width

    key = jax.random.PRNGKey(0)
    kx, kp = jax.random.split(key)
    x = jax.random.normal(kx, (B, C, H, W), jnp.float32)
    params = init_params(kp, C, Cout, in_features, n_domains, n_classes, H, W)

    p, domain_prob = nre_forward(x, params)
    jax.block_until_ready((p, domain_prob))

    assert p.shape == (B, n_classes) and domain_prob.shape == (B, n_domains)
    # exact softmax -> rows sum to 1 tightly; non-negative probabilities
    assert jnp.allclose(jnp.sum(p, axis=-1), 1.0, atol=1e-4)
    assert jnp.allclose(jnp.sum(domain_prob, axis=-1), 1.0, atol=1e-4)
    assert bool(jnp.all(p >= 0.0)) and bool(jnp.all(domain_prob >= 0.0))

    # compare against f32 reference (kernel conv operands are bf16 -> loose tol)
    p_ref, dom_ref = nre_reference(x, params)
    assert jnp.allclose(p, p_ref, atol=2e-2)
    assert jnp.allclose(domain_prob, dom_ref, atol=2e-2)

    print("KERNEL_OK")
</pallas_src>

<mosaic_0001>
module attributes {stable_mosaic.version = 11 : i64} {
  func.func @nre_kernel(%arg0: i32, %arg1: memref<8x256x27xbf16, #tpu.memory_space<vmem>>, %arg2: memref<27x32xbf16, #tpu.memory_space<vmem>>, %arg3: memref<1x32xf32, #tpu.memory_space<vmem>>, %arg4: memref<32x15xf32, #tpu.memory_space<vmem>>, %arg5: memref<1x15xf32, #tpu.memory_space<vmem>>, %arg6: memref<15x128xf32, #tpu.memory_space<vmem>>, %arg7: memref<1x128xf32, #tpu.memory_space<vmem>>, %arg8: memref<128x15xf32, #tpu.memory_space<vmem>>, %arg9: memref<15x128xf32, #tpu.memory_space<vmem>>, %arg10: memref<1x128xf32, #tpu.memory_space<vmem>>, %arg11: memref<8x128xf32, #tpu.memory_space<vmem>>, %arg12: memref<8x128xf32, #tpu.memory_space<vmem>>) attributes {dimension_semantics = [#tpu.dimension_semantics<parallel>], iteration_bounds = array<i64: 2>, scalar_prefetch = 0 : i64, scratch_operands = 0 : i64, tpu.core_type = #tpu.core_type<tc>, window_params = [{transform_indices = @transform_0, window_bounds = array<i64: 8, 256, 27>}, {pipeline_mode = #tpu.pipeline_mode<synchronous>, transform_indices = @transform_1, window_bounds = array<i64: 27, 32>}, {pipeline_mode = #tpu.pipeline_mode<synchronous>, transform_indices = @transform_2, window_bounds = array<i64: 1, 32>}, {pipeline_mode = #tpu.pipeline_mode<synchronous>, transform_indices = @transform_3, window_bounds = array<i64: 32, 15>}, {pipeline_mode = #tpu.pipeline_mode<synchronous>, transform_indices = @transform_4, window_bounds = array<i64: 1, 15>}, {pipeline_mode = #tpu.pipeline_mode<synchronous>, transform_indices = @transform_5, window_bounds = array<i64: 15, 128>}, {pipeline_mode = #tpu.pipeline_mode<synchronous>, transform_indices = @transform_6, window_bounds = array<i64: 1, 128>}, {pipeline_mode = #tpu.pipeline_mode<synchronous>, transform_indices = @transform_7, window_bounds = array<i64: 128, 15>}, {pipeline_mode = #tpu.pipeline_mode<synchronous>, transform_indices = @transform_8, window_bounds = array<i64: 15, 128>}, {pipeline_mode = #tpu.pipeline_mode<synchronous>, transform_indices = @transform_9, window_bounds = array<i64: 1, 128>}, {transform_indices = @transform_10, window_bounds = array<i64: 8, 128>}, {transform_indices = @transform_11, window_bounds = array<i64: 8, 128>}]} {
    %c0 = arith.constant 0 : index
    %c0_0 = arith.constant 0 : index
    %c0_1 = arith.constant 0 : index
    %0 = vector.load %arg1[%c0, %c0_0, %c0_1] : memref<8x256x27xbf16, #tpu.memory_space<vmem>>, vector<8x256x27xbf16>
    %1 = vector.shape_cast %0 : vector<8x256x27xbf16> to vector<2048x27xbf16>
    %c0_2 = arith.constant 0 : index
    %c0_3 = arith.constant 0 : index
    %2 = vector.load %arg2[%c0_2, %c0_3] : memref<27x32xbf16, #tpu.memory_space<vmem>>, vector<27x32xbf16>
    %cst = arith.constant dense<0.000000e+00> : vector<2048x32xf32>
    %3 = tpu.matmul %1, %2, %cst {dimension_numbers = #tpu.dot_dimension_numbers<[1], [0], [0], [1], [0, 0, 1, 1], [], []>} : vector<2048x27xbf16>, vector<27x32xbf16>, vector<2048x32xf32> -> vector<2048x32xf32>
    %c0_4 = arith.constant 0 : index
    %c0_5 = arith.constant 0 : index
    %4 = vector.load %arg3[%c0_4, %c0_5] : memref<1x32xf32, #tpu.memory_space<vmem>>, vector<1x32xf32>
    %5 = vector.broadcast %4 : vector<1x32xf32> to vector<2048x32xf32>
    %6 = arith.addf %3, %5 : vector<2048x32xf32>
    %cst_6 = arith.constant 0.000000e+00 : f32
    %7 = vector.broadcast %cst_6 : f32 to vector<2048x32xf32>
    %8 = arith.maximumf %6, %7 : vector<2048x32xf32>
    %9 = vector.shape_cast %8 : vector<2048x32xf32> to vector<8x256x32xf32>
    %cst_7 = arith.constant dense<0.000000e+00> : vector<8x32xf32>
    %10 = vector.multi_reduction <add>, %9, %cst_7 [1] : vector<8x256x32xf32> to vector<8x32xf32>
    %c0_8 = arith.constant 0 : index
    %c0_9 = arith.constant 0 : index
    %11 = vector.load %arg4[%c0_8, %c0_9] : memref<32x15xf32, #tpu.memory_space<vmem>>, vector<32x15xf32>
    %cst_10 = arith.constant dense<0.000000e+00> : vector<8x15xf32>
    %12 = tpu.matmul %10, %11, %cst_10 {dimension_numbers = #tpu.dot_dimension_numbers<[1], [0], [0], [1], [0, 0, 1, 1], [], []>} : vector<8x32xf32>, vector<32x15xf32>, vector<8x15xf32> -> vector<8x15xf32>
    %c0_11 = arith.constant 0 : index
    %c0_12 = arith.constant 0 : index
    %13 = vector.load %arg5[%c0_11, %c0_12] : memref<1x15xf32, #tpu.memory_space<vmem>>, vector<1x15xf32>
    %14 = vector.broadcast %13 : vector<1x15xf32> to vector<8x15xf32>
    %15 = arith.addf %12, %14 : vector<8x15xf32>
    %c0_13 = arith.constant 0 : index
    %c0_14 = arith.constant 0 : index
    %16 = vector.load %arg6[%c0_13, %c0_14] : memref<15x128xf32, #tpu.memory_space<vmem>>, vector<15x128xf32>
    %cst_15 = arith.constant dense<0.000000e+00> : vector<8x128xf32>
    %17 = tpu.matmul %15, %16, %cst_15 {dimension_numbers = #tpu.dot_dimension_numbers<[1], [0], [0], [1], [0, 0, 1, 1], [], []>} : vector<8x15xf32>, vector<15x128xf32>, vector<8x128xf32> -> vector<8x128xf32>
    %c0_16 = arith.constant 0 : index
    %c0_17 = arith.constant 0 : index
    %18 = vector.load %arg7[%c0_16, %c0_17] : memref<1x128xf32, #tpu.memory_space<vmem>>, vector<1x128xf32>
    %19 = vector.broadcast %18 : vector<1x128xf32> to vector<8x128xf32>
    %20 = arith.addf %17, %19 : vector<8x128xf32>
    %cst_18 = arith.constant dense<0xFF800000> : vector<8xf32>
    %21 = vector.multi_reduction <maximumf>, %20, %cst_18 [1] : vector<8x128xf32> to vector<8xf32>
    %22 = vector.shape_cast %21 : vector<8xf32> to vector<8x1xf32>
    %23 = vector.broadcast %22 : vector<8x1xf32> to vector<8x128xf32>
    %24 = arith.subf %20, %23 : vector<8x128xf32>
    %25 = math.exp %24 : vector<8x128xf32>
    %cst_19 = arith.constant dense<0.000000e+00> : vector<8xf32>
    %26 = vector.multi_reduction <add>, %25, %cst_19 [1] : vector<8x128xf32> to vector<8xf32>
    %27 = vector.shape_cast %26 : vector<8xf32> to vector<8x1xf32>
    %28 = vector.broadcast %27 : vector<8x1xf32> to vector<8x128xf32>
    %29 = arith.divf %25, %28 : vector<8x128xf32>
    %c0_20 = arith.constant 0 : index
    %c0_21 = arith.constant 0 : index
    %30 = vector.load %arg12[%c0_20, %c0_21] : memref<8x128xf32, #tpu.memory_space<vmem>>, vector<8x128xf32>
    tpu.vector_store %arg12[%c0_20, %c0_21], %29 {strides = array<i32>} : memref<8x128xf32, #tpu.memory_space<vmem>>, vector<8x128xf32>,
    %c0_22 = arith.constant 0 : index
    %c0_23 = arith.constant 0 : index
    %31 = vector.load %arg8[%c0_22, %c0_23] : memref<128x15xf32, #tpu.memory_space<vmem>>, vector<128x15xf32>
    %cst_24 = arith.constant dense<0.000000e+00> : vector<8x15xf32>
    %32 = tpu.matmul %29, %31, %cst_24 {dimension_numbers = #tpu.dot_dimension_numbers<[1], [0], [0], [1], [0, 0, 1, 1], [], []>} : vector<8x128xf32>, vector<128x15xf32>, vector<8x15xf32> -> vector<8x15xf32>
    %33 = arith.subf %15, %32 : vector<8x15xf32>
    %c0_25 = arith.constant 0 : index
    %c0_26 = arith.constant 0 : index
    %34 = vector.load %arg9[%c0_25, %c0_26] : memref<15x128xf32, #tpu.memory_space<vmem>>, vector<15x128xf32>
    %cst_27 = arith.constant dense<0.000000e+00> : vector<8x128xf32>
    %35 = tpu.matmul %33, %34, %cst_27 {dimension_numbers = #tpu.dot_dimension_numbers<[1], [0], [0], [1], [0, 0, 1, 1], [], []>} : vector<8x15xf32>, vector<15x128xf32>, vector<8x128xf32> -> vector<8x128xf32>
    %c0_28 = arith.constant 0 : index
    %c0_29 = arith.constant 0 : index
    %36 = vector.load %arg10[%c0_28, %c0_29] : memref<1x128xf32, #tpu.memory_space<vmem>>, vector<1x128xf32>
    %37 = vector.broadcast %36 : vector<1x128xf32> to vector<8x128xf32>
    %38 = arith.addf %35, %37 : vector<8x128xf32>
    %cst_30 = arith.constant dense<0xFF800000> : vector<8xf32>
    %39 = vector.multi_reduction <maximumf>, %38, %cst_30 [1] : vector<8x128xf32> to vector<8xf32>
    %40 = vector.shape_cast %39 : vector<8xf32> to vector<8x1xf32>
    %41 = vector.broadcast %40 : vector<8x1xf32> to vector<8x128xf32>
    %42 = arith.subf %38, %41 : vector<8x128xf32>
    %43 = math.exp %42 : vector<8x128xf32>
    %cst_31 = arith.constant dense<0.000000e+00> : vector<8xf32>
    %44 = vector.multi_reduction <add>, %43, %cst_31 [1] : vector<8x128xf32> to vector<8xf32>
    %45 = vector.shape_cast %44 : vector<8xf32> to vector<8x1xf32>
    %46 = vector.broadcast %45 : vector<8x1xf32> to vector<8x128xf32>
    %47 = arith.divf %43, %46 : vector<8x128xf32>
    %c0_32 = arith.constant 0 : index
    %c0_33 = arith.constant 0 : index
    %48 = vector.load %arg11[%c0_32, %c0_33] : memref<8x128xf32, #tpu.memory_space<vmem>>, vector<8x128xf32>
    tpu.vector_store %arg11[%c0_32, %c0_33], %47 {strides = array<i32>} : memref<8x128xf32, #tpu.memory_space<vmem>>, vector<8x128xf32>,
    return
  }
  func.func @transform_0(%arg0: i32) -> (i32, i32, i32) {
    %c0_i32 = arith.constant 0 : i32
    %c0_i32_0 = arith.constant 0 : i32
    %c0_i32_1 = arith.constant 0 : i32
    return %arg0, %c0_i32, %c0_i32_0 : i32, i32, i32
  }
  func.func @transform_1(%arg0: i32) -> (i32, i32) {
    %c0_i32 = arith.constant 0 : i32
    %c0_i32_0 = arith.constant 0 : i32
    %c0_i32_1 = arith.constant 0 : i32
    return %c0_i32, %c0_i32_0 : i32, i32
  }
  func.func @transform_2(%arg0: i32) -> (i32, i32) {
    %c0_i32 = arith.constant 0 : i32
    %c0_i32_0 = arith.constant 0 : i32
    %c0_i32_1 = arith.constant 0 : i32
    return %c0_i32, %c0_i32_0 : i32, i32
  }
  func.func @transform_3(%arg0: i32) -> (i32, i32) {
    %c0_i32 = arith.constant 0 : i32
    %c0_i32_0 = arith.constant 0 : i32
    %c0_i32_1 = arith.constant 0 : i32
    return %c0_i32, %c0_i32_0 : i32, i32
  }
  func.func @transform_4(%arg0: i32) -> (i32, i32) {
    %c0_i32 = arith.constant 0 : i32
    %c0_i32_0 = arith.constant 0 : i32
    %c0_i32_1 = arith.constant 0 : i32
    return %c0_i32, %c0_i32_0 : i32, i32
  }
  func.func @transform_5(%arg0: i32) -> (i32, i32) {
    %c0_i32 = arith.constant 0 : i32
    %c0_i32_0 = arith.constant 0 : i32
    %c0_i32_1 = arith.constant 0 : i32
    return %c0_i32, %c0_i32_0 : i32, i32
  }
  func.func @transform_6(%arg0: i32) -> (i32, i32) {
    %c0_i32 = arith.constant 0 : i32
    %c0_i32_0 = arith.constant 0 : i32
    %c0_i32_1 = arith.constant 0 : i32
    return %c0_i32, %c0_i32_0 : i32, i32
  }
  func.func @transform_7(%arg0: i32) -> (i32, i32) {
    %c0_i32 = arith.constant 0 : i32
    %c0_i32_0 = arith.constant 0 : i32
    %c0_i32_1 = arith.constant 0 : i32
    return %c0_i32, %c0_i32_0 : i32, i32
  }
  func.func @transform_8(%arg0: i32) -> (i32, i32) {
    %c0_i32 = arith.constant 0 : i32
    %c0_i32_0 = arith.constant 0 : i32
    %c0_i32_1 = arith.constant 0 : i32
    return %c0_i32, %c0_i32_0 : i32, i32
  }
  func.func @transform_9(%arg0: i32) -> (i32, i32) {
    %c0_i32 = arith.constant 0 : i32
    %c0_i32_0 = arith.constant 0 : i32
    %c0_i32_1 = arith.constant 0 : i32
    return %c0_i32, %c0_i32_0 : i32, i32
  }
  func.func @transform_10(%arg0: i32) -> (i32, i32) {
    %c0_i32 = arith.constant 0 : i32
    %c0_i32_0 = arith.constant 0 : i32
    return %arg0, %c0_i32 : i32, i32
  }
  func.func @transform_11(%arg0: i32) -> (i32, i32) {
    %c0_i32 = arith.constant 0 : i32
    %c0_i32_0 = arith.constant 0 : i32
    return %arg0, %c0_i32 : i32, i32
  }
}

</mosaic_0001>

<llo_original>
// kernel: tpu_custom_call.1
$region0: #{tpu_custom_call.1}
  #allocation0 [shape = 'u32[]', space=smem, size = 0x4, offset = 0x4, fixed_abs, tag = 'smem constant byte address 0x4 - core index']
  #allocation1 [shape = 'u32[144,128]{1,0:T(1,128)}', space=vmem, size = 0x12000, scoped, tag = 'internal scratch']
  %s0 = inlined_call_operand.vmem [shape: bf16[16,256,27], index: 0, kind: input, shape index: {}]
  %s1 = inlined_call_operand.vmem [shape: bf16[27,32], index: 1, kind: input, shape index: {}]
  %s2 = inlined_call_operand.vmem [shape: f32[1,32], index: 2, kind: input, shape index: {}]
  %s3 = inlined_call_operand.vmem [shape: f32[32,15], index: 3, kind: input, shape index: {}]
  %s4 = inlined_call_operand.vmem [shape: f32[1,15], index: 4, kind: input, shape index: {}]
  %s5 = inlined_call_operand.vmem [shape: f32[15,128], index: 5, kind: input, shape index: {}]
  %s6 = inlined_call_operand.vmem [shape: f32[1,128], index: 6, kind: input, shape index: {}]
  %s7 = inlined_call_operand.vmem [shape: f32[128,15], index: 7, kind: input, shape index: {}]
  %s8 = inlined_call_operand.vmem [shape: f32[15,128], index: 8, kind: input, shape index: {}]
  %s9 = inlined_call_operand.vmem [shape: f32[1,128], index: 9, kind: input, shape index: {}]
  %s10 = inlined_call_operand.hbm [shape: f32[16,128], index: 10, kind: output, shape index: {0}]
  %s11 = inlined_call_operand.hbm [shape: f32[16,128], index: 11, kind: output, shape index: {1}]
  %12 = xla_tuple %s10, %s11
  %s13 = sld [smem:[#allocation0]]
  $region81: #{tpu_custom_call.1} parent=0
    _
  %s15 = ssub.s32 1, %s13
  %s16 = scalar_select 0, %s15, %s13
  $region1: #{tpu_custom_call.1} parent=0
    #allocation2 [shape = 'u8[8192]{0}', space=vmem, size = 0x2000, scoped, tag = 'output window, operand 0']
    #allocation3 [shape = 's32[2]{0}', space=sflag, size = 0x8, scoped, tag = 'scoped memory for tpu_custom_call.1']
    #allocation4 [shape = 'u8[8192]{0}', space=vmem, size = 0x2000, scoped, tag = 'output window, operand 1']
    #allocation5 [shape = 's32[2]{0}', space=sflag, size = 0x8, scoped, tag = 'scoped memory for tpu_custom_call.1']
    %17 = vsyncpa [#allocation3], 0
    %s18 = scalar_lea.sflag [#allocation3], 1
    %19 = vsyncpa %s18, 0
    %20 = vsyncpa [#allocation5], 0
    %s21 = scalar_lea.sflag [#allocation5], 1
    %22 = vsyncpa %s21, 0
    loop: start=0, step=1, limit=4
    $region2: #{tpu_custom_call.1} parent=1 // loop_pre_header
      _
    $region3: #{tpu_custom_call.1} parent=1 // loop_header
      %s24 = sphi 0, %s28
      %p25 = scmp.ge.s32.totalorder %s24, 4
      %s34 = sphi 0, %s36
      %s37 = sphi 0, %s34
      %s38 = sphi 0, %s37
      %s54 = sphi 0, %s38
      %s58 = sphi 0, %s58
      %s60 = sphi 0, %s58
      %s61 = sphi 0, %s60
      %s75 = sphi 0, %s61
      %s79 = sphi 0, %s79
      %s81 = sphi 0, %s79
      %s82 = sphi 0, %s81
      %s96 = sphi 0, %s82
      %s100 = sphi 0, %s100
      %s102 = sphi 0, %s100
      %s103 = sphi 0, %s102
      %s117 = sphi 0, %s103
      %s121 = sphi 0, %s121
      %s123 = sphi 0, %s121
      %s124 = sphi 0, %s123
      %s138 = sphi 0, %s124
      %s142 = sphi 0, %s142
      %s144 = sphi 0, %s142
      %s145 = sphi 0, %s144
      %s159 = sphi 0, %s145
      %s163 = sphi 0, %s163
      %s165 = sphi 0, %s163
      %s166 = sphi 0, %s165
      %s180 = sphi 0, %s166
      %s184 = sphi 0, %s184
      %s186 = sphi 0, %s184
      %s187 = sphi 0, %s186
      %s201 = sphi 0, %s187
      %s205 = sphi 0, %s205
      %s207 = sphi 0, %s205
      %s208 = sphi 0, %s207
      %s222 = sphi 0, %s208
      %s226 = sphi 0, %s226
      %s228 = sphi 0, %s226
      %s229 = sphi 0, %s228
      %s243 = sphi 0, %s229
      %s249 = sphi 0, %s251
      %s252 = sphi 0, %s249
      %s253 = sphi 0, %s252
      %s269 = sphi 0, %s253
      %s275 = sphi 0, %s277
      %s278 = sphi 0, %s275
      %s279 = sphi 0, %s278
      %s295 = sphi 0, %s279
    $region4: #{tpu_custom_call.1} parent=1 // loop_header_branch
      %27 = sbr.rel (%p25) target = $region8
    $region5: #{tpu_custom_call.1} parent=1 // loop_body
      %s29 = ssub.s32 %s24, 1
      %s30 = ssub.s32 %s24, 2
      %s31 = sadd.s32 %s24, 1
      %s32 = ssub.s32 %s24, %s31
      %p33 = scmp.eq.s32.totalorder %s32, 0
      %s35 = sadd.s32 %s34, 1
      %s36 = scalar_select %p33, %s34, %s35
      %p39 = pneg %p33
      %p40 = scmp.eq.s32.totalorder %s24, 1
      %p41 = por %p39, %p40
      %p42 = scmp.ne.s32.totalorder %s34, %s37
      %p43 = scmp.eq.s32.totalorder %s24, 0
      %p44 = por %p42, %p43
      %p45 = scmp.ne.s32.totalorder %s34, %s37
      %p46 = scmp.eq.s32.totalorder %s29, 1
      %p47 = por %p45, %p46
      %p48 = scmp.ne.s32.totalorder %s37, %s38
      %p49 = scmp.eq.s32.totalorder %s29, 0
      %p50 = por %p48, %p49
      %p51 = scmp.ne.s32.totalorder %s37, %s38
      %p52 = scmp.eq.s32.totalorder %s30, 1
      %p53 = por %p51, %p52
      %p55 = scmp.ne.s32.totalorder %s38, %s54
      %p56 = scmp.eq.s32.totalorder %s30, 0
      %p57 = por %p55, %p56
      %s59 = sadd.s32 %s58, 1
      %p62 = scmp.eq.s32.totalorder %s24, 1
      %p63 = scmp.ne.s32.totalorder %s58, %s60
      %p64 = scmp.eq.s32.totalorder %s24, 0
      %p65 = por %p63, %p64
      %p66 = scmp.ne.s32.totalorder %s58, %s60
      %p67 = scmp.eq.s32.totalorder %s29, 1
      %p68 = por %p66, %p67
      %p69 = scmp.ne.s32.totalorder %s60, %s61
      %p70 = scmp.eq.s32.totalorder %s29, 0
      %p71 = por %p69, %p70
      %p72 = scmp.ne.s32.totalorder %s60, %s61
      %p73 = scmp.eq.s32.totalorder %s30, 1
      %p74 = por %p72, %p73
      %p76 = scmp.ne.s32.totalorder %s61, %s75
      %p77 = scmp.eq.s32.totalorder %s30, 0
      %p78 = por %p76, %p77
      %s80 = sadd.s32 %s79, 1
      %p83 = scmp.eq.s32.totalorder %s24, 1
      %p84 = scmp.ne.s32.totalorder %s79, %s81
      %p85 = scmp.eq.s32.totalorder %s24, 0
      %p86 = por %p84, %p85
      %p87 = scmp.ne.s32.totalorder %s79, %s81
      %p88 = scmp.eq.s32.totalorder %s29, 1
      %p89 = por %p87, %p88
      %p90 = scmp.ne.s32.totalorder %s81, %s82
      %p91 = scmp.eq.s32.totalorder %s29, 0
      %p92 = por %p90, %p91
      %p93 = scmp.ne.s32.totalorder %s81, %s82
      %p94 = scmp.eq.s32.totalorder %s30, 1
      %p95 = por %p93, %p94
      %p97 = scmp.ne.s32.totalorder %s82, %s96
      %p98 = scmp.eq.s32.totalorder %s30, 0
      %p99 = por %p97, %p98
      %s101 = sadd.s32 %s100, 1
      %p104 = scmp.eq.s32.totalorder %s24, 1
      %p105 = scmp.ne.s32.totalorder %s100, %s102
      %p106 = scmp.eq.s32.totalorder %s24, 0
      %p107 = por %p105, %p106
      %p108 = scmp.ne.s32.totalorder %s100, %s102
      %p109 = scmp.eq.s32.totalorder %s29, 1
      %p110 = por %p108, %p109
      %p111 = scmp.ne.s32.totalorder %s102, %s103
      %p112 = scmp.eq.s32.totalorder %s29, 0
      %p113 = por %p111, %p112
      %p114 = scmp.ne.s32.totalorder %s102, %s103
      %p115 = scmp.eq.s32.totalorder %s30, 1
      %p116 = por %p114, %p115
      %p118 = scmp.ne.s32.totalorder %s103, %s117
      %p119 = scmp.eq.s32.totalorder %s30, 0
      %p120 = por %p118, %p119
      %s122 = sadd.s32 %s121, 1
      %p125 = scmp.eq.s32.totalorder %s24, 1
      %p126 = scmp.ne.s32.totalorder %s121, %s123
      %p127 = scmp.eq.s32.totalorder %s24, 0
      %p128 = por %p126, %p127
      %p129 = scmp.ne.s32.totalorder %s121, %s123
      %p130 = scmp.eq.s32.totalorder %s29, 1
      %p131 = por %p129, %p130
      %p132 = scmp.ne.s32.totalorder %s123, %s124
      %p133 = scmp.eq.s32.totalorder %s29, 0
      %p134 = por %p132, %p133
      %p135 = scmp.ne.s32.totalorder %s123, %s124
      %p136 = scmp.eq.s32.totalorder %s30, 1
      %p137 = por %p135, %p136
      %p139 = scmp.ne.s32.totalorder %s124, %s138
      %p140 = scmp.eq.s32.totalorder %s30, 0
      %p141 = por %p139, %p140
      %s143 = sadd.s32 %s142, 1
      %p146 = scmp.eq.s32.totalorder %s24, 1
      %p147 = scmp.ne.s32.totalorder %s142, %s144
      %p148 = scmp.eq.s32.totalorder %s24, 0
      %p149 = por %p147, %p148
      %p150 = scmp.ne.s32.totalorder %s142, %s144
      %p151 = scmp.eq.s32.totalorder %s29, 1
      %p152 = por %p150, %p151
      %p153 = scmp.ne.s32.totalorder %s144, %s145
      %p154 = scmp.eq.s32.totalorder %s29, 0
      %p155 = por %p153, %p154
      %p156 = scmp.ne.s32.totalorder %s144, %s145
      %p157 = scmp.eq.s32.totalorder %s30, 1
      %p158 = por %p156, %p157
      %p160 = scmp.ne.s32.totalorder %s145, %s159
      %p161 = scmp.eq.s32.totalorder %s30, 0
      %p162 = por %p160, %p161
      %s164 = sadd.s32 %s163, 1
      %p167 = scmp.eq.s32.totalorder %s24, 1
      %p168 = scmp.ne.s32.totalorder %s163, %s165
      %p169 = scmp.eq.s32.totalorder %s24, 0
      %p170 = por %p168, %p169
      %p171 = scmp.ne.s32.totalorder %s163, %s165
      %p172 = scmp.eq.s32.totalorder %s29, 1
      %p173 = por %p171, %p172
      %p174 = scmp.ne.s32.totalorder %s165, %s166
      %p175 = scmp.eq.s32.totalorder %s29, 0
      %p176 = por %p174, %p175
      %p177 = scmp.ne.s32.totalorder %s165, %s166
      %p178 = scmp.eq.s32.totalorder %s30, 1
      %p179 = por %p177, %p178
      %p181 = scmp.ne.s32.totalorder %s166, %s180
      %p182 = scmp.eq.s32.totalorder %s30, 0
      %p183 = por %p181, %p182
      %s185 = sadd.s32 %s184, 1
      %p188 = scmp.eq.s32.totalorder %s24, 1
      %p189 = scmp.ne.s32.totalorder %s184, %s186
      %p190 = scmp.eq.s32.totalorder %s24, 0
      %p191 = por %p189, %p190
      %p192 = scmp.ne.s32.totalorder %s184, %s186
      %p193 = scmp.eq.s32.totalorder %s29, 1
      %p194 = por %p192, %p193
      %p195 = scmp.ne.s32.totalorder %s186, %s187
      %p196 = scmp.eq.s32.totalorder %s29, 0
      %p197 = por %p195, %p196
      %p198 = scmp.ne.s32.totalorder %s186, %s187
      %p199 = scmp.eq.s32.totalorder %s30, 1
      %p200 = por %p198, %p199
      %p202 = scmp.ne.s32.totalorder %s187, %s201
      %p203 = scmp.eq.s32.totalorder %s30, 0
      %p204 = por %p202, %p203
      %s206 = sadd.s32 %s205, 1
      %p209 = scmp.eq.s32.totalorder %s24, 1
      %p210 = scmp.ne.s32.totalorder %s205, %s207
      %p211 = scmp.eq.s32.totalorder %s24, 0
      %p212 = por %p210, %p211
      %p213 = scmp.ne.s32.totalorder %s205, %s207
      %p214 = scmp.eq.s32.totalorder %s29, 1
      %p215 = por %p213, %p214
      %p216 = scmp.ne.s32.totalorder %s207, %s208
      %p217 = scmp.eq.s32.totalorder %s29, 0
      %p218 = por %p216, %p217
      %p219 = scmp.ne.s32.totalorder %s207, %s208
      %p220 = scmp.eq.s32.totalorder %s30, 1
      %p221 = por %p219, %p220
      %p223 = scmp.ne.s32.totalorder %s208, %s222
      %p224 = scmp.eq.s32.totalorder %s30, 0
      %p225 = por %p223, %p224
      %s227 = sadd.s32 %s226, 1
      %p230 = scmp.eq.s32.totalorder %s24, 1
      %p231 = scmp.ne.s32.totalorder %s226, %s228
      %p232 = scmp.eq.s32.totalorder %s24, 0
      %p233 = por %p231, %p232
      %p234 = scmp.ne.s32.totalorder %s226, %s228
      %p235 = scmp.eq.s32.totalorder %s29, 1
      %p236 = por %p234, %p235
      %p237 = scmp.ne.s32.totalorder %s228, %s229
      %p238 = scmp.eq.s32.totalorder %s29, 0
      %p239 = por %p237, %p238
      %p240 = scmp.ne.s32.totalorder %s228, %s229
      %p241 = scmp.eq.s32.totalorder %s30, 1
      %p242 = por %p240, %p241
      %p244 = scmp.ne.s32.totalorder %s229, %s243
      %p245 = scmp.eq.s32.totalorder %s30, 0
      %p246 = por %p244, %p245
      %s247 = ssub.s32 %s24, %s31
      %p248 = scmp.eq.s32.totalorder %s247, 0
      %s250 = sadd.s32 %s249, 1
      %s251 = scalar_select %p248, %s249, %s250
      %p254 = pneg %p248
      %p255 = scmp.eq.s32.totalorder %s24, 1
      %p256 = por %p254, %p255
      %p257 = scmp.ne.s32.totalorder %s249, %s252
      %p258 = scmp.eq.s32.totalorder %s24, 0
      %p259 = por %p257, %p258
      %p260 = scmp.ne.s32.totalorder %s249, %s252
      %p261 = scmp.eq.s32.totalorder %s29, 1
      %p262 = por %p260, %p261
      %p263 = scmp.ne.s32.totalorder %s252, %s253
      %p264 = scmp.eq.s32.totalorder %s29, 0
      %p265 = por %p263, %p264
      %p266 = scmp.ne.s32.totalorder %s252, %s253
      %p267 = scmp.eq.s32.totalorder %s30, 1
      %p268 = por %p266, %p267
      %p270 = scmp.ne.s32.totalorder %s253, %s269
      %p271 = scmp.eq.s32.totalorder %s30, 0
      %p272 = por %p270, %p271
      %s273 = ssub.s32 %s24, %s31
      %p274 = scmp.eq.s32.totalorder %s273, 0
      %s276 = sadd.s32 %s275, 1
      %s277 = scalar_select %p274, %s275, %s276
      %p280 = pneg %p274
      %p281 = scmp.eq.s32.totalorder %s24, 1
      %p282 = por %p280, %p281
      %p283 = scmp.ne.s32.totalorder %s275, %s278
      %p284 = scmp.eq.s32.totalorder %s24, 0
      %p285 = por %p283, %p284
      %p286 = scmp.ne.s32.totalorder %s275, %s278
      %p287 = scmp.eq.s32.totalorder %s29, 1
      %p288 = por %p286, %p287
      %p289 = scmp.ne.s32.totalorder %s278, %s279
      %p290 = scmp.eq.s32.totalorder %s29, 0
      %p291 = por %p289, %p290
      %p292 = scmp.ne.s32.totalorder %s278, %s279
      %p293 = scmp.eq.s32.totalorder %s30, 1
      %p294 = por %p292, %p293
      %p296 = scmp.ne.s32.totalorder %s279, %s295
      %p297 = scmp.eq.s32.totalorder %s30, 0
      %p298 = por %p296, %p297
      %p299 = scmp.le.s32.totalorder 1, %s24
      %p300 = scmp.lt.s32.totalorder %s24, 3
      %p301 = pnand %p299, %p300
      %p302 = pneg %p301
      // Predicated region
      $region9: #{tpu_custom_call.1} parent=5 // pred_check
        _
      $region10: #{tpu_custom_call.1} parent=5 // pred_check_branch
        %304 = sbr.rel (%p301) target = $region12
      $region11: #{tpu_custom_call.1} parent=5 // pred_region
        %s305 = ssub.s32 %s24, 1
        // Predicated region
        $region13: #{tpu_custom_call.1} parent=11 // pred_check
          %p306 = pneg %p71
        $region14: #{tpu_custom_call.1} parent=11 // pred_check_branch
          %308 = sbr.rel (%p306) target = $region16
        $region15: #{tpu_custom_call.1} parent=11 // pred_region
          _
        $region16: #{tpu_custom_call.1} parent=11 // pred_fallthru
          _
        // Predicated region
        $region17: #{tpu_custom_call.1} parent=11 // pred_check
          %p309 = pneg %p92
        $region18: #{tpu_custom_call.1} parent=11 // pred_check_branch
          %311 = sbr.rel (%p309) target = $region20
        $region19: #{tpu_custom_call.1} parent=11 // pred_region
          _
        $region20: #{tpu_custom_call.1} parent=11 // pred_fallthru
          _
        // Predicated region
        $region21: #{tpu_custom_call.1} parent=11 // pred_check
          %p312 = pneg %p113
        $region22: #{tpu_custom_call.1} parent=11 // pred_check_branch
          %314 = sbr.rel (%p312) target = $region24
        $region23: #{tpu_custom_call.1} parent=11 // pred_region
          _
        $region24: #{tpu_custom_call.1} parent=11 // pred_fallthru
          _
        // Predicated region
        $region25: #{tpu_custom_call.1} parent=11 // pred_check
          %p315 = pneg %p134
        $region26: #{tpu_custom_call.1} parent=11 // pred_check_branch
          %317 = sbr.rel (%p315) target = $region28
        $region27: #{tpu_custom_call.1} parent=11 // pred_region
          _
        $region28: #{tpu_custom_call.1} parent=11 // pred_fallthru
          _
        // Predicated region
        $region29: #{tpu_custom_call.1} parent=11 // pred_check
          %p318 = pneg %p155
        $region30: #{tpu_custom_call.1} parent=11 // pred_check_branch
          %320 = sbr.rel (%p318) target = $region32
        $region31: #{tpu_custom_call.1} parent=11 // pred_region
          _
        $region32: #{tpu_custom_call.1} parent=11 // pred_fallthru
          _
        // Predicated region
        $region33: #{tpu_custom_call.1} parent=11 // pred_check
          %p321 = pneg %p176
        $region34: #{tpu_custom_call.1} parent=11 // pred_check_branch
          %323 = sbr.rel (%p321) target = $region36
        $region35: #{tpu_custom_call.1} parent=11 // pred_region
          _
        $region36: #{tpu_custom_call.1} parent=11 // pred_fallthru
          _
        // Predicated region
        $region37: #{tpu_custom_call.1} parent=11 // pred_check
          %p324 = pneg %p197
        $region38: #{tpu_custom_call.1} parent=11 // pred_check_branch
          %326 = sbr.rel (%p324) target = $region40
        $region39: #{tpu_custom_call.1} parent=11 // pred_region
          _
        $region40: #{tpu_custom_call.1} parent=11 // pred_fallthru
          _
        // Predicated region
        $region41: #{tpu_custom_call.1} parent=11 // pred_check
          %p327 = pneg %p218
        $region42: #{tpu_custom_call.1} parent=11 // pred_check_branch
          %329 = sbr.rel (%p327) target = $region44
        $region43: #{tpu_custom_call.1} parent=11 // pred_region
          _
        $region44: #{tpu_custom_call.1} parent=11 // pred_fallthru
          _
        // Predicated region
        $region45: #{tpu_custom_call.1} parent=11 // pred_check
          %p330 = pneg %p239
        $region46: #{tpu_custom_call.1} parent=11 // pred_check_branch
          %332 = sbr.rel (%p330) target = $region48
        $region47: #{tpu_custom_call.1} parent=11 // pred_region
          _
        $region48: #{tpu_custom_call.1} parent=11 // pred_fallthru
          _
      $region12: #{tpu_custom_call.1} parent=5 // pred_fallthru
        _
      %p333 = scmp.lt.s32.totalorder %s24, 2
      // Predicated region
      $region49: #{tpu_custom_call.1} parent=5 // pred_check
        %p334 = pneg %p333
      $region50: #{tpu_custom_call.1} parent=5 // pred_check_branch
        %336 = sbr.rel (%p334) target = $region52
      $region51: #{tpu_custom_call.1} parent=5 // pred_region
        // Predicated region
        $region53: #{tpu_custom_call.1} parent=51 // pred_check
          %p337 = pneg %p44
        $region54: #{tpu_custom_call.1} parent=51 // pred_check_branch
          %339 = sbr.rel (%p337) target = $region56
        $region55: #{tpu_custom_call.1} parent=51 // pred_region
          %s340 = smul.u32 8, %s24
          %p341 = scmp.lt.s32.totalorder %s340, 15
          %s342 = scalar_select %p341, %s340, 15
          %s343 = smul.addr %s342, 32
          %s344 = smul.addr %s343, 4
          %s345 = scalar_lea.vmem %s0, %s344
          %s346 = smul.u32 8, %s24
        $region56: #{tpu_custom_call.1} parent=51 // pred_fallthru
          _
      $region52: #{tpu_custom_call.1} parent=5 // pred_fallthru
        _
      %p347 = scmp.le.s32.totalorder 1, %s24
      %p348 = scmp.lt.s32.totalorder %s24, 3
      %p349 = pnand %p347, %p348
      %p350 = pneg %p349
      // Predicated region
      $region57: #{tpu_custom_call.1} parent=5 // pred_check
        _
      $region58: #{tpu_custom_call.1} parent=5 // pred_check_branch
        %352 = sbr.rel (%p349) target = $region60
      $region59: #{tpu_custom_call.1} parent=5 // pred_region
        %s353 = ssub.s32 %s24, 1
        %s354 = smul.u32 8, %s29
        %p355 = scmp.lt.s32.totalorder %s354, 15
        %s356 = scalar_select %p355, %s354, 15
        %s357 = smul.addr %s356, 32
        %s358 = smul.addr %s357, 4
        %s359 = scalar_lea.vmem %s0, %s358
        %p360 = pneg %p50
        %p361 = pneg %p47
        %p362 = pneg %p71
        %p363 = pneg %p68
        %p364 = pneg %p92
        %p365 = pneg %p89
        %p366 = pneg %p113
        %p367 = pneg %p110
        %p368 = pneg %p134
        %p369 = pneg %p131
        %p370 = pneg %p155
        %p371 = pneg %p152
        %p372 = pneg %p176
        %p373 = pneg %p173
        %p374 = pneg %p197
        %p375 = pneg %p194
        %p376 = pneg %p218
        %p377 = pneg %p215
        %p378 = pneg %p239
        %p379 = pneg %p236
        %p380 = pneg %p265
        %p381 = pneg %p262
        %s382 = sand.u32 %s252, 1
        %s383 = scalar_lea.sflag [#allocation3], %s382
        %s384 = sand.u32 %s252, 1
        %s385 = smul.addr %s384, 8
        %s386 = scalar_lea.vmem [#allocation2], %s385
        %p387 = pneg %p291
        %p388 = pneg %p288
        %s389 = sand.u32 %s278, 1
        %s390 = scalar_lea.sflag [#allocation5], %s389
        %s391 = sand.u32 %s278, 1
        %s392 = smul.addr %s391, 8
        %s393 = scalar_lea.vmem [#allocation4], %s392
        %s394 = smul.u32 8, %s29
        %p395 = scmp.lt.s32.totalorder %s394, 15
        %s396 = scalar_select %p395, %s394, 15
        %s397 = smul.addr %s396, 32
        %s398 = smul.addr %s397, 4
        %s399 = scalar_lea.vmem %s0, %s398
        %s400 = smul.u32 8, %s29
        %v402 = vld [vmem:[%s399] sm:$0xf]
        %v403 = vld [vmem:[%s399 + $0x4] sm:$0xf]
        %v404 = vld [vmem:[%s399 + $0x8] sm:$0xf]
        %v405 = vld [vmem:[%s399 + $0xc] sm:$0xf]
        %v406 = vld [vmem:[%s399 + $0x10] sm:$0xf]
        %v407 = vld [vmem:[%s399 + $0x14] sm:$0xf]
        %v408 = vld [vmem:[%s399 + $0x18] sm:$0xf]
        %v409 = vld [vmem:[%s399 + $0x1c] sm:$0xf]
        %v410 = vld [vmem:[%s399 + $0x20] sm:$0xf]
        %v411 = vld [vmem:[%s399 + $0x24] sm:$0xf]
        %v412 = vld [vmem:[%s399 + $0x28] sm:$0xf]
        %v413 = vld [vmem:[%s399 + $0x2c] sm:$0xf]
        %v414 = vld [vmem:[%s399 + $0x30] sm:$0xf]
        %v415 = vld [vmem:[%s399 + $0x34] sm:$0xf]
        %v416 = vld [vmem:[%s399 + $0x38] sm:$0xf]
        %v417 = vld [vmem:[%s399 + $0x3c] sm:$0xf]
        %v418 = vld [vmem:[%s399 + $0x40] sm:$0xf]
        %v419 = vld [vmem:[%s399 + $0x44] sm:$0xf]
        %v420 = vld [vmem:[%s399 + $0x48] sm:$0xf]
        %v421 = vld [vmem:[%s399 + $0x4c] sm:$0xf]
        %v422 = vld [vmem:[%s399 + $0x50] sm:$0xf]
        %v423 = vld [vmem:[%s399 + $0x54] sm:$0xf]
        %v424 = vld [vmem:[%s399 + $0x58] sm:$0xf]
        %v425 = vld [vmem:[%s399 + $0x5c] sm:$0xf]
        %v426 = vld [vmem:[%s399 + $0x60] sm:$0xf]
        %v427 = vld [vmem:[%s399 + $0x64] sm:$0xf]
        %v428 = vld [vmem:[%s399 + $0x68] sm:$0xf]
        %v429 = vld [vmem:[%s399 + $0x6c] sm:$0xf]
        %v430 = vld [vmem:[%s399 + $0x70] sm:$0xf]
        %v431 = vld [vmem:[%s399 + $0x74] sm:$0xf]
        %v432 = vld [vmem:[%s399 + $0x78] sm:$0xf]
        %v433 = vld [vmem:[%s399 + $0x7c] sm:$0xf]
        %v434 = vld [vmem:[%s399 + $0x80] sm:$0xf]
        %v435 = vld [vmem:[%s399 + $0x84] sm:$0xf]
        %v436 = vld [vmem:[%s399 + $0x88] sm:$0xf]
        %v437 = vld [vmem:[%s399 + $0x8c] sm:$0xf]
        %v438 = vld [vmem:[%s399 + $0x90] sm:$0xf]
        %v439 = vld [vmem:[%s399 + $0x94] sm:$0xf]
        %v440 = vld [vmem:[%s399 + $0x98] sm:$0xf]
        %v441 = vld [vmem:[%s399 + $0x9c] sm:$0xf]
        %v442 = vld [vmem:[%s399 + $0xa0] sm:$0xf]
        %v443 = vld [vmem:[%s399 + $0xa4] sm:$0xf]
        %v444 = vld [vmem:[%s399 + $0xa8] sm:$0xf]
        %v445 = vld [vmem:[%s399 + $0xac] sm:$0xf]
        %v446 = vld [vmem:[%s399 + $0xb0] sm:$0xf]
        %v447 = vld [vmem:[%s399 + $0xb4] sm:$0xf]
        %v448 = vld [vmem:[%s399 + $0xb8] sm:$0xf]
        %v449 = vld [vmem:[%s399 + $0xbc] sm:$0xf]
        %v450 = vld [vmem:[%s399 + $0xc0] sm:$0xf]
        %v451 = vld [vmem:[%s399 + $0xc4] sm:$0xf]
        %v452 = vld [vmem:[%s399 + $0xc8] sm:$0xf]
        %v453 = vld [vmem:[%s399 + $0xcc] sm:$0xf]
        %v454 = vld [vmem:[%s399 + $0xd0] sm:$0xf]
        %v455 = vld [vmem:[%s399 + $0xd4] sm:$0xf]
        %v456 = vld [vmem:[%s399 + $0xd8] sm:$0xf]
        %v457 = vld [vmem:[%s399 + $0xdc] sm:$0xf]
        %v458 = vld [vmem:[%s399 + $0xe0] sm:$0xf]
        %v459 = vld [vmem:[%s399 + $0xe4] sm:$0xf]
        %v460 = vld [vmem:[%s399 + $0xe8] sm:$0xf]
        %v461 = vld [vmem:[%s399 + $0xec] sm:$0xf]
        %v462 = vld [vmem:[%s399 + $0xf0] sm:$0xf]
        %v463 = vld [vmem:[%s399 + $0xf4] sm:$0xf]
        %v464 = vld [vmem:[%s399 + $0xf8] sm:$0xf]
        %v465 = vld [vmem:[%s399 + $0xfc] sm:$0xf]
        %v466 = vld [vmem:[%s399 + $0x100] sm:$0xf]
        %v467 = vld [vmem:[%s399 + $0x104] sm:$0xf]
        %v468 = vld [vmem:[%s399 + $0x108] sm:$0xf]
        %v469 = vld [vmem:[%s399 + $0x10c] sm:$0xf]
        %v470 = vld [vmem:[%s399 + $0x110] sm:$0xf]
        %v471 = vld [vmem:[%s399 + $0x114] sm:$0xf]
        %v472 = vld [vmem:[%s399 + $0x118] sm:$0xf]
        %v473 = vld [vmem:[%s399 + $0x11c] sm:$0xf]
        %v474 = vld [vmem:[%s399 + $0x120] sm:$0xf]
        %v475 = vld [vmem:[%s399 + $0x124] sm:$0xf]
        %v476 = vld [vmem:[%s399 + $0x128] sm:$0xf]
        %v477 = vld [vmem:[%s399 + $0x12c] sm:$0xf]
        %v478 = vld [vmem:[%s399 + $0x130] sm:$0xf]
        %v479 = vld [vmem:[%s399 + $0x134] sm:$0xf]
        %v480 = vld [vmem:[%s399 + $0x138] sm:$0xf]
        %v481 = vld [vmem:[%s399 + $0x13c] sm:$0xf]
        %v482 = vld [vmem:[%s399 + $0x140] sm:$0xf]
        %v483 = vld [vmem:[%s399 + $0x144] sm:$0xf]
        %v484 = vld [vmem:[%s399 + $0x148] sm:$0xf]
        %v485 = vld [vmem:[%s399 + $0x14c] sm:$0xf]
        %v486 = vld [vmem:[%s399 + $0x150] sm:$0xf]
        %v487 = vld [vmem:[%s399 + $0x154] sm:$0xf]
        %v488 = vld [vmem:[%s399 + $0x158] sm:$0xf]
        %v489 = vld [vmem:[%s399 + $0x15c] sm:$0xf]
        %v490 = vld [vmem:[%s399 + $0x160] sm:$0xf]
        %v491 = vld [vmem:[%s399 + $0x164] sm:$0xf]
        %v492 = vld [vmem:[%s399 + $0x168] sm:$0xf]
        %v493 = vld [vmem:[%s399 + $0x16c] sm:$0xf]
        %v494 = vld [vmem:[%s399 + $0x170] sm:$0xf]
        %v495 = vld [vmem:[%s399 + $0x174] sm:$0xf]
        %v496 = vld [vmem:[%s399 + $0x178] sm:$0xf]
        %v497 = vld [vmem:[%s399 + $0x17c] sm:$0xf]
        %v498 = vld [vmem:[%s399 + $0x180] sm:$0xf]
        %v499 = vld [vmem:[%s399 + $0x184] sm:$0xf]
        %v500 = vld [vmem:[%s399 + $0x188] sm:$0xf]
        %v501 = vld [vmem:[%s399 + $0x18c] sm:$0xf]
        %v502 = vld [vmem:[%s399 + $0x190] sm:$0xf]
        %v503 = vld [vmem:[%s399 + $0x194] sm:$0xf]
        %v504 = vld [vmem:[%s399 + $0x198] sm:$0xf]
        %v505 = vld [vmem:[%s399 + $0x19c] sm:$0xf]
        %v506 = vld [vmem:[%s399 + $0x1a0] sm:$0xf]
        %v507 = vld [vmem:[%s399 + $0x1a4] sm:$0xf]
        %v508 = vld [vmem:[%s399 + $0x1a8] sm:$0xf]
        %v509 = vld [vmem:[%s399 + $0x1ac] sm:$0xf]
        %v510 = vld [vmem:[%s399 + $0x1b0] sm:$0xf]
        %v511 = vld [vmem:[%s399 + $0x1b4] sm:$0xf]
        %v512 = vld [vmem:[%s399 + $0x1b8] sm:$0xf]
        %v513 = vld [vmem:[%s399 + $0x1bc] sm:$0xf]
        %v514 = vld [vmem:[%s399 + $0x1c0] sm:$0xf]
        %v515 = vld [vmem:[%s399 + $0x1c4] sm:$0xf]
        %v516 = vld [vmem:[%s399 + $0x1c8] sm:$0xf]
        %v517 = vld [vmem:[%s399 + $0x1cc] sm:$0xf]
        %v518 = vld [vmem:[%s399 + $0x1d0] sm:$0xf]
        %v519 = vld [vmem:[%s399 + $0x1d4] sm:$0xf]
        %v520 = vld [vmem:[%s399 + $0x1d8] sm:$0xf]
        %v521 = vld [vmem:[%s399 + $0x1dc] sm:$0xf]
        %v522 = vld [vmem:[%s399 + $0x1e0] sm:$0xf]
        %v523 = vld [vmem:[%s399 + $0x1e4] sm:$0xf]
        %v524 = vld [vmem:[%s399 + $0x1e8] sm:$0xf]
        %v525 = vld [vmem:[%s399 + $0x1ec] sm:$0xf]
        %v526 = vld [vmem:[%s399 + $0x1f0] sm:$0xf]
        %v527 = vld [vmem:[%s399 + $0x1f4] sm:$0xf]
        %v528 = vld [vmem:[%s399 + $0x1f8] sm:$0xf]
        %v529 = vld [vmem:[%s399 + $0x1fc] sm:$0xf]
        %v530 = vld [vmem:[%s399 + $0x200] sm:$0xf]
        %v531 = vld [vmem:[%s399 + $0x204] sm:$0xf]
        %v532 = vld [vmem:[%s399 + $0x208] sm:$0xf]
        %v533 = vld [vmem:[%s399 + $0x20c] sm:$0xf]
        %v534 = vld [vmem:[%s399 + $0x210] sm:$0xf]
        %v535 = vld [vmem:[%s399 + $0x214] sm:$0xf]
        %v536 = vld [vmem:[%s399 + $0x218] sm:$0xf]
        %v537 = vld [vmem:[%s399 + $0x21c] sm:$0xf]
        %v538 = vld [vmem:[%s399 + $0x220] sm:$0xf]
        %v539 = vld [vmem:[%s399 + $0x224] sm:$0xf]
        %v540 = vld [vmem:[%s399 + $0x228] sm:$0xf]
        %v541 = vld [vmem:[%s399 + $0x22c] sm:$0xf]
        %v542 = vld [vmem:[%s399 + $0x230] sm:$0xf]
        %v543 = vld [vmem:[%s399 + $0x234] sm:$0xf]
        %v544 = vld [vmem:[%s399 + $0x238] sm:$0xf]
        %v545 = vld [vmem:[%s399 + $0x23c] sm:$0xf]
        %v546 = vld [vmem:[%s399 + $0x240] sm:$0xf]
        %v547 = vld [vmem:[%s399 + $0x244] sm:$0xf]
        %v548 = vld [vmem:[%s399 + $0x248] sm:$0xf]
        %v549 = vld [vmem:[%s399 + $0x24c] sm:$0xf]
        %v550 = vld [vmem:[%s399 + $0x250] sm:$0xf]
        %v551 = vld [vmem:[%s399 + $0x254] sm:$0xf]
        %v552 = vld [vmem:[%s399 + $0x258] sm:$0xf]
        %v553 = vld [vmem:[%s399 + $0x25c] sm:$0xf]
        %v554 = vld [vmem:[%s399 + $0x260] sm:$0xf]
        %v555 = vld [vmem:[%s399 + $0x264] sm:$0xf]
        %v556 = vld [vmem:[%s399 + $0x268] sm:$0xf]
        %v557 = vld [vmem:[%s399 + $0x26c] sm:$0xf]
        %v558 = vld [vmem:[%s399 + $0x270] sm:$0xf]
        %v559 = vld [vmem:[%s399 + $0x274] sm:$0xf]
        %v560 = vld [vmem:[%s399 + $0x278] sm:$0xf]
        %v561 = vld [vmem:[%s399 + $0x27c] sm:$0xf]
        %v562 = vld [vmem:[%s399 + $0x280] sm:$0xf]
        %v563 = vld [vmem:[%s399 + $0x284] sm:$0xf]
        %v564 = vld [vmem:[%s399 + $0x288] sm:$0xf]
        %v565 = vld [vmem:[%s399 + $0x28c] sm:$0xf]
        %v566 = vld [vmem:[%s399 + $0x290] sm:$0xf]
        %v567 = vld [vmem:[%s399 + $0x294] sm:$0xf]
        %v568 = vld [vmem:[%s399 + $0x298] sm:$0xf]
        %v569 = vld [vmem:[%s399 + $0x29c] sm:$0xf]
        %v570 = vld [vmem:[%s399 + $0x2a0] sm:$0xf]
        %v571 = vld [vmem:[%s399 + $0x2a4] sm:$0xf]
        %v572 = vld [vmem:[%s399 + $0x2a8] sm:$0xf]
        %v573 = vld [vmem:[%s399 + $0x2ac] sm:$0xf]
        %v574 = vld [vmem:[%s399 + $0x2b0] sm:$0xf]
        %v575 = vld [vmem:[%s399 + $0x2b4] sm:$0xf]
        %v576 = vld [vmem:[%s399 + $0x2b8] sm:$0xf]
        %v577 = vld [vmem:[%s399 + $0x2bc] sm:$0xf]
        %v578 = vld [vmem:[%s399 + $0x2c0] sm:$0xf]
        %v579 = vld [vmem:[%s399 + $0x2c4] sm:$0xf]
        %v580 = vld [vmem:[%s399 + $0x2c8] sm:$0xf]
        %v581 = vld [vmem:[%s399 + $0x2cc] sm:$0xf]
        %v582 = vld [vmem:[%s399 + $0x2d0] sm:$0xf]
        %v583 = vld [vmem:[%s399 + $0x2d4] sm:$0xf]
        %v584 = vld [vmem:[%s399 + $0x2d8] sm:$0xf]
        %v585 = vld [vmem:[%s399 + $0x2dc] sm:$0xf]
        %v586 = vld [vmem:[%s399 + $0x2e0] sm:$0xf]
        %v587 = vld [vmem:[%s399 + $0x2e4] sm:$0xf]
        %v588 = vld [vmem:[%s399 + $0x2e8] sm:$0xf]
        %v589 = vld [vmem:[%s399 + $0x2ec] sm:$0xf]
        %v590 = vld [vmem:[%s399 + $0x2f0] sm:$0xf]
        %v591 = vld [vmem:[%s399 + $0x2f4] sm:$0xf]
        %v592 = vld [vmem:[%s399 + $0x2f8] sm:$0xf]
        %v593 = vld [vmem:[%s399 + $0x2fc] sm:$0xf]
        %v594 = vld [vmem:[%s399 + $0x300] sm:$0xf]
        %v595 = vld [vmem:[%s399 + $0x304] sm:$0xf]
        %v596 = vld [vmem:[%s399 + $0x308] sm:$0xf]
        %v597 = vld [vmem:[%s399 + $0x30c] sm:$0xf]
        %v598 = vld [vmem:[%s399 + $0x310] sm:$0xf]
        %v599 = vld [vmem:[%s399 + $0x314] sm:$0xf]
        %v600 = vld [vmem:[%s399 + $0x318] sm:$0xf]
        %v601 = vld [vmem:[%s399 + $0x31c] sm:$0xf]
        %v602 = vld [vmem:[%s399 + $0x320] sm:$0xf]
        %v603 = vld [vmem:[%s399 + $0x324] sm:$0xf]
        %v604 = vld [vmem:[%s399 + $0x328] sm:$0xf]
        %v605 = vld [vmem:[%s399 + $0x32c] sm:$0xf]
        %v606 = vld [vmem:[%s399 + $0x330] sm:$0xf]
        %v607 = vld [vmem:[%s399 + $0x334] sm:$0xf]
        %v608 = vld [vmem:[%s399 + $0x338] sm:$0xf]
        %v609 = vld [vmem:[%s399 + $0x33c] sm:$0xf]
        %v610 = vld [vmem:[%s399 + $0x340] sm:$0xf]
        %v611 = vld [vmem:[%s399 + $0x344] sm:$0xf]
        %v612 = vld [vmem:[%s399 + $0x348] sm:$0xf]
        %v613 = vld [vmem:[%s399 + $0x34c] sm:$0xf]
        %v614 = vld [vmem:[%s399 + $0x350] sm:$0xf]
        %v615 = vld [vmem:[%s399 + $0x354] sm:$0xf]
        %v616 = vld [vmem:[%s399 + $0x358] sm:$0xf]
        %v617 = vld [vmem:[%s399 + $0x35c] sm:$0xf]
        %v618 = vld [vmem:[%s399 + $0x360] sm:$0xf]
        %v619 = vld [vmem:[%s399 + $0x364] sm:$0xf]
        %v620 = vld [vmem:[%s399 + $0x368] sm:$0xf]
        %v621 = vld [vmem:[%s399 + $0x36c] sm:$0xf]
        %v622 = vld [vmem:[%s399 + $0x370] sm:$0xf]
        %v623 = vld [vmem:[%s399 + $0x374] sm:$0xf]
        %v624 = vld [vmem:[%s399 + $0x378] sm:$0xf]
        %v625 = vld [vmem:[%s399 + $0x37c] sm:$0xf]
        %v626 = vld [vmem:[%s399 + $0x380] sm:$0xf]
        %v627 = vld [vmem:[%s399 + $0x384] sm:$0xf]
        %v628 = vld [vmem:[%s399 + $0x388] sm:$0xf]
        %v629 = vld [vmem:[%s399 + $0x38c] sm:$0xf]
        %v630 = vld [vmem:[%s399 + $0x390] sm:$0xf]
        %v631 = vld [vmem:[%s399 + $0x394] sm:$0xf]
        %v632 = vld [vmem:[%s399 + $0x398] sm:$0xf]
        %v633 = vld [vmem:[%s399 + $0x39c] sm:$0xf]
        %v634 = vld [vmem:[%s399 + $0x3a0] sm:$0xf]
        %v635 = vld [vmem:[%s399 + $0x3a4] sm:$0xf]
        %v636 = vld [vmem:[%s399 + $0x3a8] sm:$0xf]
        %v637 = vld [vmem:[%s399 + $0x3ac] sm:$0xf]
        %v638 = vld [vmem:[%s399 + $0x3b0] sm:$0xf]
        %v639 = vld [vmem:[%s399 + $0x3b4] sm:$0xf]
        %v640 = vld [vmem:[%s399 + $0x3b8] sm:$0xf]
        %v641 = vld [vmem:[%s399 + $0x3bc] sm:$0xf]
        %v642 = vld [vmem:[%s399 + $0x3c0] sm:$0xf]
        %v643 = vld [vmem:[%s399 + $0x3c4] sm:$0xf]
        %v644 = vld [vmem:[%s399 + $0x3c8] sm:$0xf]
        %v645 = vld [vmem:[%s399 + $0x3cc] sm:$0xf]
        %v646 = vld [vmem:[%s399 + $0x3d0] sm:$0xf]
        %v647 = vld [vmem:[%s399 + $0x3d4] sm:$0xf]
        %v648 = vld [vmem:[%s399 + $0x3d8] sm:$0xf]
        %v649 = vld [vmem:[%s399 + $0x3dc] sm:$0xf]
        %v650 = vld [vmem:[%s399 + $0x3e0] sm:$0xf]
        %v651 = vld [vmem:[%s399 + $0x3e4] sm:$0xf]
        %v652 = vld [vmem:[%s399 + $0x3e8] sm:$0xf]
        %v653 = vld [vmem:[%s399 + $0x3ec] sm:$0xf]
        %v654 = vld [vmem:[%s399 + $0x3f0] sm:$0xf]
        %v655 = vld [vmem:[%s399 + $0x3f4] sm:$0xf]
        %v656 = vld [vmem:[%s399 + $0x3f8] sm:$0xf]
        %v657 = vld [vmem:[%s399 + $0x3fc] sm:$0xf]
        %v658 = vld [vmem:[%s1] sm:$0xf]
        %v659 = vld [vmem:[%s1 + $0x4] sm:$0xf]
        %v660 = vld [vmem:[%s1 + $0x8] sm:$0xf]
        %v661 = vld [vmem:[%s1 + $0xc] sm:$0x3]
        %v662 = vld [vmem:[%s2] sm:$0x1]
        %v664 = vlaneseq
        %v665 = vshrl.u32 %v664, 7
        %v666 = vsub.s32 0, %v665
        %v667 = vrot.slane %v662, %v666
        %v925 = vunpack.c.l.b16 %v402
        %v926 = vunpack.c.l.b16 %v403
        %v927 = vunpack.c.l.b16 %v404
        %v928 = vunpack.c.l.b16 %v405
        %v929 = vunpack.c.l.b16 %v406
        %v930 = vunpack.c.l.b16 %v407
        %v931 = vunpack.c.l.b16 %v408
        %v932 = vunpack.c.l.b16 %v409
        %v933 = vunpack.c.l.b16 %v410
        %v934 = vunpack.c.l.b16 %v411
        %v935 = vunpack.c.l.b16 %v412
        %v936 = vunpack.c.l.b16 %v413
        %v937 = vunpack.c.l.b16 %v414
        %v938 = vunpack.c.l.b16 %v415
        %v939 = vunpack.c.l.b16 %v416
        %v940 = vunpack.c.l.b16 %v417
        %v941 = vunpack.c.l.b16 %v418
        %v942 = vunpack.c.l.b16 %v419
        %v943 = vunpack.c.l.b16 %v420
        %v944 = vunpack.c.l.b16 %v421
        %v945 = vunpack.c.l.b16 %v422
        %v946 = vunpack.c.l.b16 %v423
        %v947 = vunpack.c.l.b16 %v424
        %v948 = vunpack.c.l.b16 %v425
        %v949 = vunpack.c.l.b16 %v426
        %v950 = vunpack.c.l.b16 %v427
        %v951 = vunpack.c.l.b16 %v428
        %v952 = vunpack.c.l.b16 %v429
        %v953 = vunpack.c.l.b16 %v430
        %v954 = vunpack.c.l.b16 %v431
        %v955 = vunpack.c.l.b16 %v432
        %v956 = vunpack.c.l.b16 %v433
        %v957 = vunpack.c.l.b16 %v434
        %v958 = vunpack.c.l.b16 %v435
        %v959 = vunpack.c.l.b16 %v436
        %v960 = vunpack.c.l.b16 %v437
        %v961 = vunpack.c.l.b16 %v438
        %v962 = vunpack.c.l.b16 %v439
        %v963 = vunpack.c.l.b16 %v440
        %v964 = vunpack.c.l.b16 %v441
        %v965 = vunpack.c.l.b16 %v442
        %v966 = vunpack.c.l.b16 %v443
        %v967 = vunpack.c.l.b16 %v444
        %v968 = vunpack.c.l.b16 %v445
        %v969 = vunpack.c.l.b16 %v446
        %v970 = vunpack.c.l.b16 %v447
        %v971 = vunpack.c.l.b16 %v448
        %v972 = vunpack.c.l.b16 %v449
        %v973 = vunpack.c.l.b16 %v450
        %v974 = vunpack.c.l.b16 %v451
        %v975 = vunpack.c.l.b16 %v452
        %v976 = vunpack.c.l.b16 %v453
        %v977 = vunpack.c.l.b16 %v454
        %v978 = vunpack.c.l.b16 %v455
        %v979 = vunpack.c.l.b16 %v456
        %v980 = vunpack.c.l.b16 %v457
        %v981 = vunpack.c.l.b16 %v458
        %v982 = vunpack.c.l.b16 %v459
        %v983 = vunpack.c.l.b16 %v460
        %v984 = vunpack.c.l.b16 %v461
        %v985 = vunpack.c.l.b16 %v462
        %v986 = vunpack.c.l.b16 %v463
        %v987 = vunpack.c.l.b16 %v464
        %v988 = vunpack.c.l.b16 %v465
        %v989 = vunpack.c.l.b16 %v466
        %v990 = vunpack.c.l.b16 %v467
        %v991 = vunpack.c.l.b16 %v468
        %v992 = vunpack.c.l.b16 %v469
        %v993 = vunpack.c.l.b16 %v470
        %v994 = vunpack.c.l.b16 %v471
        %v995 = vunpack.c.l.b16 %v472
        %v996 = vunpack.c.l.b16 %v473
        %v997 = vunpack.c.l.b16 %v474
        %v998 = vunpack.c.l.b16 %v475
        %v999 = vunpack.c.l.b16 %v476
        %v1000 = vunpack.c.l.b16 %v477
        %v1001 = vunpack.c.l.b16 %v478
        %v1002 = vunpack.c.l.b16 %v479
        %v1003 = vunpack.c.l.b16 %v480
        %v1004 = vunpack.c.l.b16 %v481
        %v1005 = vunpack.c.l.b16 %v482
        %v1006 = vunpack.c.l.b16 %v483
        %v1007 = vunpack.c.l.b16 %v484
        %v1008 = vunpack.c.l.b16 %v485
        %v1009 = vunpack.c.l.b16 %v486
        %v1010 = vunpack.c.l.b16 %v487
        %v1011 = vunpack.c.l.b16 %v488
        %v1012 = vunpack.c.l.b16 %v489
        %v1013 = vunpack.c.l.b16 %v490
        %v1014 = vunpack.c.l.b16 %v491
        %v1015 = vunpack.c.l.b16 %v492
        %v1016 = vunpack.c.l.b16 %v493
        %v1017 = vunpack.c.l.b16 %v494
        %v1018 = vunpack.c.l.b16 %v495
        %v1019 = vunpack.c.l.b16 %v496
        %v1020 = vunpack.c.l.b16 %v497
        %v1021 = vunpack.c.l.b16 %v498
        %v1022 = vunpack.c.l.b16 %v499
        %v1023 = vunpack.c.l.b16 %v500
        %v1024 = vunpack.c.l.b16 %v501
        %v1025 = vunpack.c.l.b16 %v502
        %v1026 = vunpack.c.l.b16 %v503
        %v1027 = vunpack.c.l.b16 %v504
        %v1028 = vunpack.c.l.b16 %v505
        %v1029 = vunpack.c.l.b16 %v506
        %v1030 = vunpack.c.l.b16 %v507
        %v1031 = vunpack.c.l.b16 %v508
        %v1032 = vunpack.c.l.b16 %v509
        %v1033 = vunpack.c.l.b16 %v510
        %v1034 = vunpack.c.l.b16 %v511
        %v1035 = vunpack.c.l.b16 %v512
        %v1036 = vunpack.c.l.b16 %v513
        %v1037 = vunpack.c.l.b16 %v514
        %v1038 = vunpack.c.l.b16 %v515
        %v1039 = vunpack.c.l.b16 %v516
        %v1040 = vunpack.c.l.b16 %v517
        %v1041 = vunpack.c.l.b16 %v518
        %v1042 = vunpack.c.l.b16 %v519
        %v1043 = vunpack.c.l.b16 %v520
        %v1044 = vunpack.c.l.b16 %v521
        %v1045 = vunpack.c.l.b16 %v522
        %v1046 = vunpack.c.l.b16 %v523
        %v1047 = vunpack.c.l.b16 %v524
        %v1048 = vunpack.c.l.b16 %v525
        %v1049 = vunpack.c.l.b16 %v526
        %v1050 = vunpack.c.l.b16 %v527
        %v1051 = vunpack.c.l.b16 %v528
        %v1052 = vunpack.c.l.b16 %v529
        %v1053 = vunpack.c.l.b16 %v530
        %v1054 = vunpack.c.l.b16 %v531
        %v1055 = vunpack.c.l.b16 %v532
        %v1056 = vunpack.c.l.b16 %v533
        %v1057 = vunpack.c.l.b16 %v534
        %v1058 = vunpack.c.l.b16 %v535
        %v1059 = vunpack.c.l.b16 %v536
        %v1060 = vunpack.c.l.b16 %v537
        %v1061 = vunpack.c.l.b16 %v538
        %v1062 = vunpack.c.l.b16 %v539
        %v1063 = vunpack.c.l.b16 %v540
        %v1064 = vunpack.c.l.b16 %v541
        %v1065 = vunpack.c.l.b16 %v542
        %v1066 = vunpack.c.l.b16 %v543
        %v1067 = vunpack.c.l.b16 %v544
        %v1068 = vunpack.c.l.b16 %v545
        %v1069 = vunpack.c.l.b16 %v546
        %v1070 = vunpack.c.l.b16 %v547
        %v1071 = vunpack.c.l.b16 %v548
        %v1072 = vunpack.c.l.b16 %v549
        %v1073 = vunpack.c.l.b16 %v550
        %v1074 = vunpack.c.l.b16 %v551
        %v1075 = vunpack.c.l.b16 %v552
        %v1076 = vunpack.c.l.b16 %v553
        %v1077 = vunpack.c.l.b16 %v554
        %v1078 = vunpack.c.l.b16 %v555
        %v1079 = vunpack.c.l.b16 %v556
        %v1080 = vunpack.c.l.b16 %v557
        %v1081 = vunpack.c.l.b16 %v558
        %v1082 = vunpack.c.l.b16 %v559
        %v1083 = vunpack.c.l.b16 %v560
        %v1084 = vunpack.c.l.b16 %v561
        %v1085 = vunpack.c.l.b16 %v562
        %v1086 = vunpack.c.l.b16 %v563
        %v1087 = vunpack.c.l.b16 %v564
        %v1088 = vunpack.c.l.b16 %v565
        %v1089 = vunpack.c.l.b16 %v566
        %v1090 = vunpack.c.l.b16 %v567
        %v1091 = vunpack.c.l.b16 %v568
        %v1092 = vunpack.c.l.b16 %v569
        %v1093 = vunpack.c.l.b16 %v570
        %v1094 = vunpack.c.l.b16 %v571
        %v1095 = vunpack.c.l.b16 %v572
        %v1096 = vunpack.c.l.b16 %v573
        %v1097 = vunpack.c.l.b16 %v574
        %v1098 = vunpack.c.l.b16 %v575
        %v1099 = vunpack.c.l.b16 %v576
        %v1100 = vunpack.c.l.b16 %v577
        %v1101 = vunpack.c.l.b16 %v578
        %v1102 = vunpack.c.l.b16 %v579
        %v1103 = vunpack.c.l.b16 %v580
        %v1104 = vunpack.c.l.b16 %v581
        %v1105 = vunpack.c.l.b16 %v582
        %v1106 = vunpack.c.l.b16 %v583
        %v1107 = vunpack.c.l.b16 %v584
        %v1108 = vunpack.c.l.b16 %v585
        %v1109 = vunpack.c.l.b16 %v586
        %v1110 = vunpack.c.l.b16 %v587
        %v1111 = vunpack.c.l.b16 %v588
        %v1112 = vunpack.c.l.b16 %v589
        %v1113 = vunpack.c.l.b16 %v590
        %v1114 = vunpack.c.l.b16 %v591
        %v1115 = vunpack.c.l.b16 %v592
        %v1116 = vunpack.c.l.b16 %v593
        %v1117 = vunpack.c.l.b16 %v594
        %v1118 = vunpack.c.l.b16 %v595
        %v1119 = vunpack.c.l.b16 %v596
        %v1120 = vunpack.c.l.b16 %v597
        %v1121 = vunpack.c.l.b16 %v598
        %v1122 = vunpack.c.l.b16 %v599
        %v1123 = vunpack.c.l.b16 %v600
        %v1124 = vunpack.c.l.b16 %v601
        %v1125 = vunpack.c.l.b16 %v602
        %v1126 = vunpack.c.l.b16 %v603
        %v1127 = vunpack.c.l.b16 %v604
        %v1128 = vunpack.c.l.b16 %v605
        %v1129 = vunpack.c.l.b16 %v606
        %v1130 = vunpack.c.l.b16 %v607
        %v1131 = vunpack.c.l.b16 %v608
        %v1132 = vunpack.c.l.b16 %v609
        %v1133 = vunpack.c.l.b16 %v610
        %v1134 = vunpack.c.l.b16 %v611
        %v1135 = vunpack.c.l.b16 %v612
        %v1136 = vunpack.c.l.b16 %v613
        %v1137 = vunpack.c.l.b16 %v614
        %v1138 = vunpack.c.l.b16 %v615
        %v1139 = vunpack.c.l.b16 %v616
        %v1140 = vunpack.c.l.b16 %v617
        %v1141 = vunpack.c.l.b16 %v618
        %v1142 = vunpack.c.l.b16 %v619
        %v1143 = vunpack.c.l.b16 %v620
        %v1144 = vunpack.c.l.b16 %v621
        %v1145 = vunpack.c.l.b16 %v622
        %v1146 = vunpack.c.l.b16 %v623
        %v1147 = vunpack.c.l.b16 %v624
        %v1148 = vunpack.c.l.b16 %v625
        %v1149 = vunpack.c.l.b16 %v626
        %v1150 = vunpack.c.l.b16 %v627
        %v1151 = vunpack.c.l.b16 %v628
        %v1152 = vunpack.c.l.b16 %v629
        %v1153 = vunpack.c.l.b16 %v630
        %v1154 = vunpack.c.l.b16 %v631
        %v1155 = vunpack.c.l.b16 %v632
        %v1156 = vunpack.c.l.b16 %v633
        %v1157 = vunpack.c.l.b16 %v634
        %v1158 = vunpack.c.l.b16 %v635
        %v1159 = vunpack.c.l.b16 %v636
        %v1160 = vunpack.c.l.b16 %v637
        %v1161 = vunpack.c.l.b16 %v638
        %v1162 = vunpack.c.l.b16 %v639
        %v1163 = vunpack.c.l.b16 %v640
        %v1164 = vunpack.c.l.b16 %v641
        %v1165 = vunpack.c.l.b16 %v642
        %v1166 = vunpack.c.l.b16 %v643
        %v1167 = vunpack.c.l.b16 %v644
        %v1168 = vunpack.c.l.b16 %v645
        %v1169 = vunpack.c.l.b16 %v646
        %v1170 = vunpack.c.l.b16 %v647
        %v1171 = vunpack.c.l.b16 %v648
        %v1172 = vunpack.c.l.b16 %v649
        %v1173 = vunpack.c.l.b16 %v650
        %v1174 = vunpack.c.l.b16 %v651
        %v1175 = vunpack.c.l.b16 %v652
        %v1176 = vunpack.c.l.b16 %v653
        %v1177 = vunpack.c.l.b16 %v654
        %v1178 = vunpack.c.l.b16 %v655
        %v1179 = vunpack.c.l.b16 %v656
        %v1180 = vunpack.c.l.b16 %v657
        %v1181 = vpack.c.b16 %v926, %v925
        %v1182 = vpack.c.b16 %v928, %v927
        %v1183 = vpack.c.b16 %v930, %v929
        %v1184 = vpack.c.b16 %v932, %v931
        %v1185 = vpack.c.b16 %v934, %v933
        %v1186 = vpack.c.b16 %v936, %v935
        %v1187 = vpack.c.b16 %v938, %v937
        %v1188 = vpack.c.b16 %v940, %v939
        %v1189 = vpack.c.b16 %v942, %v941
        %v1190 = vpack.c.b16 %v944, %v943
        %v1191 = vpack.c.b16 %v946, %v945
        %v1192 = vpack.c.b16 %v948, %v947
        %v1193 = vpack.c.b16 %v950, %v949
        %v1194 = vpack.c.b16 %v952, %v951
        %v1195 = vpack.c.b16 %v954, %v953
        %v1196 = vpack.c.b16 %v956, %v955
        %v1197 = vpack.c.b16 %v958, %v957
        %v1198 = vpack.c.b16 %v960, %v959
        %v1199 = vpack.c.b16 %v962, %v961
        %v1200 = vpack.c.b16 %v964, %v963
        %v1201 = vpack.c.b16 %v966, %v965
        %v1202 = vpack.c.b16 %v968, %v967
        %v1203 = vpack.c.b16 %v970, %v969
        %v1204 = vpack.c.b16 %v972, %v971
        %v1205 = vpack.c.b16 %v974, %v973
        %v1206 = vpack.c.b16 %v976, %v975
        %v1207 = vpack.c.b16 %v978, %v977
        %v1208 = vpack.c.b16 %v980, %v979
        %v1209 = vpack.c.b16 %v982, %v981
        %v1210 = vpack.c.b16 %v984, %v983
        %v1211 = vpack.c.b16 %v986, %v985
        %v1212 = vpack.c.b16 %v988, %v987
        %v1213 = vpack.c.b16 %v990, %v989
        %v1214 = vpack.c.b16 %v992, %v991
        %v1215 = vpack.c.b16 %v994, %v993
        %v1216 = vpack.c.b16 %v996, %v995
        %v1217 = vpack.c.b16 %v998, %v997
        %v1218 = vpack.c.b16 %v1000, %v999
        %v1219 = vpack.c.b16 %v1002, %v1001
        %v1220 = vpack.c.b16 %v1004, %v1003
        %v1221 = vpack.c.b16 %v1006, %v1005
        %v1222 = vpack.c.b16 %v1008, %v1007
        %v1223 = vpack.c.b16 %v1010, %v1009
        %v1224 = vpack.c.b16 %v1012, %v1011
        %v1225 = vpack.c.b16 %v1014, %v1013
        %v1226 = vpack.c.b16 %v1016, %v1015
        %v1227 = vpack.c.b16 %v1018, %v1017
        %v1228 = vpack.c.b16 %v1020, %v1019
        %v1229 = vpack.c.b16 %v1022, %v1021
        %v1230 = vpack.c.b16 %v1024, %v1023
        %v1231 = vpack.c.b16 %v1026, %v1025
        %v1232 = vpack.c.b16 %v1028, %v1027
        %v1233 = vpack.c.b16 %v1030, %v1029
        %v1234 = vpack.c.b16 %v1032, %v1031
        %v1235 = vpack.c.b16 %v1034, %v1033
        %v1236 = vpack.c.b16 %v1036, %v1035
        %v1237 = vpack.c.b16 %v1038, %v1037
        %v1238 = vpack.c.b16 %v1040, %v1039
        %v1239 = vpack.c.b16 %v1042, %v1041
        %v1240 = vpack.c.b16 %v1044, %v1043
        %v1241 = vpack.c.b16 %v1046, %v1045
        %v1242 = vpack.c.b16 %v1048, %v1047
        %v1243 = vpack.c.b16 %v1050, %v1049
        %v1244 = vpack.c.b16 %v1052, %v1051
        %v1245 = vpack.c.b16 %v1054, %v1053
        %v1246 = vpack.c.b16 %v1056, %v1055
        %v1247 = vpack.c.b16 %v1058, %v1057
        %v1248 = vpack.c.b16 %v1060, %v1059
        %v1249 = vpack.c.b16 %v1062, %v1061
        %v1250 = vpack.c.b16 %v1064, %v1063
        %v1251 = vpack.c.b16 %v1066, %v1065
        %v1252 = vpack.c.b16 %v1068, %v1067
        %v1253 = vpack.c.b16 %v1070, %v1069
        %v1254 = vpack.c.b16 %v1072, %v1071
        %v1255 = vpack.c.b16 %v1074, %v1073
        %v1256 = vpack.c.b16 %v1076, %v1075
        %v1257 = vpack.c.b16 %v1078, %v1077
        %v1258 = vpack.c.b16 %v1080, %v1079
        %v1259 = vpack.c.b16 %v1082, %v1081
        %v1260 = vpack.c.b16 %v1084, %v1083
        %v1261 = vpack.c.b16 %v1086, %v1085
        %v1262 = vpack.c.b16 %v1088, %v1087
        %v1263 = vpack.c.b16 %v1090, %v1089
        %v1264 = vpack.c.b16 %v1092, %v1091
        %v1265 = vpack.c.b16 %v1094, %v1093
        %v1266 = vpack.c.b16 %v1096, %v1095
        %v1267 = vpack.c.b16 %v1098, %v1097
        %v1268 = vpack.c.b16 %v1100, %v1099
        %v1269 = vpack.c.b16 %v1102, %v1101
        %v1270 = vpack.c.b16 %v1104, %v1103
        %v1271 = vpack.c.b16 %v1106, %v1105
        %v1272 = vpack.c.b16 %v1108, %v1107
        %v1273 = vpack.c.b16 %v1110, %v1109
        %v1274 = vpack.c.b16 %v1112, %v1111
        %v1275 = vpack.c.b16 %v1114, %v1113
        %v1276 = vpack.c.b16 %v1116, %v1115
        %v1277 = vpack.c.b16 %v1118, %v1117
        %v1278 = vpack.c.b16 %v1120, %v1119
        %v1279 = vpack.c.b16 %v1122, %v1121
        %v1280 = vpack.c.b16 %v1124, %v1123
        %v1281 = vpack.c.b16 %v1126, %v1125
        %v1282 = vpack.c.b16 %v1128, %v1127
        %v1283 = vpack.c.b16 %v1130, %v1129
        %v1284 = vpack.c.b16 %v1132, %v1131
        %v1285 = vpack.c.b16 %v1134, %v1133
        %v1286 = vpack.c.b16 %v1136, %v1135
        %v1287 = vpack.c.b16 %v1138, %v1137
        %v1288 = vpack.c.b16 %v1140, %v1139
        %v1289 = vpack.c.b16 %v1142, %v1141
        %v1290 = vpack.c.b16 %v1144, %v1143
        %v1291 = vpack.c.b16 %v1146, %v1145
        %v1292 = vpack.c.b16 %v1148, %v1147
        %v1293 = vpack.c.b16 %v1150, %v1149
        %v1294 = vpack.c.b16 %v1152, %v1151
        %v1295 = vpack.c.b16 %v1154, %v1153
        %v1296 = vpack.c.b16 %v1156, %v1155
        %v1297 = vpack.c.b16 %v1158, %v1157
        %v1298 = vpack.c.b16 %v1160, %v1159
        %v1299 = vpack.c.b16 %v1162, %v1161
        %v1300 = vpack.c.b16 %v1164, %v1163
        %v1301 = vpack.c.b16 %v1166, %v1165
        %v1302 = vpack.c.b16 %v1168, %v1167
        %v1303 = vpack.c.b16 %v1170, %v1169
        %v1304 = vpack.c.b16 %v1172, %v1171
        %v1305 = vpack.c.b16 %v1174, %v1173
        %v1306 = vpack.c.b16 %v1176, %v1175
        %v1307 = vpack.c.b16 %v1178, %v1177
        %v1308 = vpack.c.b16 %v1180, %v1179
        %v1313 = vunpack.c.l.b16 %v658
        %v1314 = vunpack.c.l.b16 %v659
        %v1315 = vunpack.c.l.b16 %v660
        %v1316 = vunpack.c.l.b16 %v661
        %v1317 = vpack.c.b16 %v1314, %v1313
        %v1318 = vpack.c.b16 %v1316, %v1315
        %vm1320 = vcmask 220160
        %v1322 = vsel %vm1320, %v1181, 0
        %v1325 = vsel %vm1320, %v1182, 0
        %v1328 = vsel %vm1320, %v1183, 0
        %v1331 = vsel %vm1320, %v1184, 0
        %v1334 = vsel %vm1320, %v1185, 0
        %v1337 = vsel %vm1320, %v1186, 0
        %v1340 = vsel %vm1320, %v1187, 0
        %v1343 = vsel %vm1320, %v1188, 0
        %v1346 = vsel %vm1320, %v1189, 0
        %v1349 = vsel %vm1320, %v1190, 0
        %v1352 = vsel %vm1320, %v1191, 0
        %v1355 = vsel %vm1320, %v1192, 0
        %v1358 = vsel %vm1320, %v1193, 0
        %v1361 = vsel %vm1320, %v1194, 0
        %v1364 = vsel %vm1320, %v1195, 0
        %v1367 = vsel %vm1320, %v1196, 0
        %v1370 = vsel %vm1320, %v1197, 0
        %v1373 = vsel %vm1320, %v1198, 0
        %v1376 = vsel %vm1320, %v1199, 0
        %v1379 = vsel %vm1320, %v1200, 0
        %v1382 = vsel %vm1320, %v1201, 0
        %v1385 = vsel %vm1320, %v1202, 0
        %v1388 = vsel %vm1320, %v1203, 0
        %v1391 = vsel %vm1320, %v1204, 0
        %v1394 = vsel %vm1320, %v1205, 0
        %v1397 = vsel %vm1320, %v1206, 0
        %v1400 = vsel %vm1320, %v1207, 0
        %v1403 = vsel %vm1320, %v1208, 0
        %v1406 = vsel %vm1320, %v1209, 0
        %v1409 = vsel %vm1320, %v1210, 0
        %v1412 = vsel %vm1320, %v1211, 0
        %v1415 = vsel %vm1320, %v1212, 0
        %v1418 = vsel %vm1320, %v1213, 0
        %v1421 = vsel %vm1320, %v1214, 0
        %v1424 = vsel %vm1320, %v1215, 0
        %v1427 = vsel %vm1320, %v1216, 0
        %v1430 = vsel %vm1320, %v1217, 0
        %v1433 = vsel %vm1320, %v1218, 0
        %v1436 = vsel %vm1320, %v1219, 0
        %v1439 = vsel %vm1320, %v1220, 0
        %v1442 = vsel %vm1320, %v1221, 0
        %v1445 = vsel %vm1320, %v1222, 0
        %v1448 = vsel %vm1320, %v1223, 0
        %v1451 = vsel %vm1320, %v1224, 0
        %v1454 = vsel %vm1320, %v1225, 0
        %v1457 = vsel %vm1320, %v1226, 0
        %v1460 = vsel %vm1320, %v1227, 0
        %v1463 = vsel %vm1320, %v1228, 0
        %v1466 = vsel %vm1320, %v1229, 0
        %v1469 = vsel %vm1320, %v1230, 0
        %v1472 = vsel %vm1320, %v1231, 0
        %v1475 = vsel %vm1320, %v1232, 0
        %v1478 = vsel %vm1320, %v1233, 0
        %v1481 = vsel %vm1320, %v1234, 0
        %v1484 = vsel %vm1320, %v1235, 0
        %v1487 = vsel %vm1320, %v1236, 0
        %v1490 = vsel %vm1320, %v1237, 0
        %v1493 = vsel %vm1320, %v1238, 0
        %v1496 = vsel %vm1320, %v1239, 0
        %v1499 = vsel %vm1320, %v1240, 0
        %v1502 = vsel %vm1320, %v1241, 0
        %v1505 = vsel %vm1320, %v1242, 0
        %v1508 = vsel %vm1320, %v1243, 0
        %v1511 = vsel %vm1320, %v1244, 0
        %v1514 = vsel %vm1320, %v1245, 0
        %v1517 = vsel %vm1320, %v1246, 0
        %v1520 = vsel %vm1320, %v1247, 0
        %v1523 = vsel %vm1320, %v1248, 0
        %v1526 = vsel %vm1320, %v1249, 0
        %v1529 = vsel %vm1320, %v1250, 0
        %v1532 = vsel %vm1320, %v1251, 0
        %v1535 = vsel %vm1320, %v1252, 0
        %v1538 = vsel %vm1320, %v1253, 0
        %v1541 = vsel %vm1320, %v1254, 0
        %v1544 = vsel %vm1320, %v1255, 0
        %v1547 = vsel %vm1320, %v1256, 0
        %v1550 = vsel %vm1320, %v1257, 0
        %v1553 = vsel %vm1320, %v1258, 0
        %v1556 = vsel %vm1320, %v1259, 0
        %v1559 = vsel %vm1320, %v1260, 0
        %v1562 = vsel %vm1320, %v1261, 0
        %v1565 = vsel %vm1320, %v1262, 0
        %v1568 = vsel %vm1320, %v1263, 0
        %v1571 = vsel %vm1320, %v1264, 0
        %v1574 = vsel %vm1320, %v1265, 0
        %v1577 = vsel %vm1320, %v1266, 0
        %v1580 = vsel %vm1320, %v1267, 0
        %v1583 = vsel %vm1320, %v1268, 0
        %v1586 = vsel %vm1320, %v1269, 0
        %v1589 = vsel %vm1320, %v1270, 0
        %v1592 = vsel %vm1320, %v1271, 0
        %v1595 = vsel %vm1320, %v1272, 0
        %v1598 = vsel %vm1320, %v1273, 0
        %v1601 = vsel %vm1320, %v1274, 0
        %v1604 = vsel %vm1320, %v1275, 0
        %v1607 = vsel %vm1320, %v1276, 0
        %v1610 = vsel %vm1320, %v1277, 0
        %v1613 = vsel %vm1320, %v1278, 0
        %v1616 = vsel %vm1320, %v1279, 0
        %v1619 = vsel %vm1320, %v1280, 0
        %v1622 = vsel %vm1320, %v1281, 0
        %v1625 = vsel %vm1320, %v1282, 0
        %v1628 = vsel %vm1320, %v1283, 0
        %v1631 = vsel %vm1320, %v1284, 0
        %v1634 = vsel %vm1320, %v1285, 0
        %v1637 = vsel %vm1320, %v1286, 0
        %v1640 = vsel %vm1320, %v1287, 0
        %v1643 = vsel %vm1320, %v1288, 0
        %v1646 = vsel %vm1320, %v1289, 0
        %v1649 = vsel %vm1320, %v1290, 0
        %v1652 = vsel %vm1320, %v1291, 0
        %v1655 = vsel %vm1320, %v1292, 0
        %v1658 = vsel %vm1320, %v1293, 0
        %v1661 = vsel %vm1320, %v1294, 0
        %v1664 = vsel %vm1320, %v1295, 0
        %v1667 = vsel %vm1320, %v1296, 0
        %v1670 = vsel %vm1320, %v1297, 0
        %v1673 = vsel %vm1320, %v1298, 0
        %v1676 = vsel %vm1320, %v1299, 0
        %v1679 = vsel %vm1320, %v1300, 0
        %v1682 = vsel %vm1320, %v1301, 0
        %v1685 = vsel %vm1320, %v1302, 0
        %v1688 = vsel %vm1320, %v1303, 0
        %v1691 = vsel %vm1320, %v1304, 0
        %v1694 = vsel %vm1320, %v1305, 0
        %v1697 = vsel %vm1320, %v1306, 0
        %v1700 = vsel %vm1320, %v1307, 0
        %v1703 = vsel %vm1320, %v1308, 0
        %vm1705 = vcmask 1044480
        %vm1706 = vcmask 1045504
        %v1707 = vsel %vm1705, 4294967295, 65535
        %v1708 = vsel %vm1706, %v1707, 0
        %v1710 = vand.u32 %v1318, %v1708
        %1712 = vmatprep.subr.bf16.mxu0 0
        %1713 = vmatpush1.bf16.msra.mxu0 %v1317
        %1714 = vmatprep.subr.bf16.mxu0 0
        %1715 = vmatpush1.bf16.msra.mxu0 %v1710
        %1716 = vmatprep.subr.bf16.mxu0 0
        %1717 = vmatpush1.bf16.msra.mxu0 0
        %1718 = vmatprep.subr.bf16.mxu0 0
        %1719 = vmatpush1.bf16.msra.mxu0 0
        %1720 = vmatprep.subr.bf16.mxu0 0
        %1721 = vmatpush1.bf16.msra.mxu0 0
        %1722 = vmatprep.subr.bf16.mxu0 0
        %1723 = vmatpush1.bf16.msra.mxu0 0
        %1724 = vmatprep.subr.bf16.mxu0 0
        %1725 = vmatpush1.bf16.msra.mxu0 0
        %1726 = vmatprep.subr.bf16.mxu0 0
        %1727 = vmatpush1.bf16.msra.mxu0 0
        %1728 = vmatprep.subr.bf16.mxu0 0
        %1729 = vmatpush1.bf16.msra.mxu0 0
        %1730 = vmatprep.subr.bf16.mxu0 0
        %1731 = vmatpush1.bf16.msra.mxu0 0
        %1732 = vmatprep.subr.bf16.mxu0 0
        %1733 = vmatpush1.bf16.msra.mxu0 0
        %1734 = vmatprep.subr.bf16.mxu0 0
        %1735 = vmatpush1.bf16.msra.mxu0 0
        %1736 = vmatprep.subr.bf16.mxu0 0
        %1737 = vmatpush1.bf16.msra.mxu0 0
        %1738 = vmatprep.subr.bf16.mxu0 0
        %1739 = vmatpush1.bf16.msra.mxu0 0
        %1740 = vmatprep.subr.bf16.mxu0 0
        %1741 = vmatpush1.bf16.msra.mxu0 0
        %1742 = vmatprep.subr.bf16.mxu0 0
        %1743 = vmatpush1.bf16.msra.mxu0 0
        %1744 = vmatprep.mubr.bf16.mxu0 0
        %1745 = vmatmul.mubr.bf16.gmra.mrb[0].mxu0 %v1322
        %v1746 = vpop.f32.mrb[0].mxu0
        %v1747 = vadd.f32 %v667, %v1746
        %v1748 = vpop.f32.mrb[0].mxu0
        %v1749 = vpop.f32.mrb[0].mxu0
        %v1750 = vadd.f32 %v667, %v1749
        %v1751 = vpop.f32.mrb[0].mxu0
        %1752 = vmatprep.mubr.bf16.mxu0 0
        %1753 = vmatmul.mubr.bf16.gmra.mrb[0].mxu0 %v1325
        %v1754 = vpop.f32.mrb[0].mxu0
        %v1755 = vadd.f32 %v667, %v1754
        %v1756 = vpop.f32.mrb[0].mxu0
        %v1757 = vpop.f32.mrb[0].mxu0
        %v1758 = vadd.f32 %v667, %v1757
        %v1759 = vpop.f32.mrb[0].mxu0
        %1760 = vmatprep.mubr.bf16.mxu0 0
        %1761 = vmatmul.mubr.bf16.gmra.mrb[0].mxu0 %v1328
        %v1762 = vpop.f32.mrb[0].mxu0
        %v1763 = vadd.f32 %v667, %v1762
        %v1764 = vpop.f32.mrb[0].mxu0
        %v1765 = vpop.f32.mrb[0].mxu0
        %v1766 = vadd.f32 %v667, %v1765
        %v1767 = vpop.f32.mrb[0].mxu0
        %1768 = vmatprep.mubr.bf16.mxu0 0
        %1769 = vmatmul.mubr.bf16.gmra.mrb[0].mxu0 %v1331
        %v1770 = vpop.f32.mrb[0].mxu0
        %v1771 = vadd.f32 %v667, %v1770
        %v1772 = vpop.f32.mrb[0].mxu0
        %v1773 = vpop.f32.mrb[0].mxu0
        %v1774 = vadd.f32 %v667, %v1773
        %v1775 = vpop.f32.mrb[0].mxu0
        %1776 = vmatprep.mubr.bf16.mxu0 0
        %1777 = vmatmul.mubr.bf16.gmra.mrb[0].mxu0 %v1334
        %v1778 = vpop.f32.mrb[0].mxu0
        %v1779 = vadd.f32 %v667, %v1778
        %v1780 = vpop.f32.mrb[0].mxu0
        %v1781 = vpop.f32.mrb[0].mxu0
        %v1782 = vadd.f32 %v667, %v1781
        %v1783 = vpop.f32.mrb[0].mxu0
        %1784 = vmatprep.mubr.bf16.mxu0 0
        %1785 = vmatmul.mubr.bf16.gmra.mrb[0].mxu0 %v1337
        %v1786 = vpop.f32.mrb[0].mxu0
        %v1787 = vadd.f32 %v667, %v1786
        %v1788 = vpop.f32.mrb[0].mxu0
        %v1789 = vpop.f32.mrb[0].mxu0
        %v1790 = vadd.f32 %v667, %v1789
        %v1791 = vpop.f32.mrb[0].mxu0
        %1792 = vmatprep.mubr.bf16.mxu0 0
        %1793 = vmatmul.mubr.bf16.gmra.mrb[0].mxu0 %v1340
        %v1794 = vpop.f32.mrb[0].mxu0
        %v1795 = vadd.f32 %v667, %v1794
        %v1796 = vpop.f32.mrb[0].mxu0
        %v1797 = vpop.f32.mrb[0].mxu0
        %v1798 = vadd.f32 %v667, %v1797
        %v1799 = vpop.f32.mrb[0].mxu0
        %1800 = vmatprep.mubr.bf16.mxu0 0
        %1801 = vmatmul.mubr.bf16.gmra.mrb[0].mxu0 %v1343
        %v1802 = vpop.f32.mrb[0].mxu0
        %v1803 = vadd.f32 %v667, %v1802
        %v1804 = vpop.f32.mrb[0].mxu0
        %v1805 = vpop.f32.mrb[0].mxu0
        %v1806 = vadd.f32 %v667, %v1805
        %v1807 = vpop.f32.mrb[0].mxu0
        %1808 = vmatprep.mubr.bf16.mxu0 0
        %1809 = vmatmul.mubr.bf16.gmra.mrb[0].mxu0 %v1346
        %v1810 = vpop.f32.mrb[0].mxu0
        %v1811 = vadd.f32 %v667, %v1810
        %v1812 = vpop.f32.mrb[0].mxu0
        %v1813 = vpop.f32.mrb[0].mxu0
        %v1814 = vadd.f32 %v667, %v1813
        %v1815 = vpop.f32.mrb[0].mxu0
        %1816 = vmatprep.mubr.bf16.mxu0 0
        %1817 = vmatmul.mubr.bf16.gmra.mrb[0].mxu0 %v1349
        %v1818 = vpop.f32.mrb[0].mxu0
        %v1819 = vadd.f32 %v667, %v1818
        %v1820 = vpop.f32.mrb[0].mxu0
        %v1821 = vpop.f32.mrb[0].mxu0
        %v1822 = vadd.f32 %v667, %v1821
        %v1823 = vpop.f32.mrb[0].mxu0
        %1824 = vmatprep.mubr.bf16.mxu0 0
        %1825 = vmatmul.mubr.bf16.gmra.mrb[0].mxu0 %v1352
        %v1826 = vpop.f32.mrb[0].mxu0
        %v1827 = vadd.f32 %v667, %v1826
        %v1828 = vpop.f32.mrb[0].mxu0
        %v1829 = vpop.f32.mrb[0].mxu0
        %v1830 = vadd.f32 %v667, %v1829
        %v1831 = vpop.f32.mrb[0].mxu0
        %1832 = vmatprep.mubr.bf16.mxu0 0
        %1833 = vmatmul.mubr.bf16.gmra.mrb[0].mxu0 %v1355
        %v1834 = vpop.f32.mrb[0].mxu0
        %v1835 = vadd.f32 %v667, %v1834
        %v1836 = vpop.f32.mrb[0].mxu0
        %v1837 = vpop.f32.mrb[0].mxu0
        %v1838 = vadd.f32 %v667, %v1837
        %v1839 = vpop.f32.mrb[0].mxu0
        %1840 = vmatprep.mubr.bf16.mxu0 0
        %1841 = vmatmul.mubr.bf16.gmra.mrb[0].mxu0 %v1358
        %v1842 = vpop.f32.mrb[0].mxu0
        %v1843 = vadd.f32 %v667, %v1842
        %v1844 = vpop.f32.mrb[0].mxu0
        %v1845 = vpop.f32.mrb[0].mxu0
        %v1846 = vadd.f32 %v667, %v1845
        %v1847 = vpop.f32.mrb[0].mxu0
        %1848 = vmatprep.mubr.bf16.mxu0 0
        %1849 = vmatmul.mubr.bf16.gmra.mrb[0].mxu0 %v1361
        %v1850 = vpop.f32.mrb[0].mxu0
        %v1851 = vadd.f32 %v667, %v1850
        %v1852 = vpop.f32.mrb[0].mxu0
        %v1853 = vpop.f32.mrb[0].mxu0
        %v1854 = vadd.f32 %v667, %v1853
        %v1855 = vpop.f32.mrb[0].mxu0
        %1856 = vmatprep.mubr.bf16.mxu0 0
        %1857 = vmatmul.mubr.bf16.gmra.mrb[0].mxu0 %v1364
        %v1858 = vpop.f32.mrb[0].mxu0
        %v1859 = vadd.f32 %v667, %v1858
        %v1860 = vpop.f32.mrb[0].mxu0
        %v1861 = vpop.f32.mrb[0].mxu0
        %v1862 = vadd.f32 %v667, %v1861
        %v1863 = vpop.f32.mrb[0].mxu0
        %1864 = vmatprep.mubr.bf16.mxu0 0
        %1865 = vmatmul.mubr.bf16.gmra.mrb[0].mxu0 %v1367
        %v1866 = vpop.f32.mrb[0].mxu0
        %v1867 = vadd.f32 %v667, %v1866
        %v1868 = vpop.f32.mrb[0].mxu0
        %v1869 = vpop.f32.mrb[0].mxu0
        %v1870 = vadd.f32 %v667, %v1869
        %v1871 = vpop.f32.mrb[0].mxu0
        %1872 = vmatprep.mubr.bf16.mxu0 0
        %1873 = vmatmul.mubr.bf16.gmra.mrb[0].mxu0 %v1370
        %v1874 = vpop.f32.mrb[0].mxu0
        %v1875 = vadd.f32 %v667, %v1874
        %v1876 = vpop.f32.mrb[0].mxu0
        %v1877 = vpop.f32.mrb[0].mxu0
        %v1878 = vadd.f32 %v667, %v1877
        %v1879 = vpop.f32.mrb[0].mxu0
        %1880 = vmatprep.mubr.bf16.mxu0 0
        %1881 = vmatmul.mubr.bf16.gmra.mrb[0].mxu0 %v1373
        %v1882 = vpop.f32.mrb[0].mxu0
        %v1883 = vadd.f32 %v667, %v1882
        %v1884 = vpop.f32.mrb[0].mxu0
        %v1885 = vpop.f32.mrb[0].mxu0
        %v1886 = vadd.f32 %v667, %v1885
        %v1887 = vpop.f32.mrb[0].mxu0
        %1888 = vmatprep.mubr.bf16.mxu0 0
        %1889 = vmatmul.mubr.bf16.gmra.mrb[0].mxu0 %v1376
        %v1890 = vpop.f32.mrb[0].mxu0
        %v1891 = vadd.f32 %v667, %v1890
        %v1892 = vpop.f32.mrb[0].mxu0
        %v1893 = vpop.f32.mrb[0].mxu0
        %v1894 = vadd.f32 %v667, %v1893
        %v1895 = vpop.f32.mrb[0].mxu0
        %1896 = vmatprep.mubr.bf16.mxu0 0
        %1897 = vmatmul.mubr.bf16.gmra.mrb[0].mxu0 %v1379
        %v1898 = vpop.f32.mrb[0].mxu0
        %v1899 = vadd.f32 %v667, %v1898
        %v1900 = vpop.f32.mrb[0].mxu0
        %v1901 = vpop.f32.mrb[0].mxu0
        %v1902 = vadd.f32 %v667, %v1901
        %v1903 = vpop.f32.mrb[0].mxu0
        %1904 = vmatprep.mubr.bf16.mxu0 0
        %1905 = vmatmul.mubr.bf16.gmra.mrb[0].mxu0 %v1382
        %v1906 = vpop.f32.mrb[0].mxu0
        %v1907 = vadd.f32 %v667, %v1906
        %v1908 = vpop.f32.mrb[0].mxu0
        %v1909 = vpop.f32.mrb[0].mxu0
        %v1910 = vadd.f32 %v667, %v1909
        %v1911 = vpop.f32.mrb[0].mxu0
        %1912 = vmatprep.mubr.bf16.mxu0 0
        %1913 = vmatmul.mubr.bf16.gmra.mrb[0].mxu0 %v1385
        %v1914 = vpop.f32.mrb[0].mxu0
        %v1915 = vadd.f32 %v667, %v1914
        %v1916 = vpop.f32.mrb[0].mxu0
        %v1917 = vpop.f32.mrb[0].mxu0
        %v1918 = vadd.f32 %v667, %v1917
        %v1919 = vpop.f32.mrb[0].mxu0
        %1920 = vmatprep.mubr.bf16.mxu0 0
        %1921 = vmatmul.mubr.bf16.gmra.mrb[0].mxu0 %v1388
        %v1922 = vpop.f32.mrb[0].mxu0
        %v1923 = vadd.f32 %v667, %v1922
        %v1924 = vpop.f32.mrb[0].mxu0
        %v1925 = vpop.f32.mrb[0].mxu0
        %v1926 = vadd.f32 %v667, %v1925
        %v1927 = vpop.f32.mrb[0].mxu0
        %1928 = vmatprep.mubr.bf16.mxu0 0
        %1929 = vmatmul.mubr.bf16.gmra.mrb[0].mxu0 %v1391
        %v1930 = vpop.f32.mrb[0].mxu0
        %v1931 = vadd.f32 %v667, %v1930
        %v1932 = vpop.f32.mrb[0].mxu0
        %v1933 = vpop.f32.mrb[0].mxu0
        %v1934 = vadd.f32 %v667, %v1933
        %v1935 = vpop.f32.mrb[0].mxu0
        %1936 = vmatprep.mubr.bf16.mxu0 0
        %1937 = vmatmul.mubr.bf16.gmra.mrb[0].mxu0 %v1394
        %v1938 = vpop.f32.mrb[0].mxu0
        %v1939 = vadd.f32 %v667, %v1938
        %v1940 = vpop.f32.mrb[0].mxu0
        %v1941 = vpop.f32.mrb[0].mxu0
        %v1942 = vadd.f32 %v667, %v1941
        %v1943 = vpop.f32.mrb[0].mxu0
        %1944 = vmatprep.mubr.bf16.mxu0 0
        %1945 = vmatmul.mubr.bf16.gmra.mrb[0].mxu0 %v1397
        %v1946 = vpop.f32.mrb[0].mxu0
        %v1947 = vadd.f32 %v667, %v1946
        %v1948 = vpop.f32.mrb[0].mxu0
        %v1949 = vpop.f32.mrb[0].mxu0
        %v1950 = vadd.f32 %v667, %v1949
        %v1951 = vpop.f32.mrb[0].mxu0
        %1952 = vmatprep.mubr.bf16.mxu0 0
        %1953 = vmatmul.mubr.bf16.gmra.mrb[0].mxu0 %v1400
        %v1954 = vpop.f32.mrb[0].mxu0
        %v1955 = vadd.f32 %v667, %v1954
        %v1956 = vpop.f32.mrb[0].mxu0
        %v1957 = vpop.f32.mrb[0].mxu0
        %v1958 = vadd.f32 %v667, %v1957
        %v1959 = vpop.f32.mrb[0].mxu0
        %1960 = vmatprep.mubr.bf16.mxu0 0
        %1961 = vmatmul.mubr.bf16.gmra.mrb[0].mxu0 %v1403
        %v1962 = vpop.f32.mrb[0].mxu0
        %v1963 = vadd.f32 %v667, %v1962
        %v1964 = vpop.f32.mrb[0].mxu0
        %v1965 = vpop.f32.mrb[0].mxu0
        %v1966 = vadd.f32 %v667, %v1965
        %v1967 = vpop.f32.mrb[0].mxu0
        %1968 = vmatprep.mubr.bf16.mxu0 0
        %1969 = vmatmul.mubr.bf16.gmra.mrb[0].mxu0 %v1406
        %v1970 = vpop.f32.mrb[0].mxu0
        %v1971 = vadd.f32 %v667, %v1970
        %v1972 = vpop.f32.mrb[0].mxu0
        %v1973 = vpop.f32.mrb[0].mxu0
        %v1974 = vadd.f32 %v667, %v1973
        %v1975 = vpop.f32.mrb[0].mxu0
        %1976 = vmatprep.mubr.bf16.mxu0 0
        %1977 = vmatmul.mubr.bf16.gmra.mrb[0].mxu0 %v1409
        %v1978 = vpop.f32.mrb[0].mxu0
        %v1979 = vadd.f32 %v667, %v1978
        %v1980 = vpop.f32.mrb[0].mxu0
        %v1981 = vpop.f32.mrb[0].mxu0
        %v1982 = vadd.f32 %v667, %v1981
        %v1983 = vpop.f32.mrb[0].mxu0
        %1984 = vmatprep.mubr.bf16.mxu0 0
        %1985 = vmatmul.mubr.bf16.gmra.mrb[0].mxu0 %v1412
        %v1986 = vpop.f32.mrb[0].mxu0
        %v1987 = vadd.f32 %v667, %v1986
        %v1988 = vpop.f32.mrb[0].mxu0
        %v1989 = vpop.f32.mrb[0].mxu0
        %v1990 = vadd.f32 %v667, %v1989
        %v1991 = vpop.f32.mrb[0].mxu0
        %1992 = vmatprep.mubr.bf16.mxu0 0
        %1993 = vmatmul.mubr.bf16.gmra.mrb[0].mxu0 %v1415
        %v1994 = vpop.f32.mrb[0].mxu0
        %v1995 = vadd.f32 %v667, %v1994
        %v1996 = vpop.f32.mrb[0].mxu0
        %v1997 = vpop.f32.mrb[0].mxu0
        %v1998 = vadd.f32 %v667, %v1997
        %v1999 = vpop.f32.mrb[0].mxu0
        %2000 = vmatprep.mubr.bf16.mxu0 0
        %2001 = vmatmul.mubr.bf16.gmra.mrb[0].mxu0 %v1418
        %v2002 = vpop.f32.mrb[0].mxu0
        %v2003 = vadd.f32 %v667, %v2002
        %v2004 = vpop.f32.mrb[0].mxu0
        %v2005 = vpop.f32.mrb[0].mxu0
        %v2006 = vadd.f32 %v667, %v2005
        %v2007 = vpop.f32.mrb[0].mxu0
        %2008 = vmatprep.mubr.bf16.mxu0 0
        %2009 = vmatmul.mubr.bf16.gmra.mrb[0].mxu0 %v1421
        %v2010 = vpop.f32.mrb[0].mxu0
        %v2011 = vadd.f32 %v667, %v2010
        %v2012 = vpop.f32.mrb[0].mxu0
        %v2013 = vpop.f32.mrb[0].mxu0
        %v2014 = vadd.f32 %v667, %v2013
        %v2015 = vpop.f32.mrb[0].mxu0
        %2016 = vmatprep.mubr.bf16.mxu0 0
        %2017 = vmatmul.mubr.bf16.gmra.mrb[0].mxu0 %v1424
        %v2018 = vpop.f32.mrb[0].mxu0
        %v2019 = vadd.f32 %v667, %v2018
        %v2020 = vpop.f32.mrb[0].mxu0
        %v2021 = vpop.f32.mrb[0].mxu0
        %v2022 = vadd.f32 %v667, %v2021
        %v2023 = vpop.f32.mrb[0].mxu0
        %2024 = vmatprep.mubr.bf16.mxu0 0
        %2025 = vmatmul.mubr.bf16.gmra.mrb[0].mxu0 %v1427
        %v2026 = vpop.f32.mrb[0].mxu0
        %v2027 = vadd.f32 %v667, %v2026
        %v2028 = vpop.f32.mrb[0].mxu0
        %v2029 = vpop.f32.mrb[0].mxu0
        %v2030 = vadd.f32 %v667, %v2029
        %v2031 = vpop.f32.mrb[0].mxu0
        %2032 = vmatprep.mubr.bf16.mxu0 0
        %2033 = vmatmul.mubr.bf16.gmra.mrb[0].mxu0 %v1430
        %v2034 = vpop.f32.mrb[0].mxu0
        %v2035 = vadd.f32 %v667, %v2034
        %v2036 = vpop.f32.mrb[0].mxu0
        %v2037 = vpop.f32.mrb[0].mxu0
        %v2038 = vadd.f32 %v667, %v2037
        %v2039 = vpop.f32.mrb[0].mxu0
        %2040 = vmatprep.mubr.bf16.mxu0 0
        %2041 = vmatmul.mubr.bf16.gmra.mrb[0].mxu0 %v1433
        %v2042 = vpop.f32.mrb[0].mxu0
        %v2043 = vadd.f32 %v667, %v2042
        %v2044 = vpop.f32.mrb[0].mxu0
        %v2045 = vpop.f32.mrb[0].mxu0
        %v2046 = vadd.f32 %v667, %v2045
        %v2047 = vpop.f32.mrb[0].mxu0
        %2048 = vmatprep.mubr.bf16.mxu0 0
        %2049 = vmatmul.mubr.bf16.gmra.mrb[0].mxu0 %v1436
        %v2050 = vpop.f32.mrb[0].mxu0
        %v2051 = vadd.f32 %v667, %v2050
        %v2052 = vpop.f32.mrb[0].mxu0
        %v2053 = vpop.f32.mrb[0].mxu0
        %v2054 = vadd.f32 %v667, %v2053
        %v2055 = vpop.f32.mrb[0].mxu0
        %2056 = vmatprep.mubr.bf16.mxu0 0
        %2057 = vmatmul.mubr.bf16.gmra.mrb[0].mxu0 %v1439
        %v2058 = vpop.f32.mrb[0].mxu0
        %v2059 = vadd.f32 %v667, %v2058
        %v2060 = vpop.f32.mrb[0].mxu0
        %v2061 = vpop.f32.mrb[0].mxu0
        %v2062 = vadd.f32 %v667, %v2061
        %v2063 = vpop.f32.mrb[0].mxu0
        %2064 = vmatprep.mubr.bf16.mxu0 0
        %2065 = vmatmul.mubr.bf16.gmra.mrb[0].mxu0 %v1442
        %v2066 = vpop.f32.mrb[0].mxu0
        %v2067 = vadd.f32 %v667, %v2066
        %v2068 = vpop.f32.mrb[0].mxu0
        %v2069 = vpop.f32.mrb[0].mxu0
        %v2070 = vadd.f32 %v667, %v2069
        %v2071 = vpop.f32.mrb[0].mxu0
        %2072 = vmatprep.mubr.bf16.mxu0 0
        %2073 = vmatmul.mubr.bf16.gmra.mrb[0].mxu0 %v1445
        %v2074 = vpop.f32.mrb[0].mxu0
        %v2075 = vadd.f32 %v667, %v2074
        %v2076 = vpop.f32.mrb[0].mxu0
        %v2077 = vpop.f32.mrb[0].mxu0
        %v2078 = vadd.f32 %v667, %v2077
        %v2079 = vpop.f32.mrb[0].mxu0
        %2080 = vmatprep.mubr.bf16.mxu0 0
        %2081 = vmatmul.mubr.bf16.gmra.mrb[0].mxu0 %v1448
        %v2082 = vpop.f32.mrb[0].mxu0
        %v2083 = vadd.f32 %v667, %v2082
        %v2084 = vpop.f32.mrb[0].mxu0
        %v2085 = vpop.f32.mrb[0].mxu0
        %v2086 = vadd.f32 %v667, %v2085
        %v2087 = vpop.f32.mrb[0].mxu0
        %2088 = vmatprep.mubr.bf16.mxu0 0
        %2089 = vmatmul.mubr.bf16.gmra.mrb[0].mxu0 %v1451
        %v2090 = vpop.f32.mrb[0].mxu0
        %v2091 = vadd.f32 %v667, %v2090
        %v2092 = vpop.f32.mrb[0].mxu0
        %v2093 = vpop.f32.mrb[0].mxu0
        %v2094 = vadd.f32 %v667, %v2093
        %v2095 = vpop.f32.mrb[0].mxu0
        %2096 = vmatprep.mubr.bf16.mxu0 0
        %2097 = vmatmul.mubr.bf16.gmra.mrb[0].mxu0 %v1454
        %v2098 = vpop.f32.mrb[0].mxu0
        %v2099 = vadd.f32 %v667, %v2098
        %v2100 = vpop.f32.mrb[0].mxu0
        %v2101 = vpop.f32.mrb[0].mxu0
        %v2102 = vadd.f32 %v667, %v2101
        %v2103 = vpop.f32.mrb[0].mxu0
        %2104 = vmatprep.mubr.bf16.mxu0 0
        %2105 = vmatmul.mubr.bf16.gmra.mrb[0].mxu0 %v1457
        %v2106 = vpop.f32.mrb[0].mxu0
        %v2107 = vadd.f32 %v667, %v2106
        %v2108 = vpop.f32.mrb[0].mxu0
        %v2109 = vpop.f32.mrb[0].mxu0
        %v2110 = vadd.f32 %v667, %v2109
        %v2111 = vpop.f32.mrb[0].mxu0
        %2112 = vmatprep.mubr.bf16.mxu0 0
        %2113 = vmatmul.mubr.bf16.gmra.mrb[0].mxu0 %v1460
        %v2114 = vpop.f32.mrb[0].mxu0
        %v2115 = vadd.f32 %v667, %v2114
        %v2116 = vpop.f32.mrb[0].mxu0
        %v2117 = vpop.f32.mrb[0].mxu0
        %v2118 = vadd.f32 %v667, %v2117
        %v2119 = vpop.f32.mrb[0].mxu0
        %2120 = vmatprep.mubr.bf16.mxu0 0
        %2121 = vmatmul.mubr.bf16.gmra.mrb[0].mxu0 %v1463
        %v2122 = vpop.f32.mrb[0].mxu0
        %v2123 = vadd.f32 %v667, %v2122
        %v2124 = vpop.f32.mrb[0].mxu0
        %v2125 = vpop.f32.mrb[0].mxu0
        %v2126 = vadd.f32 %v667, %v2125
        %v2127 = vpop.f32.mrb[0].mxu0
        %2128 = vmatprep.mubr.bf16.mxu0 0
        %2129 = vmatmul.mubr.bf16.gmra.mrb[0].mxu0 %v1466
        %v2130 = vpop.f32.mrb[0].mxu0
        %v2131 = vadd.f32 %v667, %v2130
        %v2132 = vpop.f32.mrb[0].mxu0
        %v2133 = vpop.f32.mrb[0].mxu0
        %v2134 = vadd.f32 %v667, %v2133
        %v2135 = vpop.f32.mrb[0].mxu0
        %2136 = vmatprep.mubr.bf16.mxu0 0
        %2137 = vmatmul.mubr.bf16.gmra.mrb[0].mxu0 %v1469
        %v2138 = vpop.f32.mrb[0].mxu0
        %v2139 = vadd.f32 %v667, %v2138
        %v2140 = vpop.f32.mrb[0].mxu0
        %v2141 = vpop.f32.mrb[0].mxu0
        %v2142 = vadd.f32 %v667, %v2141
        %v2143 = vpop.f32.mrb[0].mxu0
        %2144 = vmatprep.mubr.bf16.mxu0 0
        %2145 = vmatmul.mubr.bf16.gmra.mrb[0].mxu0 %v1472
        %v2146 = vpop.f32.mrb[0].mxu0
        %v2147 = vadd.f32 %v667, %v2146
        %v2148 = vpop.f32.mrb[0].mxu0
        %v2149 = vpop.f32.mrb[0].mxu0
        %v2150 = vadd.f32 %v667, %v2149
        %v2151 = vpop.f32.mrb[0].mxu0
        %2152 = vmatprep.mubr.bf16.mxu0 0
        %2153 = vmatmul.mubr.bf16.gmra.mrb[0].mxu0 %v1475
        %v2154 = vpop.f32.mrb[0].mxu0
        %v2155 = vadd.f32 %v667, %v2154
        %v2156 = vpop.f32.mrb[0].mxu0
        %v2157 = vpop.f32.mrb[0].mxu0
        %v2158 = vadd.f32 %v667, %v2157
        %v2159 = vpop.f32.mrb[0].mxu0
        %2160 = vmatprep.mubr.bf16.mxu0 0
        %2161 = vmatmul.mubr.bf16.gmra.mrb[0].mxu0 %v1478
        %v2162 = vpop.f32.mrb[0].mxu0
        %v2163 = vadd.f32 %v667, %v2162
        %v2164 = vpop.f32.mrb[0].mxu0
        %v2165 = vpop.f32.mrb[0].mxu0
        %v2166 = vadd.f32 %v667, %v2165
        %v2167 = vpop.f32.mrb[0].mxu0
        %2168 = vmatprep.mubr.bf16.mxu0 0
        %2169 = vmatmul.mubr.bf16.gmra.mrb[0].mxu0 %v1481
        %v2170 = vpop.f32.mrb[0].mxu0
        %v2171 = vadd.f32 %v667, %v2170
        %v2172 = vpop.f32.mrb[0].mxu0
        %v2173 = vpop.f32.mrb[0].mxu0
        %v2174 = vadd.f32 %v667, %v2173
        %v2175 = vpop.f32.mrb[0].mxu0
        %2176 = vmatprep.mubr.bf16.mxu0 0
        %2177 = vmatmul.mubr.bf16.gmra.mrb[0].mxu0 %v1484
        %v2178 = vpop.f32.mrb[0].mxu0
        %v2179 = vadd.f32 %v667, %v2178
        %v2180 = vpop.f32.mrb[0].mxu0
        %v2181 = vpop.f32.mrb[0].mxu0
        %v2182 = vadd.f32 %v667, %v2181
        %v2183 = vpop.f32.mrb[0].mxu0
        %2184 = vmatprep.mubr.bf16.mxu0 0
        %2185 = vmatmul.mubr.bf16.gmra.mrb[0].mxu0 %v1487
        %v2186 = vpop.f32.mrb[0].mxu0
        %v2187 = vadd.f32 %v667, %v2186
        %v2188 = vpop.f32.mrb[0].mxu0
        %v2189 = vpop.f32.mrb[0].mxu0
        %v2190 = vadd.f32 %v667, %v2189
        %v2191 = vpop.f32.mrb[0].mxu0
        %2192 = vmatprep.mubr.bf16.mxu0 0
        %2193 = vmatmul.mubr.bf16.gmra.mrb[0].mxu0 %v1490
        %v2194 = vpop.f32.mrb[0].mxu0
        %v2195 = vadd.f32 %v667, %v2194
        %v2196 = vpop.f32.mrb[0].mxu0
        %v2197 = vpop.f32.mrb[0].mxu0
        %v2198 = vadd.f32 %v667, %v2197
        %v2199 = vpop.f32.mrb[0].mxu0
        %2200 = vmatprep.mubr.bf16.mxu0 0
        %2201 = vmatmul.mubr.bf16.gmra.mrb[0].mxu0 %v1493
        %v2202 = vpop.f32.mrb[0].mxu0
        %v2203 = vadd.f32 %v667, %v2202
        %v2204 = vpop.f32.mrb[0].mxu0
        %v2205 = vpop.f32.mrb[0].mxu0
        %v2206 = vadd.f32 %v667, %v2205
        %v2207 = vpop.f32.mrb[0].mxu0
        %2208 = vmatprep.mubr.bf16.mxu0 0
        %2209 = vmatmul.mubr.bf16.gmra.mrb[0].mxu0 %v1496
        %v2210 = vpop.f32.mrb[0].mxu0
        %v2211 = vadd.f32 %v667, %v2210
        %v2212 = vpop.f32.mrb[0].mxu0
        %v2213 = vpop.f32.mrb[0].mxu0
        %v2214 = vadd.f32 %v667, %v2213
        %v2215 = vpop.f32.mrb[0].mxu0
        %2216 = vmatprep.mubr.bf16.mxu0 0
        %2217 = vmatmul.mubr.bf16.gmra.mrb[0].mxu0 %v1499
        %v2218 = vpop.f32.mrb[0].mxu0
        %v2219 = vadd.f32 %v667, %v2218
        %v2220 = vpop.f32.mrb[0].mxu0
        %v2221 = vpop.f32.mrb[0].mxu0
        %v2222 = vadd.f32 %v667, %v2221
        %v2223 = vpop.f32.mrb[0].mxu0
        %2224 = vmatprep.mubr.bf16.mxu0 0
        %2225 = vmatmul.mubr.bf16.gmra.mrb[0].mxu0 %v1502
        %v2226 = vpop.f32.mrb[0].mxu0
        %v2227 = vadd.f32 %v667, %v2226
        %v2228 = vpop.f32.mrb[0].mxu0
        %v2229 = vpop.f32.mrb[0].mxu0
        %v2230 = vadd.f32 %v667, %v2229
        %v2231 = vpop.f32.mrb[0].mxu0
        %2232 = vmatprep.mubr.bf16.mxu0 0
        %2233 = vmatmul.mubr.bf16.gmra.mrb[0].mxu0 %v1505
        %v2234 = vpop.f32.mrb[0].mxu0
        %v2235 = vadd.f32 %v667, %v2234
        %v2236 = vpop.f32.mrb[0].mxu0
        %v2237 = vpop.f32.mrb[0].mxu0
        %v2238 = vadd.f32 %v667, %v2237
        %v2239 = vpop.f32.mrb[0].mxu0
        %2240 = vmatprep.mubr.bf16.mxu0 0
        %2241 = vmatmul.mubr.bf16.gmra.mrb[0].mxu0 %v1508
        %v2242 = vpop.f32.mrb[0].mxu0
        %v2243 = vadd.f32 %v667, %v2242
        %v2244 = vpop.f32.mrb[0].mxu0
        %v2245 = vpop.f32.mrb[0].mxu0
        %v2246 = vadd.f32 %v667, %v2245
        %v2247 = vpop.f32.mrb[0].mxu0
        %2248 = vmatprep.mubr.bf16.mxu0 0
        %2249 = vmatmul.mubr.bf16.gmra.mrb[0].mxu0 %v1511
        %v2250 = vpop.f32.mrb[0].mxu0
        %v2251 = vadd.f32 %v667, %v2250
        %v2252 = vpop.f32.mrb[0].mxu0
        %v2253 = vpop.f32.mrb[0].mxu0
        %v2254 = vadd.f32 %v667, %v2253
        %v2255 = vpop.f32.mrb[0].mxu0
        %2256 = vmatprep.mubr.bf16.mxu0 0
        %2257 = vmatmul.mubr.bf16.gmra.mrb[0].mxu0 %v1514
        %v2258 = vpop.f32.mrb[0].mxu0
        %v2259 = vadd.f32 %v667, %v2258
        %v2260 = vpop.f32.mrb[0].mxu0
        %v2261 = vpop.f32.mrb[0].mxu0
        %v2262 = vadd.f32 %v667, %v2261
        %v2263 = vpop.f32.mrb[0].mxu0
        %2264 = vmatprep.mubr.bf16.mxu0 0
        %2265 = vmatmul.mubr.bf16.gmra.mrb[0].mxu0 %v1517
        %v2266 = vpop.f32.mrb[0].mxu0
        %v2267 = vadd.f32 %v667, %v2266
        %v2268 = vpop.f32.mrb[0].mxu0
        %v2269 = vpop.f32.mrb[0].mxu0
        %v2270 = vadd.f32 %v667, %v2269
        %v2271 = vpop.f32.mrb[0].mxu0
        %2272 = vmatprep.mubr.bf16.mxu0 0
        %2273 = vmatmul.mubr.bf16.gmra.mrb[0].mxu0 %v1520
        %v2274 = vpop.f32.mrb[0].mxu0
        %v2275 = vadd.f32 %v667, %v2274
        %v2276 = vpop.f32.mrb[0].mxu0
        %v2277 = vpop.f32.mrb[0].mxu0
        %v2278 = vadd.f32 %v667, %v2277
        %v2279 = vpop.f32.mrb[0].mxu0
        %2280 = vmatprep.mubr.bf16.mxu0 0
        %2281 = vmatmul.mubr.bf16.gmra.mrb[0].mxu0 %v1523
        %v2282 = vpop.f32.mrb[0].mxu0
        %v2283 = vadd.f32 %v667, %v2282
        %v2284 = vpop.f32.mrb[0].mxu0
        %v2285 = vpop.f32.mrb[0].mxu0
        %v2286 = vadd.f32 %v667, %v2285
        %v2287 = vpop.f32.mrb[0].mxu0
        %2288 = vmatprep.mubr.bf16.mxu0 0
        %2289 = vmatmul.mubr.bf16.gmra.mrb[0].mxu0 %v1526
        %v2290 = vpop.f32.mrb[0].mxu0
        %v2291 = vadd.f32 %v667, %v2290
        %v2292 = vpop.f32.mrb[0].mxu0
        %v2293 = vpop.f32.mrb[0].mxu0
        %v2294 = vadd.f32 %v667, %v2293
        %v2295 = vpop.f32.mrb[0].mxu0
        %2296 = vmatprep.mubr.bf16.mxu0 0
        %2297 = vmatmul.mubr.bf16.gmra.mrb[0].mxu0 %v1529
        %v2298 = vpop.f32.mrb[0].mxu0
        %v2299 = vadd.f32 %v667, %v2298
        %v2300 = vpop.f32.mrb[0].mxu0
        %v2301 = vpop.f32.mrb[0].mxu0
        %v2302 = vadd.f32 %v667, %v2301
        %v2303 = vpop.f32.mrb[0].mxu0
        %2304 = vmatprep.mubr.bf16.mxu0 0
        %2305 = vmatmul.mubr.bf16.gmra.mrb[0].mxu0 %v1532
        %v2306 = vpop.f32.mrb[0].mxu0
        %v2307 = vadd.f32 %v667, %v2306
        %v2308 = vpop.f32.mrb[0].mxu0
        %v2309 = vpop.f32.mrb[0].mxu0
        %v2310 = vadd.f32 %v667, %v2309
        %v2311 = vpop.f32.mrb[0].mxu0
        %2312 = vmatprep.mubr.bf16.mxu0 0
        %2313 = vmatmul.mubr.bf16.gmra.mrb[0].mxu0 %v1535
        %v2314 = vpop.f32.mrb[0].mxu0
        %v2315 = vadd.f32 %v667, %v2314
        %v2316 = vpop.f32.mrb[0].mxu0
        %v2317 = vpop.f32.mrb[0].mxu0
        %v2318 = vadd.f32 %v667, %v2317
        %v2319 = vpop.f32.mrb[0].mxu0
        %2320 = vmatprep.mubr.bf16.mxu0 0
        %2321 = vmatmul.mubr.bf16.gmra.mrb[0].mxu0 %v1538
        %v2322 = vpop.f32.mrb[0].mxu0
        %v2323 = vadd.f32 %v667, %v2322
        %v2324 = vpop.f32.mrb[0].mxu0
        %v2325 = vpop.f32.mrb[0].mxu0
        %v2326 = vadd.f32 %v667, %v2325
        %v2327 = vpop.f32.mrb[0].mxu0
        %2328 = vmatprep.mubr.bf16.mxu0 0
        %2329 = vmatmul.mubr.bf16.gmra.mrb[0].mxu0 %v1541
        %v2330 = vpop.f32.mrb[0].mxu0
        %v2331 = vadd.f32 %v667, %v2330
        %v2332 = vpop.f32.mrb[0].mxu0
        %v2333 = vpop.f32.mrb[0].mxu0
        %v2334 = vadd.f32 %v667, %v2333
        %v2335 = vpop.f32.mrb[0].mxu0
        %2336 = vmatprep.mubr.bf16.mxu0 0
        %2337 = vmatmul.mubr.bf16.gmra.mrb[0].mxu0 %v1544
        %v2338 = vpop.f32.mrb[0].mxu0
        %v2339 = vadd.f32 %v667, %v2338
        %v2340 = vpop.f32.mrb[0].mxu0
        %v2341 = vpop.f32.mrb[0].mxu0
        %v2342 = vadd.f32 %v667, %v2341
        %v2343 = vpop.f32.mrb[0].mxu0
        %2344 = vmatprep.mubr.bf16.mxu0 0
        %2345 = vmatmul.mubr.bf16.gmra.mrb[0].mxu0 %v1547
        %v2346 = vpop.f32.mrb[0].mxu0
        %v2347 = vadd.f32 %v667, %v2346
        %v2348 = vpop.f32.mrb[0].mxu0
        %v2349 = vpop.f32.mrb[0].mxu0
        %v2350 = vadd.f32 %v667, %v2349
        %v2351 = vpop.f32.mrb[0].mxu0
        %2352 = vmatprep.mubr.bf16.mxu0 0
        %2353 = vmatmul.mubr.bf16.gmra.mrb[0].mxu0 %v1550
        %v2354 = vpop.f32.mrb[0].mxu0
        %v2355 = vadd.f32 %v667, %v2354
        %v2356 = vpop.f32.mrb[0].mxu0
        %v2357 = vpop.f32.mrb[0].mxu0
        %v2358 = vadd.f32 %v667, %v2357
        %v2359 = vpop.f32.mrb[0].mxu0
        %2360 = vmatprep.mubr.bf16.mxu0 0
        %2361 = vmatmul.mubr.bf16.gmra.mrb[0].mxu0 %v1553
        %v2362 = vpop.f32.mrb[0].mxu0
        %v2363 = vadd.f32 %v667, %v2362
        %v2364 = vpop.f32.mrb[0].mxu0
        %v2365 = vpop.f32.mrb[0].mxu0
        %v2366 = vadd.f32 %v667, %v2365
        %v2367 = vpop.f32.mrb[0].mxu0
        %2368 = vmatprep.mubr.bf16.mxu0 0
        %2369 = vmatmul.mubr.bf16.gmra.mrb[0].mxu0 %v1556
        %v2370 = vpop.f32.mrb[0].mxu0
        %v2371 = vadd.f32 %v667, %v2370
        %v2372 = vpop.f32.mrb[0].mxu0
        %v2373 = vpop.f32.mrb[0].mxu0
        %v2374 = vadd.f32 %v667, %v2373
        %v2375 = vpop.f32.mrb[0].mxu0
        %2376 = vmatprep.mubr.bf16.mxu0 0
        %2377 = vmatmul.mubr.bf16.gmra.mrb[0].mxu0 %v1559
        %v2378 = vpop.f32.mrb[0].mxu0
        %v2379 = vadd.f32 %v667, %v2378
        %v2380 = vpop.f32.mrb[0].mxu0
        %v2381 = vpop.f32.mrb[0].mxu0
        %v2382 = vadd.f32 %v667, %v2381
        %v2383 = vpop.f32.mrb[0].mxu0
        %2384 = vmatprep.mubr.bf16.mxu0 0
        %2385 = vmatmul.mubr.bf16.gmra.mrb[0].mxu0 %v1562
        %v2386 = vpop.f32.mrb[0].mxu0
        %v2387 = vadd.f32 %v667, %v2386
        %v2388 = vpop.f32.mrb[0].mxu0
        %v2389 = vpop.f32.mrb[0].mxu0
        %v2390 = vadd.f32 %v667, %v2389
        %v2391 = vpop.f32.mrb[0].mxu0
        %2392 = vmatprep.mubr.bf16.mxu0 0
        %2393 = vmatmul.mubr.bf16.gmra.mrb[0].mxu0 %v1565
        %v2394 = vpop.f32.mrb[0].mxu0
        %v2395 = vadd.f32 %v667, %v2394
        %v2396 = vpop.f32.mrb[0].mxu0
        %v2397 = vpop.f32.mrb[0].mxu0
        %v2398 = vadd.f32 %v667, %v2397
        %v2399 = vpop.f32.mrb[0].mxu0
        %2400 = vmatprep.mubr.bf16.mxu0 0
        %2401 = vmatmul.mubr.bf16.gmra.mrb[0].mxu0 %v1568
        %v2402 = vpop.f32.mrb[0].mxu0
        %v2403 = vadd.f32 %v667, %v2402
        %v2404 = vpop.f32.mrb[0].mxu0
        %v2405 = vpop.f32.mrb[0].mxu0
        %v2406 = vadd.f32 %v667, %v2405
        %v2407 = vpop.f32.mrb[0].mxu0
        %2408 = vmatprep.mubr.bf16.mxu0 0
        %2409 = vmatmul.mubr.bf16.gmra.mrb[0].mxu0 %v1571
        %v2410 = vpop.f32.mrb[0].mxu0
        %v2411 = vadd.f32 %v667, %v2410
        %v2412 = vpop.f32.mrb[0].mxu0
        %v2413 = vpop.f32.mrb[0].mxu0
        %v2414 = vadd.f32 %v667, %v2413
        %v2415 = vpop.f32.mrb[0].mxu0
        %2416 = vmatprep.mubr.bf16.mxu0 0
        %2417 = vmatmul.mubr.bf16.gmra.mrb[0].mxu0 %v1574
        %v2418 = vpop.f32.mrb[0].mxu0
        %v2419 = vadd.f32 %v667, %v2418
        %v2420 = vpop.f32.mrb[0].mxu0
        %v2421 = vpop.f32.mrb[0].mxu0
        %v2422 = vadd.f32 %v667, %v2421
        %v2423 = vpop.f32.mrb[0].mxu0
        %2424 = vmatprep.mubr.bf16.mxu0 0
        %2425 = vmatmul.mubr.bf16.gmra.mrb[0].mxu0 %v1577
        %v2426 = vpop.f32.mrb[0].mxu0
        %v2427 = vadd.f32 %v667, %v2426
        %v2428 = vpop.f32.mrb[0].mxu0
        %v2429 = vpop.f32.mrb[0].mxu0
        %v2430 = vadd.f32 %v667, %v2429
        %v2431 = vpop.f32.mrb[0].mxu0
        %2432 = vmatprep.mubr.bf16.mxu0 0
        %2433 = vmatmul.mubr.bf16.gmra.mrb[0].mxu0 %v1580
        %v2434 = vpop.f32.mrb[0].mxu0
        %v2435 = vadd.f32 %v667, %v2434
        %v2436 = vpop.f32.mrb[0].mxu0
        %v2437 = vpop.f32.mrb[0].mxu0
        %v2438 = vadd.f32 %v667, %v2437
        %v2439 = vpop.f32.mrb[0].mxu0
        %2440 = vmatprep.mubr.bf16.mxu0 0
        %2441 = vmatmul.mubr.bf16.gmra.mrb[0].mxu0 %v1583
        %v2442 = vpop.f32.mrb[0].mxu0
        %v2443 = vadd.f32 %v667, %v2442
        %v2444 = vpop.f32.mrb[0].mxu0
        %v2445 = vpop.f32.mrb[0].mxu0
        %v2446 = vadd.f32 %v667, %v2445
        %v2447 = vpop.f32.mrb[0].mxu0
        %2448 = vmatprep.mubr.bf16.mxu0 0
        %2449 = vmatmul.mubr.bf16.gmra.mrb[0].mxu0 %v1586
        %v2450 = vpop.f32.mrb[0].mxu0
        %v2451 = vadd.f32 %v667, %v2450
        %v2452 = vpop.f32.mrb[0].mxu0
        %v2453 = vpop.f32.mrb[0].mxu0
        %v2454 = vadd.f32 %v667, %v2453
        %v2455 = vpop.f32.mrb[0].mxu0
        %2456 = vmatprep.mubr.bf16.mxu0 0
        %2457 = vmatmul.mubr.bf16.gmra.mrb[0].mxu0 %v1589
        %v2458 = vpop.f32.mrb[0].mxu0
        %v2459 = vadd.f32 %v667, %v2458
        %v2460 = vpop.f32.mrb[0].mxu0
        %v2461 = vpop.f32.mrb[0].mxu0
        %v2462 = vadd.f32 %v667, %v2461
        %v2463 = vpop.f32.mrb[0].mxu0
        %2464 = vmatprep.mubr.bf16.mxu0 0
        %2465 = vmatmul.mubr.bf16.gmra.mrb[0].mxu0 %v1592
        %v2466 = vpop.f32.mrb[0].mxu0
        %v2467 = vadd.f32 %v667, %v2466
        %v2468 = vpop.f32.mrb[0].mxu0
        %v2469 = vpop.f32.mrb[0].mxu0
        %v2470 = vadd.f32 %v667, %v2469
        %v2471 = vpop.f32.mrb[0].mxu0
        %2472 = vmatprep.mubr.bf16.mxu0 0
        %2473 = vmatmul.mubr.bf16.gmra.mrb[0].mxu0 %v1595
        %v2474 = vpop.f32.mrb[0].mxu0
        %v2475 = vadd.f32 %v667, %v2474
        %v2476 = vpop.f32.mrb[0].mxu0
        %v2477 = vpop.f32.mrb[0].mxu0
        %v2478 = vadd.f32 %v667, %v2477
        %v2479 = vpop.f32.mrb[0].mxu0
        %2480 = vmatprep.mubr.bf16.mxu0 0
        %2481 = vmatmul.mubr.bf16.gmra.mrb[0].mxu0 %v1598
        %v2482 = vpop.f32.mrb[0].mxu0
        %v2483 = vadd.f32 %v667, %v2482
        %v2484 = vpop.f32.mrb[0].mxu0
        %v2485 = vpop.f32.mrb[0].mxu0
        %v2486 = vadd.f32 %v667, %v2485
        %v2487 = vpop.f32.mrb[0].mxu0
        %2488 = vmatprep.mubr.bf16.mxu0 0
        %2489 = vmatmul.mubr.bf16.gmra.mrb[0].mxu0 %v1601
        %v2490 = vpop.f32.mrb[0].mxu0
        %v2491 = vadd.f32 %v667, %v2490
        %v2492 = vpop.f32.mrb[0].mxu0
        %v2493 = vpop.f32.mrb[0].mxu0
        %v2494 = vadd.f32 %v667, %v2493
        %v2495 = vpop.f32.mrb[0].mxu0
        %2496 = vmatprep.mubr.bf16.mxu0 0
        %2497 = vmatmul.mubr.bf16.gmra.mrb[0].mxu0 %v1604
        %v2498 = vpop.f32.mrb[0].mxu0
        %v2499 = vadd.f32 %v667, %v2498
        %v2500 = vpop.f32.mrb[0].mxu0
        %v2501 = vpop.f32.mrb[0].mxu0
        %v2502 = vadd.f32 %v667, %v2501
        %v2503 = vpop.f32.mrb[0].mxu0
        %2504 = vmatprep.mubr.bf16.mxu0 0
        %2505 = vmatmul.mubr.bf16.gmra.mrb[0].mxu0 %v1607
        %v2506 = vpop.f32.mrb[0].mxu0
        %v2507 = vadd.f32 %v667, %v2506
        %v2508 = vpop.f32.mrb[0].mxu0
        %v2509 = vpop.f32.mrb[0].mxu0
        %v2510 = vadd.f32 %v667, %v2509
        %v2511 = vpop.f32.mrb[0].mxu0
        %2512 = vmatprep.mubr.bf16.mxu0 0
        %2513 = vmatmul.mubr.bf16.gmra.mrb[0].mxu0 %v1610
        %v2514 = vpop.f32.mrb[0].mxu0
        %v2515 = vadd.f32 %v667, %v2514
        %v2516 = vpop.f32.mrb[0].mxu0
        %v2517 = vpop.f32.mrb[0].mxu0
        %v2518 = vadd.f32 %v667, %v2517
        %v2519 = vpop.f32.mrb[0].mxu0
        %2520 = vmatprep.mubr.bf16.mxu0 0
        %2521 = vmatmul.mubr.bf16.gmra.mrb[0].mxu0 %v1613
        %v2522 = vpop.f32.mrb[0].mxu0
        %v2523 = vadd.f32 %v667, %v2522
        %v2524 = vpop.f32.mrb[0].mxu0
        %v2525 = vpop.f32.mrb[0].mxu0
        %v2526 = vadd.f32 %v667, %v2525
        %v2527 = vpop.f32.mrb[0].mxu0
        %2528 = vmatprep.mubr.bf16.mxu0 0
        %2529 = vmatmul.mubr.bf16.gmra.mrb[0].mxu0 %v1616
        %v2530 = vpop.f32.mrb[0].mxu0
        %v2531 = vadd.f32 %v667, %v2530
        %v2532 = vpop.f32.mrb[0].mxu0
        %v2533 = vpop.f32.mrb[0].mxu0
        %v2534 = vadd.f32 %v667, %v2533
        %v2535 = vpop.f32.mrb[0].mxu0
        %2536 = vmatprep.mubr.bf16.mxu0 0
        %2537 = vmatmul.mubr.bf16.gmra.mrb[0].mxu0 %v1619
        %v2538 = vpop.f32.mrb[0].mxu0
        %v2539 = vadd.f32 %v667, %v2538
        %v2540 = vpop.f32.mrb[0].mxu0
        %v2541 = vpop.f32.mrb[0].mxu0
        %v2542 = vadd.f32 %v667, %v2541
        %v2543 = vpop.f32.mrb[0].mxu0
        %2544 = vmatprep.mubr.bf16.mxu0 0
        %2545 = vmatmul.mubr.bf16.gmra.mrb[0].mxu0 %v1622
        %v2546 = vpop.f32.mrb[0].mxu0
        %v2547 = vadd.f32 %v667, %v2546
        %v2548 = vpop.f32.mrb[0].mxu0
        %v2549 = vpop.f32.mrb[0].mxu0
        %v2550 = vadd.f32 %v667, %v2549
        %v2551 = vpop.f32.mrb[0].mxu0
        %2552 = vmatprep.mubr.bf16.mxu0 0
        %2553 = vmatmul.mubr.bf16.gmra.mrb[0].mxu0 %v1625
        %v2554 = vpop.f32.mrb[0].mxu0
        %v2555 = vadd.f32 %v667, %v2554
        %v2556 = vpop.f32.mrb[0].mxu0
        %v2557 = vpop.f32.mrb[0].mxu0
        %v2558 = vadd.f32 %v667, %v2557
        %v2559 = vpop.f32.mrb[0].mxu0
        %2560 = vmatprep.mubr.bf16.mxu0 0
        %2561 = vmatmul.mubr.bf16.gmra.mrb[0].mxu0 %v1628
        %v2562 = vpop.f32.mrb[0].mxu0
        %v2563 = vadd.f32 %v667, %v2562
        %v2564 = vpop.f32.mrb[0].mxu0
        %v2565 = vpop.f32.mrb[0].mxu0
        %v2566 = vadd.f32 %v667, %v2565
        %v2567 = vpop.f32.mrb[0].mxu0
        %2568 = vmatprep.mubr.bf16.mxu0 0
        %2569 = vmatmul.mubr.bf16.gmra.mrb[0].mxu0 %v1631
        %v2570 = vpop.f32.mrb[0].mxu0
        %v2571 = vadd.f32 %v667, %v2570
        %v2572 = vpop.f32.mrb[0].mxu0
        %v2573 = vpop.f32.mrb[0].mxu0
        %v2574 = vadd.f32 %v667, %v2573
        %v2575 = vpop.f32.mrb[0].mxu0
        %2576 = vmatprep.mubr.bf16.mxu0 0
        %2577 = vmatmul.mubr.bf16.gmra.mrb[0].mxu0 %v1634
        %v2578 = vpop.f32.mrb[0].mxu0
        %v2579 = vadd.f32 %v667, %v2578
        %v2580 = vpop.f32.mrb[0].mxu0
        %v2581 = vpop.f32.mrb[0].mxu0
        %v2582 = vadd.f32 %v667, %v2581
        %v2583 = vpop.f32.mrb[0].mxu0
        %2584 = vmatprep.mubr.bf16.mxu0 0
        %2585 = vmatmul.mubr.bf16.gmra.mrb[0].mxu0 %v1637
        %v2586 = vpop.f32.mrb[0].mxu0
        %v2587 = vadd.f32 %v667, %v2586
        %v2588 = vpop.f32.mrb[0].mxu0
        %v2589 = vpop.f32.mrb[0].mxu0
        %v2590 = vadd.f32 %v667, %v2589
        %v2591 = vpop.f32.mrb[0].mxu0
        %2592 = vmatprep.mubr.bf16.mxu0 0
        %2593 = vmatmul.mubr.bf16.gmra.mrb[0].mxu0 %v1640
        %v2594 = vpop.f32.mrb[0].mxu0
        %v2595 = vadd.f32 %v667, %v2594
        %v2596 = vpop.f32.mrb[0].mxu0
        %v2597 = vpop.f32.mrb[0].mxu0
        %v2598 = vadd.f32 %v667, %v2597
        %v2599 = vpop.f32.mrb[0].mxu0
        %2600 = vmatprep.mubr.bf16.mxu0 0
        %2601 = vmatmul.mubr.bf16.gmra.mrb[0].mxu0 %v1643
        %v2602 = vpop.f32.mrb[0].mxu0
        %v2603 = vadd.f32 %v667, %v2602
        %v2604 = vpop.f32.mrb[0].mxu0
        %v2605 = vpop.f32.mrb[0].mxu0
        %v2606 = vadd.f32 %v667, %v2605
        %v2607 = vpop.f32.mrb[0].mxu0
        %2608 = vmatprep.mubr.bf16.mxu0 0
        %2609 = vmatmul.mubr.bf16.gmra.mrb[0].mxu0 %v1646
        %v2610 = vpop.f32.mrb[0].mxu0
        %v2611 = vadd.f32 %v667, %v2610
        %v2612 = vpop.f32.mrb[0].mxu0
        %v2613 = vpop.f32.mrb[0].mxu0
        %v2614 = vadd.f32 %v667, %v2613
        %v2615 = vpop.f32.mrb[0].mxu0
        %2616 = vmatprep.mubr.bf16.mxu0 0
        %2617 = vmatmul.mubr.bf16.gmra.mrb[0].mxu0 %v1649
        %v2618 = vpop.f32.mrb[0].mxu0
        %v2619 = vadd.f32 %v667, %v2618
        %v2620 = vpop.f32.mrb[0].mxu0
        %v2621 = vpop.f32.mrb[0].mxu0
        %v2622 = vadd.f32 %v667, %v2621
        %v2623 = vpop.f32.mrb[0].mxu0
        %2624 = vmatprep.mubr.bf16.mxu0 0
        %2625 = vmatmul.mubr.bf16.gmra.mrb[0].mxu0 %v1652
        %v2626 = vpop.f32.mrb[0].mxu0
        %v2627 = vadd.f32 %v667, %v2626
        %v2628 = vpop.f32.mrb[0].mxu0
        %v2629 = vpop.f32.mrb[0].mxu0
        %v2630 = vadd.f32 %v667, %v2629
        %v2631 = vpop.f32.mrb[0].mxu0
        %2632 = vmatprep.mubr.bf16.mxu0 0
        %2633 = vmatmul.mubr.bf16.gmra.mrb[0].mxu0 %v1655
        %v2634 = vpop.f32.mrb[0].mxu0
        %v2635 = vadd.f32 %v667, %v2634
        %v2636 = vpop.f32.mrb[0].mxu0
        %v2637 = vpop.f32.mrb[0].mxu0
        %v2638 = vadd.f32 %v667, %v2637
        %v2639 = vpop.f32.mrb[0].mxu0
        %2640 = vmatprep.mubr.bf16.mxu0 0
        %2641 = vmatmul.mubr.bf16.gmra.mrb[0].mxu0 %v1658
        %v2642 = vpop.f32.mrb[0].mxu0
        %v2643 = vadd.f32 %v667, %v2642
        %v2644 = vpop.f32.mrb[0].mxu0
        %v2645 = vpop.f32.mrb[0].mxu0
        %v2646 = vadd.f32 %v667, %v2645
        %v2647 = vpop.f32.mrb[0].mxu0
        %2648 = vmatprep.mubr.bf16.mxu0 0
        %2649 = vmatmul.mubr.bf16.gmra.mrb[0].mxu0 %v1661
        %v2650 = vpop.f32.mrb[0].mxu0
        %v2651 = vadd.f32 %v667, %v2650
        %v2652 = vpop.f32.mrb[0].mxu0
        %v2653 = vpop.f32.mrb[0].mxu0
        %v2654 = vadd.f32 %v667, %v2653
        %v2655 = vpop.f32.mrb[0].mxu0
        %2656 = vmatprep.mubr.bf16.mxu0 0
        %2657 = vmatmul.mubr.bf16.gmra.mrb[0].mxu0 %v1664
        %v2658 = vpop.f32.mrb[0].mxu0
        %v2659 = vadd.f32 %v667, %v2658
        %v2660 = vpop.f32.mrb[0].mxu0
        %v2661 = vpop.f32.mrb[0].mxu0
        %v2662 = vadd.f32 %v667, %v2661
        %v2663 = vpop.f32.mrb[0].mxu0
        %2664 = vmatprep.mubr.bf16.mxu0 0
        %2665 = vmatmul.mubr.bf16.gmra.mrb[0].mxu0 %v1667
        %v2666 = vpop.f32.mrb[0].mxu0
        %v2667 = vadd.f32 %v667, %v2666
        %v2668 = vpop.f32.mrb[0].mxu0
        %v2669 = vpop.f32.mrb[0].mxu0
        %v2670 = vadd.f32 %v667, %v2669
        %v2671 = vpop.f32.mrb[0].mxu0
        %2672 = vmatprep.mubr.bf16.mxu0 0
        %2673 = vmatmul.mubr.bf16.gmra.mrb[0].mxu0 %v1670
        %v2674 = vpop.f32.mrb[0].mxu0
        %v2675 = vadd.f32 %v667, %v2674
        %v2676 = vpop.f32.mrb[0].mxu0
        %v2677 = vpop.f32.mrb[0].mxu0
        %v2678 = vadd.f32 %v667, %v2677
        %v2679 = vpop.f32.mrb[0].mxu0
        %2680 = vmatprep.mubr.bf16.mxu0 0
        %2681 = vmatmul.mubr.bf16.gmra.mrb[0].mxu0 %v1673
        %v2682 = vpop.f32.mrb[0].mxu0
        %v2683 = vadd.f32 %v667, %v2682
        %v2684 = vpop.f32.mrb[0].mxu0
        %v2685 = vpop.f32.mrb[0].mxu0
        %v2686 = vadd.f32 %v667, %v2685
        %v2687 = vpop.f32.mrb[0].mxu0
        %2688 = vmatprep.mubr.bf16.mxu0 0
        %2689 = vmatmul.mubr.bf16.gmra.mrb[0].mxu0 %v1676
        %v2690 = vpop.f32.mrb[0].mxu0
        %v2691 = vadd.f32 %v667, %v2690
        %v2692 = vpop.f32.mrb[0].mxu0
        %v2693 = vpop.f32.mrb[0].mxu0
        %v2694 = vadd.f32 %v667, %v2693
        %v2695 = vpop.f32.mrb[0].mxu0
        %2696 = vmatprep.mubr.bf16.mxu0 0
        %2697 = vmatmul.mubr.bf16.gmra.mrb[0].mxu0 %v1679
        %v2698 = vpop.f32.mrb[0].mxu0
        %v2699 = vadd.f32 %v667, %v2698
        %v2700 = vpop.f32.mrb[0].mxu0
        %v2701 = vpop.f32.mrb[0].mxu0
        %v2702 = vadd.f32 %v667, %v2701
        %v2703 = vpop.f32.mrb[0].mxu0
        %2704 = vmatprep.mubr.bf16.mxu0 0
        %2705 = vmatmul.mubr.bf16.gmra.mrb[0].mxu0 %v1682
        %v2706 = vpop.f32.mrb[0].mxu0
        %v2707 = vadd.f32 %v667, %v2706
        %v2708 = vpop.f32.mrb[0].mxu0
        %v2709 = vpop.f32.mrb[0].mxu0
        %v2710 = vadd.f32 %v667, %v2709
        %v2711 = vpop.f32.mrb[0].mxu0
        %2712 = vmatprep.mubr.bf16.mxu0 0
        %2713 = vmatmul.mubr.bf16.gmra.mrb[0].mxu0 %v1685
        %v2714 = vpop.f32.mrb[0].mxu0
        %v2715 = vadd.f32 %v667, %v2714
        %v2716 = vpop.f32.mrb[0].mxu0
        %v2717 = vpop.f32.mrb[0].mxu0
        %v2718 = vadd.f32 %v667, %v2717
        %v2719 = vpop.f32.mrb[0].mxu0
        %2720 = vmatprep.mubr.bf16.mxu0 0
        %2721 = vmatmul.mubr.bf16.gmra.mrb[0].mxu0 %v1688
        %v2722 = vpop.f32.mrb[0].mxu0
        %v2723 = vadd.f32 %v667, %v2722
        %v2724 = vpop.f32.mrb[0].mxu0
        %v2725 = vpop.f32.mrb[0].mxu0
        %v2726 = vadd.f32 %v667, %v2725
        %v2727 = vpop.f32.mrb[0].mxu0
        %2728 = vmatprep.mubr.bf16.mxu0 0
        %2729 = vmatmul.mubr.bf16.gmra.mrb[0].mxu0 %v1691
        %v2730 = vpop.f32.mrb[0].mxu0
        %v2731 = vadd.f32 %v667, %v2730
        %v2732 = vpop.f32.mrb[0].mxu0
        %v2733 = vpop.f32.mrb[0].mxu0
        %v2734 = vadd.f32 %v667, %v2733
        %v2735 = vpop.f32.mrb[0].mxu0
        %2736 = vmatprep.mubr.bf16.mxu0 0
        %2737 = vmatmul.mubr.bf16.gmra.mrb[0].mxu0 %v1694
        %v2738 = vpop.f32.mrb[0].mxu0
        %v2739 = vadd.f32 %v667, %v2738
        %v2740 = vpop.f32.mrb[0].mxu0
        %v2741 = vpop.f32.mrb[0].mxu0
        %v2742 = vadd.f32 %v667, %v2741
        %v2743 = vpop.f32.mrb[0].mxu0
        %2744 = vmatprep.mubr.bf16.mxu0 0
        %2745 = vmatmul.mubr.bf16.gmra.mrb[0].mxu0 %v1697
        %v2746 = vpop.f32.mrb[0].mxu0
        %v2747 = vadd.f32 %v667, %v2746
        %v2748 = vpop.f32.mrb[0].mxu0
        %v2749 = vpop.f32.mrb[0].mxu0
        %v2750 = vadd.f32 %v667, %v2749
        %v2751 = vpop.f32.mrb[0].mxu0
        %2752 = vmatprep.mubr.bf16.mxu0 0
        %2753 = vmatmul.mubr.bf16.gmra.mrb[0].mxu0 %v1700
        %v2754 = vpop.f32.mrb[0].mxu0
        %v2755 = vadd.f32 %v667, %v2754
        %v2756 = vpop.f32.mrb[0].mxu0
        %v2757 = vpop.f32.mrb[0].mxu0
        %v2758 = vadd.f32 %v667, %v2757
        %v2759 = vpop.f32.mrb[0].mxu0
        %2760 = vmatprep.mubr.bf16.mxu0 0
        %2761 = vmatmul.mubr.bf16.gmra.mrb[0].mxu0 %v1703
        %v2762 = vpop.f32.mrb[0].mxu0
        %v2763 = vadd.f32 %v667, %v2762
        %v2764 = vpop.f32.mrb[0].mxu0
        %v2765 = vpop.f32.mrb[0].mxu0
        %v2766 = vadd.f32 %v667, %v2765
        %v2767 = vpop.f32.mrb[0].mxu0
        %2768 = vdwg.mxu0
        %v2769 = vmax.f32 %v1747, 0.0
        %v2770 = vmax.f32 %v1750, 0.0
        %v2771 = vmax.f32 %v1755, 0.0
        %v2772 = vmax.f32 %v1758, 0.0
        %v2773 = vmax.f32 %v1763, 0.0
        %v2774 = vmax.f32 %v1766, 0.0
        %v2775 = vmax.f32 %v1771, 0.0
        %v2776 = vmax.f32 %v1774, 0.0
        %v2777 = vmax.f32 %v1779, 0.0
        %v2778 = vmax.f32 %v1782, 0.0
        %v2779 = vmax.f32 %v1787, 0.0
        %v2780 = vmax.f32 %v1790, 0.0
        %v2781 = vmax.f32 %v1795, 0.0
        %v2782 = vmax.f32 %v1798, 0.0
        %v2783 = vmax.f32 %v1803, 0.0
        %v2784 = vmax.f32 %v1806, 0.0
        %v2785 = vmax.f32 %v1811, 0.0
        %v2786 = vmax.f32 %v1814, 0.0
        %v2787 = vmax.f32 %v1819, 0.0
        %v2788 = vmax.f32 %v1822, 0.0
        %v2789 = vmax.f32 %v1827, 0.0
        %v2790 = vmax.f32 %v1830, 0.0
        %v2791 = vmax.f32 %v1835, 0.0
        %v2792 = vmax.f32 %v1838, 0.0
        %v2793 = vmax.f32 %v1843, 0.0
        %v2794 = vmax.f32 %v1846, 0.0
        %v2795 = vmax.f32 %v1851, 0.0
        %v2796 = vmax.f32 %v1854, 0.0
        %v2797 = vmax.f32 %v1859, 0.0
        %v2798 = vmax.f32 %v1862, 0.0
        %v2799 = vmax.f32 %v1867, 0.0
        %v2800 = vmax.f32 %v1870, 0.0
        %v2801 = vmax.f32 %v1875, 0.0
        %v2802 = vmax.f32 %v1878, 0.0
        %v2803 = vmax.f32 %v1883, 0.0
        %v2804 = vmax.f32 %v1886, 0.0
        %v2805 = vmax.f32 %v1891, 0.0
        %v2806 = vmax.f32 %v1894, 0.0
        %v2807 = vmax.f32 %v1899, 0.0
        %v2808 = vmax.f32 %v1902, 0.0
        %v2809 = vmax.f32 %v1907, 0.0
        %v2810 = vmax.f32 %v1910, 0.0
        %v2811 = vmax.f32 %v1915, 0.0
        %v2812 = vmax.f32 %v1918, 0.0
        %v2813 = vmax.f32 %v1923, 0.0
        %v2814 = vmax.f32 %v1926, 0.0
        %v2815 = vmax.f32 %v1931, 0.0
        %v2816 = vmax.f32 %v1934, 0.0
        %v2817 = vmax.f32 %v1939, 0.0
        %v2818 = vmax.f32 %v1942, 0.0
        %v2819 = vmax.f32 %v1947, 0.0
        %v2820 = vmax.f32 %v1950, 0.0
        %v2821 = vmax.f32 %v1955, 0.0
        %v2822 = vmax.f32 %v1958, 0.0
        %v2823 = vmax.f32 %v1963, 0.0
        %v2824 = vmax.f32 %v1966, 0.0
        %v2825 = vmax.f32 %v1971, 0.0
        %v2826 = vmax.f32 %v1974, 0.0
        %v2827 = vmax.f32 %v1979, 0.0
        %v2828 = vmax.f32 %v1982, 0.0
        %v2829 = vmax.f32 %v1987, 0.0
        %v2830 = vmax.f32 %v1990, 0.0
        %v2831 = vmax.f32 %v1995, 0.0
        %v2832 = vmax.f32 %v1998, 0.0
        %v2833 = vmax.f32 %v2003, 0.0
        %v2834 = vmax.f32 %v2006, 0.0
        %v2835 = vmax.f32 %v2011, 0.0
        %v2836 = vmax.f32 %v2014, 0.0
        %v2837 = vmax.f32 %v2019, 0.0
        %v2838 = vmax.f32 %v2022, 0.0
        %v2839 = vmax.f32 %v2027, 0.0
        %v2840 = vmax.f32 %v2030, 0.0
        %v2841 = vmax.f32 %v2035, 0.0
        %v2842 = vmax.f32 %v2038, 0.0
        %v2843 = vmax.f32 %v2043, 0.0
        %v2844 = vmax.f32 %v2046, 0.0
        %v2845 = vmax.f32 %v2051, 0.0
        %v2846 = vmax.f32 %v2054, 0.0
        %v2847 = vmax.f32 %v2059, 0.0
        %v2848 = vmax.f32 %v2062, 0.0
        %v2849 = vmax.f32 %v2067, 0.0
        %v2850 = vmax.f32 %v2070, 0.0
        %v2851 = vmax.f32 %v2075, 0.0
        %v2852 = vmax.f32 %v2078, 0.0
        %v2853 = vmax.f32 %v2083, 0.0
        %v2854 = vmax.f32 %v2086, 0.0
        %v2855 = vmax.f32 %v2091, 0.0
        %v2856 = vmax.f32 %v2094, 0.0
        %v2857 = vmax.f32 %v2099, 0.0
        %v2858 = vmax.f32 %v2102, 0.0
        %v2859 = vmax.f32 %v2107, 0.0
        %v2860 = vmax.f32 %v2110, 0.0
        %v2861 = vmax.f32 %v2115, 0.0
        %v2862 = vmax.f32 %v2118, 0.0
        %v2863 = vmax.f32 %v2123, 0.0
        %v2864 = vmax.f32 %v2126, 0.0
        %v2865 = vmax.f32 %v2131, 0.0
        %v2866 = vmax.f32 %v2134, 0.0
        %v2867 = vmax.f32 %v2139, 0.0
        %v2868 = vmax.f32 %v2142, 0.0
        %v2869 = vmax.f32 %v2147, 0.0
        %v2870 = vmax.f32 %v2150, 0.0
        %v2871 = vmax.f32 %v2155, 0.0
        %v2872 = vmax.f32 %v2158, 0.0
        %v2873 = vmax.f32 %v2163, 0.0
        %v2874 = vmax.f32 %v2166, 0.0
        %v2875 = vmax.f32 %v2171, 0.0
        %v2876 = vmax.f32 %v2174, 0.0
        %v2877 = vmax.f32 %v2179, 0.0
        %v2878 = vmax.f32 %v2182, 0.0
        %v2879 = vmax.f32 %v2187, 0.0
        %v2880 = vmax.f32 %v2190, 0.0
        %v2881 = vmax.f32 %v2195, 0.0
        %v2882 = vmax.f32 %v2198, 0.0
        %v2883 = vmax.f32 %v2203, 0.0
        %v2884 = vmax.f32 %v2206, 0.0
        %v2885 = vmax.f32 %v2211, 0.0
        %v2886 = vmax.f32 %v2214, 0.0
        %v2887 = vmax.f32 %v2219, 0.0
        %v2888 = vmax.f32 %v2222, 0.0
        %v2889 = vmax.f32 %v2227, 0.0
        %v2890 = vmax.f32 %v2230, 0.0
        %v2891 = vmax.f32 %v2235, 0.0
        %v2892 = vmax.f32 %v2238, 0.0
        %v2893 = vmax.f32 %v2243, 0.0
        %v2894 = vmax.f32 %v2246, 0.0
        %v2895 = vmax.f32 %v2251, 0.0
        %v2896 = vmax.f32 %v2254, 0.0
        %v2897 = vmax.f32 %v2259, 0.0
        %v2898 = vmax.f32 %v2262, 0.0
        %v2899 = vmax.f32 %v2267, 0.0
        %v2900 = vmax.f32 %v2270, 0.0
        %v2901 = vmax.f32 %v2275, 0.0
        %v2902 = vmax.f32 %v2278, 0.0
        %v2903 = vmax.f32 %v2283, 0.0
        %v2904 = vmax.f32 %v2286, 0.0
        %v2905 = vmax.f32 %v2291, 0.0
        %v2906 = vmax.f32 %v2294, 0.0
        %v2907 = vmax.f32 %v2299, 0.0
        %v2908 = vmax.f32 %v2302, 0.0
        %v2909 = vmax.f32 %v2307, 0.0
        %v2910 = vmax.f32 %v2310, 0.0
        %v2911 = vmax.f32 %v2315, 0.0
        %v2912 = vmax.f32 %v2318, 0.0
        %v2913 = vmax.f32 %v2323, 0.0
        %v2914 = vmax.f32 %v2326, 0.0
        %v2915 = vmax.f32 %v2331, 0.0
        %v2916 = vmax.f32 %v2334, 0.0
        %v2917 = vmax.f32 %v2339, 0.0
        %v2918 = vmax.f32 %v2342, 0.0
        %v2919 = vmax.f32 %v2347, 0.0
        %v2920 = vmax.f32 %v2350, 0.0
        %v2921 = vmax.f32 %v2355, 0.0
        %v2922 = vmax.f32 %v2358, 0.0
        %v2923 = vmax.f32 %v2363, 0.0
        %v2924 = vmax.f32 %v2366, 0.0
        %v2925 = vmax.f32 %v2371, 0.0
        %v2926 = vmax.f32 %v2374, 0.0
        %v2927 = vmax.f32 %v2379, 0.0
        %v2928 = vmax.f32 %v2382, 0.0
        %v2929 = vmax.f32 %v2387, 0.0
        %v2930 = vmax.f32 %v2390, 0.0
        %v2931 = vmax.f32 %v2395, 0.0
        %v2932 = vmax.f32 %v2398, 0.0
        %v2933 = vmax.f32 %v2403, 0.0
        %v2934 = vmax.f32 %v2406, 0.0
        %v2935 = vmax.f32 %v2411, 0.0
        %v2936 = vmax.f32 %v2414, 0.0
        %v2937 = vmax.f32 %v2419, 0.0
        %v2938 = vmax.f32 %v2422, 0.0
        %v2939 = vmax.f32 %v2427, 0.0
        %v2940 = vmax.f32 %v2430, 0.0
        %v2941 = vmax.f32 %v2435, 0.0
        %v2942 = vmax.f32 %v2438, 0.0
        %v2943 = vmax.f32 %v2443, 0.0
        %v2944 = vmax.f32 %v2446, 0.0
        %v2945 = vmax.f32 %v2451, 0.0
        %v2946 = vmax.f32 %v2454, 0.0
        %v2947 = vmax.f32 %v2459, 0.0
        %v2948 = vmax.f32 %v2462, 0.0
        %v2949 = vmax.f32 %v2467, 0.0
        %v2950 = vmax.f32 %v2470, 0.0
        %v2951 = vmax.f32 %v2475, 0.0
        %v2952 = vmax.f32 %v2478, 0.0
        %v2953 = vmax.f32 %v2483, 0.0
        %v2954 = vmax.f32 %v2486, 0.0
        %v2955 = vmax.f32 %v2491, 0.0
        %v2956 = vmax.f32 %v2494, 0.0
        %v2957 = vmax.f32 %v2499, 0.0
        %v2958 = vmax.f32 %v2502, 0.0
        %v2959 = vmax.f32 %v2507, 0.0
        %v2960 = vmax.f32 %v2510, 0.0
        %v2961 = vmax.f32 %v2515, 0.0
        %v2962 = vmax.f32 %v2518, 0.0
        %v2963 = vmax.f32 %v2523, 0.0
        %v2964 = vmax.f32 %v2526, 0.0
        %v2965 = vmax.f32 %v2531, 0.0
        %v2966 = vmax.f32 %v2534, 0.0
        %v2967 = vmax.f32 %v2539, 0.0
        %v2968 = vmax.f32 %v2542, 0.0
        %v2969 = vmax.f32 %v2547, 0.0
        %v2970 = vmax.f32 %v2550, 0.0
        %v2971 = vmax.f32 %v2555, 0.0
        %v2972 = vmax.f32 %v2558, 0.0
        %v2973 = vmax.f32 %v2563, 0.0
        %v2974 = vmax.f32 %v2566, 0.0
        %v2975 = vmax.f32 %v2571, 0.0
        %v2976 = vmax.f32 %v2574, 0.0
        %v2977 = vmax.f32 %v2579, 0.0
        %v2978 = vmax.f32 %v2582, 0.0
        %v2979 = vmax.f32 %v2587, 0.0
        %v2980 = vmax.f32 %v2590, 0.0
        %v2981 = vmax.f32 %v2595, 0.0
        %v2982 = vmax.f32 %v2598, 0.0
        %v2983 = vmax.f32 %v2603, 0.0
        %v2984 = vmax.f32 %v2606, 0.0
        %v2985 = vmax.f32 %v2611, 0.0
        %v2986 = vmax.f32 %v2614, 0.0
        %v2987 = vmax.f32 %v2619, 0.0
        %v2988 = vmax.f32 %v2622, 0.0
        %v2989 = vmax.f32 %v2627, 0.0
        %v2990 = vmax.f32 %v2630, 0.0
        %v2991 = vmax.f32 %v2635, 0.0
        %v2992 = vmax.f32 %v2638, 0.0
        %v2993 = vmax.f32 %v2643, 0.0
        %v2994 = vmax.f32 %v2646, 0.0
        %v2995 = vmax.f32 %v2651, 0.0
        %v2996 = vmax.f32 %v2654, 0.0
        %v2997 = vmax.f32 %v2659, 0.0
        %v2998 = vmax.f32 %v2662, 0.0
        %v2999 = vmax.f32 %v2667, 0.0
        %v3000 = vmax.f32 %v2670, 0.0
        %v3001 = vmax.f32 %v2675, 0.0
        %v3002 = vmax.f32 %v2678, 0.0
        %v3003 = vmax.f32 %v2683, 0.0
        %v3004 = vmax.f32 %v2686, 0.0
        %v3005 = vmax.f32 %v2691, 0.0
        %v3006 = vmax.f32 %v2694, 0.0
        %v3007 = vmax.f32 %v2699, 0.0
        %v3008 = vmax.f32 %v2702, 0.0
        %v3009 = vmax.f32 %v2707, 0.0
        %v3010 = vmax.f32 %v2710, 0.0
        %v3011 = vmax.f32 %v2715, 0.0
        %v3012 = vmax.f32 %v2718, 0.0
        %v3013 = vmax.f32 %v2723, 0.0
        %v3014 = vmax.f32 %v2726, 0.0
        %v3015 = vmax.f32 %v2731, 0.0
        %v3016 = vmax.f32 %v2734, 0.0
        %v3017 = vmax.f32 %v2739, 0.0
        %v3018 = vmax.f32 %v2742, 0.0
        %v3019 = vmax.f32 %v2747, 0.0
        %v3020 = vmax.f32 %v2750, 0.0
        %v3021 = vmax.f32 %v2755, 0.0
        %v3022 = vmax.f32 %v2758, 0.0
        %v3023 = vmax.f32 %v2763, 0.0
        %v3024 = vmax.f32 %v2766, 0.0
        %vm3025 = vcmask 261120
        %v3026 = vsel %vm3025, %v2769, 0.0
        %v3027 = vsel %vm3025, %v2770, 0.0
        %v3028 = vadd.f32 %v3026, %v3027
        %v3029 = vsel %vm3025, %v2771, 0.0
        %v3030 = vadd.f32 %v3028, %v3029
        %v3031 = vsel %vm3025, %v2772, 0.0
        %v3032 = vadd.f32 %v3030, %v3031
        %v3033 = vsel %vm3025, %v2773, 0.0
        %v3034 = vadd.f32 %v3032, %v3033
        %v3035 = vsel %vm3025, %v2774, 0.0
        %v3036 = vadd.f32 %v3034, %v3035
        %v3037 = vsel %vm3025, %v2775, 0.0
        %v3038 = vadd.f32 %v3036, %v3037
        %v3039 = vsel %vm3025, %v2776, 0.0
        %v3040 = vadd.f32 %v3038, %v3039
        %v3041 = vsel %vm3025, %v2777, 0.0
        %v3042 = vadd.f32 %v3040, %v3041
        %v3043 = vsel %vm3025, %v2778, 0.0
        %v3044 = vadd.f32 %v3042, %v3043
        %v3045 = vsel %vm3025, %v2779, 0.0
        %v3046 = vadd.f32 %v3044, %v3045
        %v3047 = vsel %vm3025, %v2780, 0.0
        %v3048 = vadd.f32 %v3046, %v3047
        %v3049 = vsel %vm3025, %v2781, 0.0
        %v3050 = vadd.f32 %v3048, %v3049
        %v3051 = vsel %vm3025, %v2782, 0.0
        %v3052 = vadd.f32 %v3050, %v3051
        %v3053 = vsel %vm3025, %v2783, 0.0
        %v3054 = vadd.f32 %v3052, %v3053
        %v3055 = vsel %vm3025, %v2784, 0.0
        %v3056 = vadd.f32 %v3054, %v3055
        %v3057 = vsel %vm3025, %v2785, 0.0
        %v3058 = vadd.f32 %v3056, %v3057
        %v3059 = vsel %vm3025, %v2786, 0.0
        %v3060 = vadd.f32 %v3058, %v3059
        %v3061 = vsel %vm3025, %v2787, 0.0
        %v3062 = vadd.f32 %v3060, %v3061
        %v3063 = vsel %vm3025, %v2788, 0.0
        %v3064 = vadd.f32 %v3062, %v3063
        %v3065 = vsel %vm3025, %v2789, 0.0
        %v3066 = vadd.f32 %v3064, %v3065
        %v3067 = vsel %vm3025, %v2790, 0.0
        %v3068 = vadd.f32 %v3066, %v3067
        %v3069 = vsel %vm3025, %v2791, 0.0
        %v3070 = vadd.f32 %v3068, %v3069
        %v3071 = vsel %vm3025, %v2792, 0.0
        %v3072 = vadd.f32 %v3070, %v3071
        %v3073 = vsel %vm3025, %v2793, 0.0
        %v3074 = vadd.f32 %v3072, %v3073
        %v3075 = vsel %vm3025, %v2794, 0.0
        %v3076 = vadd.f32 %v3074, %v3075
        %v3077 = vsel %vm3025, %v2795, 0.0
        %v3078 = vadd.f32 %v3076, %v3077
        %v3079 = vsel %vm3025, %v2796, 0.0
        %v3080 = vadd.f32 %v3078, %v3079
        %v3081 = vsel %vm3025, %v2797, 0.0
        %v3082 = vadd.f32 %v3080, %v3081
        %v3083 = vsel %vm3025, %v2798, 0.0
        %v3084 = vadd.f32 %v3082, %v3083
        %v3085 = vsel %vm3025, %v2799, 0.0
        %v3086 = vadd.f32 %v3084, %v3085
        %v3087 = vsel %vm3025, %v2800, 0.0
        %v3088 = vadd.f32 %v3086, %v3087
        %v3089 = vrot.slane %v3088, 4
        %v3090 = vadd.f32 %v3088, %v3089
        %v3091 = vrot.slane %v3090, 2
        %v3092 = vadd.f32 %v3090, %v3091
        %v3093 = vrot.slane %v3092, 1
        %v3094 = vadd.f32 %v3092, %v3093
        %v3095 = vsel %vm3025, %v2801, 0.0
        %v3096 = vsel %vm3025, %v2802, 0.0
        %v3097 = vadd.f32 %v3095, %v3096
        %v3098 = vsel %vm3025, %v2803, 0.0
        %v3099 = vadd.f32 %v3097, %v3098
        %v3100 = vsel %vm3025, %v2804, 0.0
        %v3101 = vadd.f32 %v3099, %v3100
        %v3102 = vsel %vm3025, %v2805, 0.0
        %v3103 = vadd.f32 %v3101, %v3102
        %v3104 = vsel %vm3025, %v2806, 0.0
        %v3105 = vadd.f32 %v3103, %v3104
        %v3106 = vsel %vm3025, %v2807, 0.0
        %v3107 = vadd.f32 %v3105, %v3106
        %v3108 = vsel %vm3025, %v2808, 0.0
        %v3109 = vadd.f32 %v3107, %v3108
        %v3110 = vsel %vm3025, %v2809, 0.0
        %v3111 = vadd.f32 %v3109, %v3110
        %v3112 = vsel %vm3025, %v2810, 0.0
        %v3113 = vadd.f32 %v3111, %v3112
        %v3114 = vsel %vm3025, %v2811, 0.0
        %v3115 = vadd.f32 %v3113, %v3114
        %v3116 = vsel %vm3025, %v2812, 0.0
        %v3117 = vadd.f32 %v3115, %v3116
        %v3118 = vsel %vm3025, %v2813, 0.0
        %v3119 = vadd.f32 %v3117, %v3118
        %v3120 = vsel %vm3025, %v2814, 0.0
        %v3121 = vadd.f32 %v3119, %v3120
        %v3122 = vsel %vm3025, %v2815, 0.0
        %v3123 = vadd.f32 %v3121, %v3122
        %v3124 = vsel %vm3025, %v2816, 0.0
        %v3125 = vadd.f32 %v3123, %v3124
        %v3126 = vsel %vm3025, %v2817, 0.0
        %v3127 = vadd.f32 %v3125, %v3126
        %v3128 = vsel %vm3025, %v2818, 0.0
        %v3129 = vadd.f32 %v3127, %v3128
        %v3130 = vsel %vm3025, %v2819, 0.0
        %v3131 = vadd.f32 %v3129, %v3130
        %v3132 = vsel %vm3025, %v2820, 0.0
        %v3133 = vadd.f32 %v3131, %v3132
        %v3134 = vsel %vm3025, %v2821, 0.0
        %v3135 = vadd.f32 %v3133, %v3134
        %v3136 = vsel %vm3025, %v2822, 0.0
        %v3137 = vadd.f32 %v3135, %v3136
        %v3138 = vsel %vm3025, %v2823, 0.0
        %v3139 = vadd.f32 %v3137, %v3138
        %v3140 = vsel %vm3025, %v2824, 0.0
        %v3141 = vadd.f32 %v3139, %v3140
        %v3142 = vsel %vm3025, %v2825, 0.0
        %v3143 = vadd.f32 %v3141, %v3142
        %v3144 = vsel %vm3025, %v2826, 0.0
        %v3145 = vadd.f32 %v3143, %v3144
        %v3146 = vsel %vm3025, %v2827, 0.0
        %v3147 = vadd.f32 %v3145, %v3146
        %v3148 = vsel %vm3025, %v2828, 0.0
        %v3149 = vadd.f32 %v3147, %v3148
        %v3150 = vsel %vm3025, %v2829, 0.0
        %v3151 = vadd.f32 %v3149, %v3150
        %v3152 = vsel %vm3025, %v2830, 0.0
        %v3153 = vadd.f32 %v3151, %v3152
        %v3154 = vsel %vm3025, %v2831, 0.0
        %v3155 = vadd.f32 %v3153, %v3154
        %v3156 = vsel %vm3025, %v2832, 0.0
        %v3157 = vadd.f32 %v3155, %v3156
        %v3158 = vrot.slane %v3157, 4
        %v3159 = vadd.f32 %v3157, %v3158
        %v3160 = vrot.slane %v3159, 2
        %v3161 = vadd.f32 %v3159, %v3160
        %v3162 = vrot.slane %v3161, 1
        %v3163 = vadd.f32 %v3161, %v3162
        %v3164 = vsel %vm3025, %v2833, 0.0
        %v3165 = vsel %vm3025, %v2834, 0.0
        %v3166 = vadd.f32 %v3164, %v3165
        %v3167 = vsel %vm3025, %v2835, 0.0
        %v3168 = vadd.f32 %v3166, %v3167
        %v3169 = vsel %vm3025, %v2836, 0.0
        %v3170 = vadd.f32 %v3168, %v3169
        %v3171 = vsel %vm3025, %v2837, 0.0
        %v3172 = vadd.f32 %v3170, %v3171
        %v3173 = vsel %vm3025, %v2838, 0.0
        %v3174 = vadd.f32 %v3172, %v3173
        %v3175 = vsel %vm3025, %v2839, 0.0
        %v3176 = vadd.f32 %v3174, %v3175
        %v3177 = vsel %vm3025, %v2840, 0.0
        %v3178 = vadd.f32 %v3176, %v3177
        %v3179 = vsel %vm3025, %v2841, 0.0
        %v3180 = vadd.f32 %v3178, %v3179
        %v3181 = vsel %vm3025, %v2842, 0.0
        %v3182 = vadd.f32 %v3180, %v3181
        %v3183 = vsel %vm3025, %v2843, 0.0
        %v3184 = vadd.f32 %v3182, %v3183
        %v3185 = vsel %vm3025, %v2844, 0.0
        %v3186 = vadd.f32 %v3184, %v3185
        %v3187 = vsel %vm3025, %v2845, 0.0
        %v3188 = vadd.f32 %v3186, %v3187
        %v3189 = vsel %vm3025, %v2846, 0.0
        %v3190 = vadd.f32 %v3188, %v3189
        %v3191 = vsel %vm3025, %v2847, 0.0
        %v3192 = vadd.f32 %v3190, %v3191
        %v3193 = vsel %vm3025, %v2848, 0.0
        %v3194 = vadd.f32 %v3192, %v3193
        %v3195 = vsel %vm3025, %v2849, 0.0
        %v3196 = vadd.f32 %v3194, %v3195
        %v3197 = vsel %vm3025, %v2850, 0.0
        %v3198 = vadd.f32 %v3196, %v3197
        %v3199 = vsel %vm3025, %v2851, 0.0
        %v3200 = vadd.f32 %v3198, %v3199
        %v3201 = vsel %vm3025, %v2852, 0.0
        %v3202 = vadd.f32 %v3200, %v3201
        %v3203 = vsel %vm3025, %v2853, 0.0
        %v3204 = vadd.f32 %v3202, %v3203
        %v3205 = vsel %vm3025, %v2854, 0.0
        %v3206 = vadd.f32 %v3204, %v3205
        %v3207 = vsel %vm3025, %v2855, 0.0
        %v3208 = vadd.f32 %v3206, %v3207
        %v3209 = vsel %vm3025, %v2856, 0.0
        %v3210 = vadd.f32 %v3208, %v3209
        %v3211 = vsel %vm3025, %v2857, 0.0
        %v3212 = vadd.f32 %v3210, %v3211
        %v3213 = vsel %vm3025, %v2858, 0.0
        %v3214 = vadd.f32 %v3212, %v3213
        %v3215 = vsel %vm3025, %v2859, 0.0
        %v3216 = vadd.f32 %v3214, %v3215
        %v3217 = vsel %vm3025, %v2860, 0.0
        %v3218 = vadd.f32 %v3216, %v3217
        %v3219 = vsel %vm3025, %v2861, 0.0
        %v3220 = vadd.f32 %v3218, %v3219
        %v3221 = vsel %vm3025, %v2862, 0.0
        %v3222 = vadd.f32 %v3220, %v3221
        %v3223 = vsel %vm3025, %v2863, 0.0
        %v3224 = vadd.f32 %v3222, %v3223
        %v3225 = vsel %vm3025, %v2864, 0.0
        %v3226 = vadd.f32 %v3224, %v3225
        %v3227 = vrot.slane %v3226, 4
        %v3228 = vadd.f32 %v3226, %v3227
        %v3229 = vrot.slane %v3228, 2
        %v3230 = vadd.f32 %v3228, %v3229
        %v3231 = vrot.slane %v3230, 1
        %v3232 = vadd.f32 %v3230, %v3231
        %v3233 = vsel %vm3025, %v2865, 0.0
        %v3234 = vsel %vm3025, %v2866, 0.0
        %v3235 = vadd.f32 %v3233, %v3234
        %v3236 = vsel %vm3025, %v2867, 0.0
        %v3237 = vadd.f32 %v3235, %v3236
        %v3238 = vsel %vm3025, %v2868, 0.0
        %v3239 = vadd.f32 %v3237, %v3238
        %v3240 = vsel %vm3025, %v2869, 0.0
        %v3241 = vadd.f32 %v3239, %v3240
        %v3242 = vsel %vm3025, %v2870, 0.0
        %v3243 = vadd.f32 %v3241, %v3242
        %v3244 = vsel %vm3025, %v2871, 0.0
        %v3245 = vadd.f32 %v3243, %v3244
        %v3246 = vsel %vm3025, %v2872, 0.0
        %v3247 = vadd.f32 %v3245, %v3246
        %v3248 = vsel %vm3025, %v2873, 0.0
        %v3249 = vadd.f32 %v3247, %v3248
        %v3250 = vsel %vm3025, %v2874, 0.0
        %v3251 = vadd.f32 %v3249, %v3250
        %v3252 = vsel %vm3025, %v2875, 0.0
        %v3253 = vadd.f32 %v3251, %v3252
        %v3254 = vsel %vm3025, %v2876, 0.0
        %v3255 = vadd.f32 %v3253, %v3254
        %v3256 = vsel %vm3025, %v2877, 0.0
        %v3257 = vadd.f32 %v3255, %v3256
        %v3258 = vsel %vm3025, %v2878, 0.0
        %v3259 = vadd.f32 %v3257, %v3258
        %v3260 = vsel %vm3025, %v2879, 0.0
        %v3261 = vadd.f32 %v3259, %v3260
        %v3262 = vsel %vm3025, %v2880, 0.0
        %v3263 = vadd.f32 %v3261, %v3262
        %v3264 = vsel %vm3025, %v2881, 0.0
        %v3265 = vadd.f32 %v3263, %v3264
        %v3266 = vsel %vm3025, %v2882, 0.0
        %v3267 = vadd.f32 %v3265, %v3266
        %v3268 = vsel %vm3025, %v2883, 0.0
        %v3269 = vadd.f32 %v3267, %v3268
        %v3270 = vsel %vm3025, %v2884, 0.0
        %v3271 = vadd.f32 %v3269, %v3270
        %v3272 = vsel %vm3025, %v2885, 0.0
        %v3273 = vadd.f32 %v3271, %v3272
        %v3274 = vsel %vm3025, %v2886, 0.0
        %v3275 = vadd.f32 %v3273, %v3274
        %v3276 = vsel %vm3025, %v2887, 0.0
        %v3277 = vadd.f32 %v3275, %v3276
        %v3278 = vsel %vm3025, %v2888, 0.0
        %v3279 = vadd.f32 %v3277, %v3278
        %v3280 = vsel %vm3025, %v2889, 0.0
        %v3281 = vadd.f32 %v3279, %v3280
        %v3282 = vsel %vm3025, %v2890, 0.0
        %v3283 = vadd.f32 %v3281, %v3282
        %v3284 = vsel %vm3025, %v2891, 0.0
        %v3285 = vadd.f32 %v3283, %v3284
        %v3286 = vsel %vm3025, %v2892, 0.0
        %v3287 = vadd.f32 %v3285, %v3286
        %v3288 = vsel %vm3025, %v2893, 0.0
        %v3289 = vadd.f32 %v3287, %v3288
        %v3290 = vsel %vm3025, %v2894, 0.0
        %v3291 = vadd.f32 %v3289, %v3290
        %v3292 = vsel %vm3025, %v2895, 0.0
        %v3293 = vadd.f32 %v3291, %v3292
        %v3294 = vsel %vm3025, %v2896, 0.0
        %v3295 = vadd.f32 %v3293, %v3294
        %v3296 = vrot.slane %v3295, 4
        %v3297 = vadd.f32 %v3295, %v3296
        %v3298 = vrot.slane %v3297, 2
        %v3299 = vadd.f32 %v3297, %v3298
        %v3300 = vrot.slane %v3299, 1
        %v3301 = vadd.f32 %v3299, %v3300
        %v3302 = vsel %vm3025, %v2897, 0.0
        %v3303 = vsel %vm3025, %v2898, 0.0
        %v3304 = vadd.f32 %v3302, %v3303
        %v3305 = vsel %vm3025, %v2899, 0.0
        %v3306 = vadd.f32 %v3304, %v3305
        %v3307 = vsel %vm3025, %v2900, 0.0
        %v3308 = vadd.f32 %v3306, %v3307
        %v3309 = vsel %vm3025, %v2901, 0.0
        %v3310 = vadd.f32 %v3308, %v3309
        %v3311 = vsel %vm3025, %v2902, 0.0
        %v3312 = vadd.f32 %v3310, %v3311
        %v3313 = vsel %vm3025, %v2903, 0.0
        %v3314 = vadd.f32 %v3312, %v3313
        %v3315 = vsel %vm3025, %v2904, 0.0
        %v3316 = vadd.f32 %v3314, %v3315
        %v3317 = vsel %vm3025, %v2905, 0.0
        %v3318 = vadd.f32 %v3316, %v3317
        %v3319 = vsel %vm3025, %v2906, 0.0
        %v3320 = vadd.f32 %v3318, %v3319
        %v3321 = vsel %vm3025, %v2907, 0.0
        %v3322 = vadd.f32 %v3320, %v3321
        %v3323 = vsel %vm3025, %v2908, 0.0
        %v3324 = vadd.f32 %v3322, %v3323
        %v3325 = vsel %vm3025, %v2909, 0.0
        %v3326 = vadd.f32 %v3324, %v3325
        %v3327 = vsel %vm3025, %v2910, 0.0
        %v3328 = vadd.f32 %v3326, %v3327
        %v3329 = vsel %vm3025, %v2911, 0.0
        %v3330 = vadd.f32 %v3328, %v3329
        %v3331 = vsel %vm3025, %v2912, 0.0
        %v3332 = vadd.f32 %v3330, %v3331
        %v3333 = vsel %vm3025, %v2913, 0.0
        %v3334 = vadd.f32 %v3332, %v3333
        %v3335 = vsel %vm3025, %v2914, 0.0
        %v3336 = vadd.f32 %v3334, %v3335
        %v3337 = vsel %vm3025, %v2915, 0.0
        %v3338 = vadd.f32 %v3336, %v3337
        %v3339 = vsel %vm3025, %v2916, 0.0
        %v3340 = vadd.f32 %v3338, %v3339
        %v3341 = vsel %vm3025, %v2917, 0.0
        %v3342 = vadd.f32 %v3340, %v3341
        %v3343 = vsel %vm3025, %v2918, 0.0
        %v3344 = vadd.f32 %v3342, %v3343
        %v3345 = vsel %vm3025, %v2919, 0.0
        %v3346 = vadd.f32 %v3344, %v3345
        %v3347 = vsel %vm3025, %v2920, 0.0
        %v3348 = vadd.f32 %v3346, %v3347
        %v3349 = vsel %vm3025, %v2921, 0.0
        %v3350 = vadd.f32 %v3348, %v3349
        %v3351 = vsel %vm3025, %v2922, 0.0
        %v3352 = vadd.f32 %v3350, %v3351
        %v3353 = vsel %vm3025, %v2923, 0.0
        %v3354 = vadd.f32 %v3352, %v3353
        %v3355 = vsel %vm3025, %v2924, 0.0
        %v3356 = vadd.f32 %v3354, %v3355
        %v3357 = vsel %vm3025, %v2925, 0.0
        %v3358 = vadd.f32 %v3356, %v3357
        %v3359 = vsel %vm3025, %v2926, 0.0
        %v3360 = vadd.f32 %v3358, %v3359
        %v3361 = vsel %vm3025, %v2927, 0.0
        %v3362 = vadd.f32 %v3360, %v3361
        %v3363 = vsel %vm3025, %v2928, 0.0
        %v3364 = vadd.f32 %v3362, %v3363
        %v3365 = vrot.slane %v3364, 4
        %v3366 = vadd.f32 %v3364, %v3365
        %v3367 = vrot.slane %v3366, 2
        %v3368 = vadd.f32 %v3366, %v3367
        %v3369 = vrot.slane %v3368, 1
        %v3370 = vadd.f32 %v3368, %v3369
        %v3371 = vsel %vm3025, %v2929, 0.0
        %v3372 = vsel %vm3025, %v2930, 0.0
        %v3373 = vadd.f32 %v3371, %v3372
        %v3374 = vsel %vm3025, %v2931, 0.0
        %v3375 = vadd.f32 %v3373, %v3374
        %v3376 = vsel %vm3025, %v2932, 0.0
        %v3377 = vadd.f32 %v3375, %v3376
        %v3378 = vsel %vm3025, %v2933, 0.0
        %v3379 = vadd.f32 %v3377, %v3378
        %v3380 = vsel %vm3025, %v2934, 0.0
        %v3381 = vadd.f32 %v3379, %v3380
        %v3382 = vsel %vm3025, %v2935, 0.0
        %v3383 = vadd.f32 %v3381, %v3382
        %v3384 = vsel %vm3025, %v2936, 0.0
        %v3385 = vadd.f32 %v3383, %v3384
        %v3386 = vsel %vm3025, %v2937, 0.0
        %v3387 = vadd.f32 %v3385, %v3386
        %v3388 = vsel %vm3025, %v2938, 0.0
        %v3389 = vadd.f32 %v3387, %v3388
        %v3390 = vsel %vm3025, %v2939, 0.0
        %v3391 = vadd.f32 %v3389, %v3390
        %v3392 = vsel %vm3025, %v2940, 0.0
        %v3393 = vadd.f32 %v3391, %v3392
        %v3394 = vsel %vm3025, %v2941, 0.0
        %v3395 = vadd.f32 %v3393, %v3394
        %v3396 = vsel %vm3025, %v2942, 0.0
        %v3397 = vadd.f32 %v3395, %v3396
        %v3398 = vsel %vm3025, %v2943, 0.0
        %v3399 = vadd.f32 %v3397, %v3398
        %v3400 = vsel %vm3025, %v2944, 0.0
        %v3401 = vadd.f32 %v3399, %v3400
        %v3402 = vsel %vm3025, %v2945, 0.0
        %v3403 = vadd.f32 %v3401, %v3402
        %v3404 = vsel %vm3025, %v2946, 0.0
        %v3405 = vadd.f32 %v3403, %v3404
        %v3406 = vsel %vm3025, %v2947, 0.0
        %v3407 = vadd.f32 %v3405, %v3406
        %v3408 = vsel %vm3025, %v2948, 0.0
        %v3409 = vadd.f32 %v3407, %v3408
        %v3410 = vsel %vm3025, %v2949, 0.0
        %v3411 = vadd.f32 %v3409, %v3410
        %v3412 = vsel %vm3025, %v2950, 0.0
        %v3413 = vadd.f32 %v3411, %v3412
        %v3414 = vsel %vm3025, %v2951, 0.0
        %v3415 = vadd.f32 %v3413, %v3414
        %v3416 = vsel %vm3025, %v2952, 0.0
        %v3417 = vadd.f32 %v3415, %v3416
        %v3418 = vsel %vm3025, %v2953, 0.0
        %v3419 = vadd.f32 %v3417, %v3418
        %v3420 = vsel %vm3025, %v2954, 0.0
        %v3421 = vadd.f32 %v3419, %v3420
        %v3422 = vsel %vm3025, %v2955, 0.0
        %v3423 = vadd.f32 %v3421, %v3422
        %v3424 = vsel %vm3025, %v2956, 0.0
        %v3425 = vadd.f32 %v3423, %v3424
        %v3426 = vsel %vm3025, %v2957, 0.0
        %v3427 = vadd.f32 %v3425, %v3426
        %v3428 = vsel %vm3025, %v2958, 0.0
        %v3429 = vadd.f32 %v3427, %v3428
        %v3430 = vsel %vm3025, %v2959, 0.0
        %v3431 = vadd.f32 %v3429, %v3430
        %v3432 = vsel %vm3025, %v2960, 0.0
        %v3433 = vadd.f32 %v3431, %v3432
        %v3434 = vrot.slane %v3433, 4
        %v3435 = vadd.f32 %v3433, %v3434
        %v3436 = vrot.slane %v3435, 2
        %v3437 = vadd.f32 %v3435, %v3436
        %v3438 = vrot.slane %v3437, 1
        %v3439 = vadd.f32 %v3437, %v3438
        %v3440 = vsel %vm3025, %v2961, 0.0
        %v3441 = vsel %vm3025, %v2962, 0.0
        %v3442 = vadd.f32 %v3440, %v3441
        %v3443 = vsel %vm3025, %v2963, 0.0
        %v3444 = vadd.f32 %v3442, %v3443
        %v3445 = vsel %vm3025, %v2964, 0.0
        %v3446 = vadd.f32 %v3444, %v3445
        %v3447 = vsel %vm3025, %v2965, 0.0
        %v3448 = vadd.f32 %v3446, %v3447
        %v3449 = vsel %vm3025, %v2966, 0.0
        %v3450 = vadd.f32 %v3448, %v3449
        %v3451 = vsel %vm3025, %v2967, 0.0
        %v3452 = vadd.f32 %v3450, %v3451
        %v3453 = vsel %vm3025, %v2968, 0.0
        %v3454 = vadd.f32 %v3452, %v3453
        %v3455 = vsel %vm3025, %v2969, 0.0
        %v3456 = vadd.f32 %v3454, %v3455
        %v3457 = vsel %vm3025, %v2970, 0.0
        %v3458 = vadd.f32 %v3456, %v3457
        %v3459 = vsel %vm3025, %v2971, 0.0
        %v3460 = vadd.f32 %v3458, %v3459
        %v3461 = vsel %vm3025, %v2972, 0.0
        %v3462 = vadd.f32 %v3460, %v3461
        %v3463 = vsel %vm3025, %v2973, 0.0
        %v3464 = vadd.f32 %v3462, %v3463
        %v3465 = vsel %vm3025, %v2974, 0.0
        %v3466 = vadd.f32 %v3464, %v3465
        %v3467 = vsel %vm3025, %v2975, 0.0
        %v3468 = vadd.f32 %v3466, %v3467
        %v3469 = vsel %vm3025, %v2976, 0.0
        %v3470 = vadd.f32 %v3468, %v3469
        %v3471 = vsel %vm3025, %v2977, 0.0
        %v3472 = vadd.f32 %v3470, %v3471
        %v3473 = vsel %vm3025, %v2978, 0.0
        %v3474 = vadd.f32 %v3472, %v3473
        %v3475 = vsel %vm3025, %v2979, 0.0
        %v3476 = vadd.f32 %v3474, %v3475
        %v3477 = vsel %vm3025, %v2980, 0.0
        %v3478 = vadd.f32 %v3476, %v3477
        %v3479 = vsel %vm3025, %v2981, 0.0
        %v3480 = vadd.f32 %v3478, %v3479
        %v3481 = vsel %vm3025, %v2982, 0.0
        %v3482 = vadd.f32 %v3480, %v3481
        %v3483 = vsel %vm3025, %v2983, 0.0
        %v3484 = vadd.f32 %v3482, %v3483
        %v3485 = vsel %vm3025, %v2984, 0.0
        %v3486 = vadd.f32 %v3484, %v3485
        %v3487 = vsel %vm3025, %v2985, 0.0
        %v3488 = vadd.f32 %v3486, %v3487
        %v3489 = vsel %vm3025, %v2986, 0.0
        %v3490 = vadd.f32 %v3488, %v3489
        %v3491 = vsel %vm3025, %v2987, 0.0
        %v3492 = vadd.f32 %v3490, %v3491
        %v3493 = vsel %vm3025, %v2988, 0.0
        %v3494 = vadd.f32 %v3492, %v3493
        %v3495 = vsel %vm3025, %v2989, 0.0
        %v3496 = vadd.f32 %v3494, %v3495
        %v3497 = vsel %vm3025, %v2990, 0.0
        %v3498 = vadd.f32 %v3496, %v3497
        %v3499 = vsel %vm3025, %v2991, 0.0
        %v3500 = vadd.f32 %v3498, %v3499
        %v3501 = vsel %vm3025, %v2992, 0.0
        %v3502 = vadd.f32 %v3500, %v3501
        %v3503 = vrot.slane %v3502, 4
        %v3504 = vadd.f32 %v3502, %v3503
        %v3505 = vrot.slane %v3504, 2
        %v3506 = vadd.f32 %v3504, %v3505
        %v3507 = vrot.slane %v3506, 1
        %v3508 = vadd.f32 %v3506, %v3507
        %v3509 = vsel %vm3025, %v2993, 0.0
        %v3510 = vsel %vm3025, %v2994, 0.0
        %v3511 = vadd.f32 %v3509, %v3510
        %v3512 = vsel %vm3025, %v2995, 0.0
        %v3513 = vadd.f32 %v3511, %v3512
        %v3514 = vsel %vm3025, %v2996, 0.0
        %v3515 = vadd.f32 %v3513, %v3514
        %v3516 = vsel %vm3025, %v2997, 0.0
        %v3517 = vadd.f32 %v3515, %v3516
        %v3518 = vsel %vm3025, %v2998, 0.0
        %v3519 = vadd.f32 %v3517, %v3518
        %v3520 = vsel %vm3025, %v2999, 0.0
        %v3521 = vadd.f32 %v3519, %v3520
        %v3522 = vsel %vm3025, %v3000, 0.0
        %v3523 = vadd.f32 %v3521, %v3522
        %v3524 = vsel %vm3025, %v3001, 0.0
        %v3525 = vadd.f32 %v3523, %v3524
        %v3526 = vsel %vm3025, %v3002, 0.0
        %v3527 = vadd.f32 %v3525, %v3526
        %v3528 = vsel %vm3025, %v3003, 0.0
        %v3529 = vadd.f32 %v3527, %v3528
        %v3530 = vsel %vm3025, %v3004, 0.0
        %v3531 = vadd.f32 %v3529, %v3530
        %v3532 = vsel %vm3025, %v3005, 0.0
        %v3533 = vadd.f32 %v3531, %v3532
        %v3534 = vsel %vm3025, %v3006, 0.0
        %v3535 = vadd.f32 %v3533, %v3534
        %v3536 = vsel %vm3025, %v3007, 0.0
        %v3537 = vadd.f32 %v3535, %v3536
        %v3538 = vsel %vm3025, %v3008, 0.0
        %v3539 = vadd.f32 %v3537, %v3538
        %v3540 = vsel %vm3025, %v3009, 0.0
        %v3541 = vadd.f32 %v3539, %v3540
        %v3542 = vsel %vm3025, %v3010, 0.0
        %v3543 = vadd.f32 %v3541, %v3542
        %v3544 = vsel %vm3025, %v3011, 0.0
        %v3545 = vadd.f32 %v3543, %v3544
        %v3546 = vsel %vm3025, %v3012, 0.0
        %v3547 = vadd.f32 %v3545, %v3546
        %v3548 = vsel %vm3025, %v3013, 0.0
        %v3549 = vadd.f32 %v3547, %v3548
        %v3550 = vsel %vm3025, %v3014, 0.0
        %v3551 = vadd.f32 %v3549, %v3550
        %v3552 = vsel %vm3025, %v3015, 0.0
        %v3553 = vadd.f32 %v3551, %v3552
        %v3554 = vsel %vm3025, %v3016, 0.0
        %v3555 = vadd.f32 %v3553, %v3554
        %v3556 = vsel %vm3025, %v3017, 0.0
        %v3557 = vadd.f32 %v3555, %v3556
        %v3558 = vsel %vm3025, %v3018, 0.0
        %v3559 = vadd.f32 %v3557, %v3558
        %v3560 = vsel %vm3025, %v3019, 0.0
        %v3561 = vadd.f32 %v3559, %v3560
        %v3562 = vsel %vm3025, %v3020, 0.0
        %v3563 = vadd.f32 %v3561, %v3562
        %v3564 = vsel %vm3025, %v3021, 0.0
        %v3565 = vadd.f32 %v3563, %v3564
        %v3566 = vsel %vm3025, %v3022, 0.0
        %v3567 = vadd.f32 %v3565, %v3566
        %v3568 = vsel %vm3025, %v3023, 0.0
        %v3569 = vadd.f32 %v3567, %v3568
        %v3570 = vsel %vm3025, %v3024, 0.0
        %v3571 = vadd.f32 %v3569, %v3570
        %v3572 = vrot.slane %v3571, 4
        %v3573 = vadd.f32 %v3571, %v3572
        %v3574 = vrot.slane %v3573, 2
        %v3575 = vadd.f32 %v3573, %v3574
        %v3576 = vrot.slane %v3575, 1
        %v3577 = vadd.f32 %v3575, %v3576
        %v3578 = vld [vmem:[%s3] sm:$0xff]
        %v3579 = vld [vmem:[%s3 + $0x8] sm:$0xff]
        %v3580 = vld [vmem:[%s3 + $0x10] sm:$0xff]
        %v3581 = vld [vmem:[%s3 + $0x18] sm:$0xff]
        %v3582 = vld [vmem:[%s4] sm:$0x1]
        %v3584 = vlaneseq
        %v3585 = vshrl.u32 %v3584, 7
        %v3586 = vsub.s32 0, %v3585
        %v3587 = vrot.slane %v3582, %v3586
        %vm3597 = vcmask 1041409
        %v3598 = vsel %vm3597, %v3163, %v3094
        %vm3599 = vcmask 1042434
        %v3600 = vsel %vm3599, %v3232, %v3598
        %vm3601 = vcmask 1043459
        %v3602 = vsel %vm3601, %v3301, %v3600
        %vm3603 = vcmask 1044484
        %v3604 = vsel %vm3603, %v3370, %v3602
        %vm3605 = vcmask 1045509
        %v3606 = vsel %vm3605, %v3439, %v3604
        %vm3607 = vcmask 1046534
        %v3608 = vsel %vm3607, %v3508, %v3606
        %vm3609 = vcmask 1047559
        %v3610 = vsel %vm3609, %v3577, %v3608
        %v3611 = vsel %vm3025, %v3610, 0
        %3613 = vmatprep.subr.mxu0 0.0
        %3614 = vmatpush1.msra.mxu0 %v3578
        %3615 = vmatprep.subr.mxu0 0.0
        %3616 = vmatpush1.msra.mxu0 %v3579
        %3617 = vmatprep.subr.mxu0 0.0
        %3618 = vmatpush1.msra.mxu0 %v3580
        %3619 = vmatprep.subr.mxu0 0.0
        %3620 = vmatpush1.msra.mxu0 %v3581
        %3621 = vmatprep.subr.mxu0 0.0
        %3622 = vmatpush1.msra.mxu0 0.0
        %3623 = vmatprep.subr.mxu0 0.0
        %3624 = vmatpush1.msra.mxu0 0.0
        %3625 = vmatprep.subr.mxu0 0.0
        %3626 = vmatpush1.msra.mxu0 0.0
        %3627 = vmatprep.subr.mxu0 0.0
        %3628 = vmatpush1.msra.mxu0 0.0
        %3629 = vmatprep.subr.mxu0 0.0
        %3630 = vmatpush1.msra.mxu0 0.0
        %3631 = vmatprep.subr.mxu0 0.0
        %3632 = vmatpush1.msra.mxu0 0.0
        %3633 = vmatprep.subr.mxu0 0.0
        %3634 = vmatpush1.msra.mxu0 0.0
        %3635 = vmatprep.subr.mxu0 0.0
        %3636 = vmatpush1.msra.mxu0 0.0
        %3637 = vmatprep.subr.mxu0 0.0
        %3638 = vmatpush1.msra.mxu0 0.0
        %3639 = vmatprep.subr.mxu0 0.0
        %3640 = vmatpush1.msra.mxu0 0.0
        %3641 = vmatprep.subr.mxu0 0.0
        %3642 = vmatpush1.msra.mxu0 0.0
        %3643 = vmatprep.subr.mxu0 0.0
        %3644 = vmatpush1.msra.mxu0 0.0
        %3645 = vmatprep.subr.mxu0 0.0
        %3646 = vmatpush1.msra.mxu0 0.0
        %3647 = vmatprep.subr.mxu0 0.0
        %3648 = vmatpush1.msra.mxu0 0.0
        %3649 = vmatprep.subr.mxu0 0.0
        %3650 = vmatpush1.msra.mxu0 0.0
        %3651 = vmatprep.subr.mxu0 0.0
        %3652 = vmatpush1.msra.mxu0 0.0
        %3653 = vmatprep.subr.mxu0 0.0
        %3654 = vmatpush1.msra.mxu0 0.0
        %3655 = vmatprep.subr.mxu0 0.0
        %3656 = vmatpush1.msra.mxu0 0.0
        %3657 = vmatprep.subr.mxu0 0.0
        %3658 = vmatpush1.msra.mxu0 0.0
        %3659 = vmatprep.subr.mxu0 0.0
        %3660 = vmatpush1.msra.mxu0 0.0
        %3661 = vmatprep.subr.mxu0 0.0
        %3662 = vmatpush1.msra.mxu0 0.0
        %3663 = vmatprep.subr.mxu0 0.0
        %3664 = vmatpush1.msra.mxu0 0.0
        %3665 = vmatprep.subr.mxu0 0.0
        %3666 = vmatpush1.msra.mxu0 0.0
        %3667 = vmatprep.subr.mxu0 0.0
        %3668 = vmatpush1.msra.mxu0 0.0
        %3669 = vmatprep.subr.mxu0 0.0
        %3670 = vmatpush1.msra.mxu0 0.0
        %3671 = vmatprep.subr.mxu0 0.0
        %3672 = vmatpush1.msra.mxu0 0.0
        %3673 = vmatprep.subr.mxu0 0.0
        %3674 = vmatpush1.msra.mxu0 0.0
        %3675 = vmatprep.subr.mxu0 0.0
        %3676 = vmatpush1.msra.mxu0 0.0
        %3677 = vmatprep.mubr.f32.mxu0 0.0
        %3678 = vmatmul.mubr.f32.gmra.mrb[0].mxu0 %v3611
        %v3679 = vpop.f32.mrb[0].mxu0
        %v3680 = vadd.f32 %v3587, %v3679
        %v3681 = vpop.f32.mrb[0].mxu0
        %3682 = vdwg.mxu0
        %v3683 = vld [vmem:[%s5] sm:$0xff]
        %v3684 = vld [vmem:[%s5 + $0x8] sm:$0x7f]
        %v3685 = vld [vmem:[%s6] sm:$0x1]
        %v3687 = vlaneseq
        %v3688 = vshrl.u32 %v3687, 7
        %v3689 = vsub.s32 0, %v3688
        %v3690 = vrot.slane %v3685, %v3689
        %vm3692 = vcmask 121856
        %v3694 = vsel %vm3692, %v3680, 0
        %vm3696 = vcmask 1046528
        %v3698 = vsel %vm3696, %v3684, 0
        %3700 = vmatprep.subr.mxu0 0.0
        %3701 = vmatpush1.msra.mxu0 %v3683
        %3702 = vmatprep.subr.mxu0 0.0
        %3703 = vmatpush1.msra.mxu0 %v3698
        %3704 = vmatprep.subr.mxu0 0.0
        %3705 = vmatpush1.msra.mxu0 0.0
        %3706 = vmatprep.subr.mxu0 0.0
        %3707 = vmatpush1.msra.mxu0 0.0
        %3708 = vmatprep.subr.mxu0 0.0
        %3709 = vmatpush1.msra.mxu0 0.0
        %3710 = vmatprep.subr.mxu0 0.0
        %3711 = vmatpush1.msra.mxu0 0.0
        %3712 = vmatprep.subr.mxu0 0.0
        %3713 = vmatpush1.msra.mxu0 0.0
        %3714 = vmatprep.subr.mxu0 0.0
        %3715 = vmatpush1.msra.mxu0 0.0
        %3716 = vmatprep.subr.mxu0 0.0
        %3717 = vmatpush1.msra.mxu0 0.0
        %3718 = vmatprep.subr.mxu0 0.0
        %3719 = vmatpush1.msra.mxu0 0.0
        %3720 = vmatprep.subr.mxu0 0.0
        %3721 = vmatpush1.msra.mxu0 0.0
        %3722 = vmatprep.subr.mxu0 0.0
        %3723 = vmatpush1.msra.mxu0 0.0
        %3724 = vmatprep.subr.mxu0 0.0
        %3725 = vmatpush1.msra.mxu0 0.0
        %3726 = vmatprep.subr.mxu0 0.0
        %3727 = vmatpush1.msra.mxu0 0.0
        %3728 = vmatprep.subr.mxu0 0.0
        %3729 = vmatpush1.msra.mxu0 0.0
        %3730 = vmatprep.subr.mxu0 0.0
        %3731 = vmatpush1.msra.mxu0 0.0
        %3732 = vmatprep.subr.mxu0 0.0
        %3733 = vmatpush1.msra.mxu0 0.0
        %3734 = vmatprep.subr.mxu0 0.0
        %3735 = vmatpush1.msra.mxu0 0.0
        %3736 = vmatprep.subr.mxu0 0.0
        %3737 = vmatpush1.msra.mxu0 0.0
        %3738 = vmatprep.subr.mxu0 0.0
        %3739 = vmatpush1.msra.mxu0 0.0
        %3740 = vmatprep.subr.mxu0 0.0
        %3741 = vmatpush1.msra.mxu0 0.0
        %3742 = vmatprep.subr.mxu0 0.0
        %3743 = vmatpush1.msra.mxu0 0.0
        %3744 = vmatprep.subr.mxu0 0.0
        %3745 = vmatpush1.msra.mxu0 0.0
        %3746 = vmatprep.subr.mxu0 0.0
        %3747 = vmatpush1.msra.mxu0 0.0
        %3748 = vmatprep.subr.mxu0 0.0
        %3749 = vmatpush1.msra.mxu0 0.0
        %3750 = vmatprep.subr.mxu0 0.0
        %3751 = vmatpush1.msra.mxu0 0.0
        %3752 = vmatprep.subr.mxu0 0.0
        %3753 = vmatpush1.msra.mxu0 0.0
        %3754 = vmatprep.subr.mxu0 0.0
        %3755 = vmatpush1.msra.mxu0 0.0
        %3756 = vmatprep.subr.mxu0 0.0
        %3757 = vmatpush1.msra.mxu0 0.0
        %3758 = vmatprep.subr.mxu0 0.0
        %3759 = vmatpush1.msra.mxu0 0.0
        %3760 = vmatprep.subr.mxu0 0.0
        %3761 = vmatpush1.msra.mxu0 0.0
        %3762 = vmatprep.subr.mxu0 0.0
        %3763 = vmatpush1.msra.mxu0 0.0
        %3764 = vmatprep.mubr.f32.mxu0 0.0
        %3765 = vmatmul.mubr.f32.gmra.mrb[0].mxu0 %v3694
        %v3766 = vpop.f32.mrb[0].mxu0
        %v3767 = vadd.f32 %v3690, %v3766
        %v3768 = vpop.f32.mrb[0].mxu0
        %3769 = vdwg.mxu0
        %3770 = vmax.xlane.f32.xlu0 %v3767
        %v3771 = vpop.xlane.xlu0 %3770
        %v3772 = vsub.f32 %v3767, %v3771
        %v3773 = vmul.f32 %v3772, 1.442695
        %v3774 = vpow.pop %v3773
        %3775 = vadd.xlane.f32.xlu0 %v3774
        %v3776 = vpop.xlane.xlu0 %3775
        %v3777 = vrcp.pop %v3776
        %v3778 = vmul.f32 %v3774, %v3777
        %3779 = vst [vmem:[%s393] sm:$0xff] %v3778
        %v3780 = vld [vmem:[%s7] sm:$0xff]
        %v3781 = vld [vmem:[%s7 + $0x8] sm:$0xff]
        %v3782 = vld [vmem:[%s7 + $0x10] sm:$0xff]
        %v3783 = vld [vmem:[%s7 + $0x18] sm:$0xff]
        %v3784 = vld [vmem:[%s7 + $0x20] sm:$0xff]
        %v3785 = vld [vmem:[%s7 + $0x28] sm:$0xff]
        %v3786 = vld [vmem:[%s7 + $0x30] sm:$0xff]
        %v3787 = vld [vmem:[%s7 + $0x38] sm:$0xff]
        %v3788 = vld [vmem:[%s7 + $0x40] sm:$0xff]
        %v3789 = vld [vmem:[%s7 + $0x48] sm:$0xff]
        %v3790 = vld [vmem:[%s7 + $0x50] sm:$0xff]
        %v3791 = vld [vmem:[%s7 + $0x58] sm:$0xff]
        %v3792 = vld [vmem:[%s7 + $0x60] sm:$0xff]
        %v3793 = vld [vmem:[%s7 + $0x68] sm:$0xff]
        %v3794 = vld [vmem:[%s7 + $0x70] sm:$0xff]
        %v3795 = vld [vmem:[%s7 + $0x78] sm:$0xff]
        %3796 = vmatprep.subr.mxu0 0.0
        %3797 = vmatpush1.msra.mxu0 %v3780
        %3798 = vmatprep.subr.mxu0 0.0
        %3799 = vmatpush1.msra.mxu0 %v3781
        %3800 = vmatprep.subr.mxu0 0.0
        %3801 = vmatpush1.msra.mxu0 %v3782
        %3802 = vmatprep.subr.mxu0 0.0
        %3803 = vmatpush1.msra.mxu0 %v3783
        %3804 = vmatprep.subr.mxu0 0.0
        %3805 = vmatpush1.msra.mxu0 %v3784
        %3806 = vmatprep.subr.mxu0 0.0
        %3807 = vmatpush1.msra.mxu0 %v3785
        %3808 = vmatprep.subr.mxu0 0.0
        %3809 = vmatpush1.msra.mxu0 %v3786
        %3810 = vmatprep.subr.mxu0 0.0
        %3811 = vmatpush1.msra.mxu0 %v3787
        %3812 = vmatprep.subr.mxu0 0.0
        %3813 = vmatpush1.msra.mxu0 %v3788
        %3814 = vmatprep.subr.mxu0 0.0
        %3815 = vmatpush1.msra.mxu0 %v3789
        %3816 = vmatprep.subr.mxu0 0.0
        %3817 = vmatpush1.msra.mxu0 %v3790
        %3818 = vmatprep.subr.mxu0 0.0
        %3819 = vmatpush1.msra.mxu0 %v3791
        %3820 = vmatprep.subr.mxu0 0.0
        %3821 = vmatpush1.msra.mxu0 %v3792
        %3822 = vmatprep.subr.mxu0 0.0
        %3823 = vmatpush1.msra.mxu0 %v3793
        %3824 = vmatprep.subr.mxu0 0.0
        %3825 = vmatpush1.msra.mxu0 %v3794
        %3826 = vmatprep.subr.mxu0 0.0
        %3827 = vmatpush1.msra.mxu0 %v3795
        %3828 = vmatprep.subr.mxu0 0.0
        %3829 = vmatpush1.msra.mxu0 0.0
        %3830 = vmatprep.subr.mxu0 0.0
        %3831 = vmatpush1.msra.mxu0 0.0
        %3832 = vmatprep.subr.mxu0 0.0
        %3833 = vmatpush1.msra.mxu0 0.0
        %3834 = vmatprep.subr.mxu0 0.0
        %3835 = vmatpush1.msra.mxu0 0.0
        %3836 = vmatprep.subr.mxu0 0.0
        %3837 = vmatpush1.msra.mxu0 0.0
        %3838 = vmatprep.subr.mxu0 0.0
        %3839 = vmatpush1.msra.mxu0 0.0
        %3840 = vmatprep.subr.mxu0 0.0
        %3841 = vmatpush1.msra.mxu0 0.0
        %3842 = vmatprep.subr.mxu0 0.0
        %3843 = vmatpush1.msra.mxu0 0.0
        %3844 = vmatprep.subr.mxu0 0.0
        %3845 = vmatpush1.msra.mxu0 0.0
        %3846 = vmatprep.subr.mxu0 0.0
        %3847 = vmatpush1.msra.mxu0 0.0
        %3848 = vmatprep.subr.mxu0 0.0
        %3849 = vmatpush1.msra.mxu0 0.0
        %3850 = vmatprep.subr.mxu0 0.0
        %3851 = vmatpush1.msra.mxu0 0.0
        %3852 = vmatprep.subr.mxu0 0.0
        %3853 = vmatpush1.msra.mxu0 0.0
        %3854 = vmatprep.subr.mxu0 0.0
        %3855 = vmatpush1.msra.mxu0 0.0
        %3856 = vmatprep.subr.mxu0 0.0
        %3857 = vmatpush1.msra.mxu0 0.0
        %3858 = vmatprep.subr.mxu0 0.0
        %3859 = vmatpush1.msra.mxu0 0.0
        %3860 = vmatprep.mubr.f32.mxu0 0.0
        %3861 = vmatmul.mubr.f32.gmra.mrb[0].mxu0 %v3778
        %v3862 = vpop.f32.mrb[0].mxu0
        %v3863 = vadd.f32 0.0, %v3862
        %v3864 = vpop.f32.mrb[0].mxu0
        %3865 = vdwg.mxu0
        %v3866 = vsub.f32 %v3680, %v3863
        %v3867 = vld [vmem:[%s8] sm:$0xff]
        %v3868 = vld [vmem:[%s8 + $0x8] sm:$0x7f]
        %v3869 = vld [vmem:[%s9] sm:$0x1]
        %v3871 = vlaneseq
        %v3872 = vshrl.u32 %v3871, 7
        %v3873 = vsub.s32 0, %v3872
        %v3874 = vrot.slane %v3869, %v3873
        %v3877 = vsel %vm3692, %v3866, 0
        %v3880 = vsel %vm3696, %v3868, 0
        %3882 = vmatprep.subr.mxu0 0.0
        %3883 = vmatpush1.msra.mxu0 %v3867
        %3884 = vmatprep.subr.mxu0 0.0
        %3885 = vmatpush1.msra.mxu0 %v3880
        %3886 = vmatprep.subr.mxu0 0.0
        %3887 = vmatpush1.msra.mxu0 0.0
        %3888 = vmatprep.subr.mxu0 0.0
        %3889 = vmatpush1.msra.mxu0 0.0
        %3890 = vmatprep.subr.mxu0 0.0
        %3891 = vmatpush1.msra.mxu0 0.0
        %3892 = vmatprep.subr.mxu0 0.0
        %3893 = vmatpush1.msra.mxu0 0.0
        %3894 = vmatprep.subr.mxu0 0.0
        %3895 = vmatpush1.msra.mxu0 0.0
        %3896 = vmatprep.subr.mxu0 0.0
        %3897 = vmatpush1.msra.mxu0 0.0
        %3898 = vmatprep.subr.mxu0 0.0
        %3899 = vmatpush1.msra.mxu0 0.0
        %3900 = vmatprep.subr.mxu0 0.0
        %3901 = vmatpush1.msra.mxu0 0.0
        %3902 = vmatprep.subr.mxu0 0.0
        %3903 = vmatpush1.msra.mxu0 0.0
        %3904 = vmatprep.subr.mxu0 0.0
        %3905 = vmatpush1.msra.mxu0 0.0
        %3906 = vmatprep.subr.mxu0 0.0
        %3907 = vmatpush1.msra.mxu0 0.0
        %3908 = vmatprep.subr.mxu0 0.0
        %3909 = vmatpush1.msra.mxu0 0.0
        %3910 = vmatprep.subr.mxu0 0.0
        %3911 = vmatpush1.msra.mxu0 0.0
        %3912 = vmatprep.subr.mxu0 0.0
        %3913 = vmatpush1.msra.mxu0 0.0
        %3914 = vmatprep.subr.mxu0 0.0
        %3915 = vmatpush1.msra.mxu0 0.0
        %3916 = vmatprep.subr.mxu0 0.0
        %3917 = vmatpush1.msra.mxu0 0.0
        %3918 = vmatprep.subr.mxu0 0.0
        %3919 = vmatpush1.msra.mxu0 0.0
        %3920 = vmatprep.subr.mxu0 0.0
        %3921 = vmatpush1.msra.mxu0 0.0
        %3922 = vmatprep.subr.mxu0 0.0
        %3923 = vmatpush1.msra.mxu0 0.0
        %3924 = vmatprep.subr.mxu0 0.0
        %3925 = vmatpush1.msra.mxu0 0.0
        %3926 = vmatprep.subr.mxu0 0.0
        %3927 = vmatpush1.msra.mxu0 0.0
        %3928 = vmatprep.subr.mxu0 0.0
        %3929 = vmatpush1.msra.mxu0 0.0
        %3930 = vmatprep.subr.mxu0 0.0
        %3931 = vmatpush1.msra.mxu0 0.0
        %3932 = vmatprep.subr.mxu0 0.0
        %3933 = vmatpush1.msra.mxu0 0.0
        %3934 = vmatprep.subr.mxu0 0.0
        %3935 = vmatpush1.msra.mxu0 0.0
        %3936 = vmatprep.subr.mxu0 0.0
        %3937 = vmatpush1.msra.mxu0 0.0
        %3938 = vmatprep.subr.mxu0 0.0
        %3939 = vmatpush1.msra.mxu0 0.0
        %3940 = vmatprep.subr.mxu0 0.0
        %3941 = vmatpush1.msra.mxu0 0.0
        %3942 = vmatprep.subr.mxu0 0.0
        %3943 = vmatpush1.msra.mxu0 0.0
        %3944 = vmatprep.subr.mxu0 0.0
        %3945 = vmatpush1.msra.mxu0 0.0
        %3946 = vmatprep.mubr.f32.mxu0 0.0
        %3947 = vmatmul.mubr.f32.gmra.mrb[0].mxu0 %v3877
        %v3948 = vpop.f32.mrb[0].mxu0
        %v3949 = vadd.f32 %v3874, %v3948
        %v3950 = vpop.f32.mrb[0].mxu0
        %3951 = vdwg.mxu0
        %3952 = vmax.xlane.f32.xlu0 %v3949
        %v3953 = vpop.xlane.xlu0 %3952
        %v3954 = vsub.f32 %v3949, %v3953
        %v3955 = vmul.f32 %v3954, 1.442695
        %v3956 = vpow.pop %v3955
        %3957 = vadd.xlane.f32.xlu0 %v3956
        %v3958 = vpop.xlane.xlu0 %3957
        %v3959 = vrcp.pop %v3958
        %v3960 = vmul.f32 %v3956, %v3959
        %3961 = vst [vmem:[%s386] sm:$0xff] %v3960
        %s3962 = sand.u32 %s252, 1
        %s3963 = scalar_lea.sflag [#allocation3], %s3962
        %s3964 = sand.u32 %s252, 1
        %s3965 = smul.addr %s3964, 8
        %s3966 = scalar_lea.vmem [#allocation2], %s3965
        %s3967 = sand.u32 %s278, 1
        %s3968 = scalar_lea.sflag [#allocation5], %s3967
        %s3969 = sand.u32 %s278, 1
        %s3970 = smul.addr %s3969, 8
        %s3971 = scalar_lea.vmem [#allocation4], %s3970
        // Predicated region
        $region61: #{tpu_custom_call.1} parent=59 // pred_check
          %p3972 = pneg %p262
        $region62: #{tpu_custom_call.1} parent=59 // pred_check_branch
          %3974 = sbr.rel (%p3972) target = $region64
        $region63: #{tpu_custom_call.1} parent=59 // pred_region
          %s3976 = ssub.s32 128, 128
          %3977 = vsyncadd %s3963, %s3976
          %s3978 = smul.addr %s29, 128
          %s3979 = scalar_lea.hbm %s10, %s3978
          %s3981 = sshll.u32 %s3966, 4
          %s3982 = int_to_ptr.vmem [resolvable:$true] %s3981
          %3984 = dma.vmem_to_hbm [thread:$0]  %s3982, 128, %s3979, %s3963
        $region64: #{tpu_custom_call.1} parent=59 // pred_fallthru
          _
        // Predicated region
        $region65: #{tpu_custom_call.1} parent=59 // pred_check
          %p3985 = pneg %p288
        $region66: #{tpu_custom_call.1} parent=59 // pred_check_branch
          %3987 = sbr.rel (%p3985) target = $region68
        $region67: #{tpu_custom_call.1} parent=59 // pred_region
          %s3989 = ssub.s32 128, 128
          %3990 = vsyncadd %s3968, %s3989
          %s3991 = smul.addr %s29, 128
          %s3992 = scalar_lea.hbm %s11, %s3991
          %s3994 = sshll.u32 %s3971, 4
          %s3995 = int_to_ptr.vmem [resolvable:$true] %s3994
          %3997 = dma.vmem_to_hbm [thread:$0]  %s3995, 128, %s3992, %s3968
        $region68: #{tpu_custom_call.1} parent=59 // pred_fallthru
          _
      $region60: #{tpu_custom_call.1} parent=5 // pred_fallthru
        _
      %p3998 = scmp.le.s32.totalorder 2, %s24
      // Predicated region
      $region69: #{tpu_custom_call.1} parent=5 // pred_check
        %p3999 = pneg %p3998
      $region70: #{tpu_custom_call.1} parent=5 // pred_check_branch
        %4001 = sbr.rel (%p3999) target = $region72
      $region71: #{tpu_custom_call.1} parent=5 // pred_region
        %s4002 = ssub.s32 %s24, 2
        // Predicated region
        $region73: #{tpu_custom_call.1} parent=71 // pred_check
          %p4003 = pneg %p268
        $region74: #{tpu_custom_call.1} parent=71 // pred_check_branch
          %4005 = sbr.rel (%p4003) target = $region76
        $region75: #{tpu_custom_call.1} parent=71 // pred_region
          %s4006 = sand.u32 %s253, 1
          %s4007 = scalar_lea.sflag [#allocation3], %s4006
          %s4008 = sand.u32 %s253, 1
          %s4009 = smul.addr %s4008, 8
          %s4010 = scalar_lea.vmem [#allocation2], %s4009
          %4011 = dma.done %s4007, 128
        $region76: #{tpu_custom_call.1} parent=71 // pred_fallthru
          _
        // Predicated region
        $region77: #{tpu_custom_call.1} parent=71 // pred_check
          %p4012 = pneg %p294
        $region78: #{tpu_custom_call.1} parent=71 // pred_check_branch
          %4014 = sbr.rel (%p4012) target = $region80
        $region79: #{tpu_custom_call.1} parent=71 // pred_region
          %s4015 = sand.u32 %s279, 1
          %s4016 = scalar_lea.sflag [#allocation5], %s4015
          %s4017 = sand.u32 %s279, 1
          %s4018 = smul.addr %s4017, 8
          %s4019 = scalar_lea.vmem [#allocation4], %s4018
          %4020 = dma.done %s4016, 128
        $region80: #{tpu_custom_call.1} parent=71 // pred_fallthru
          _
      $region72: #{tpu_custom_call.1} parent=5 // pred_fallthru
        _
    $region6: #{tpu_custom_call.1} parent=1 // loop_footer
      %s28 = sadd.s32 1, %s24
    $region7: #{tpu_custom_call.1} parent=1 // loop_footer_branch
      %23 = sbr.rel target = $region3
    $region8: #{tpu_custom_call.1} parent=1 // loop_exit
      _
    %4021 = vsyncpa [#allocation3], 1
    %s4022 = scalar_lea.sflag [#allocation3], 1
    %4023 = vsyncpa %s4022, 1
    %4024 = vsyncpa [#allocation5], 1
    %s4025 = scalar_lea.sflag [#allocation5], 1
    %4026 = vsyncpa %s4025, 1

</llo_original>
